<compile_context>
chip_gen: v6e
topology: v6e:2x2x1
jax: 0.10.0
libtpu: 0.0.40
codegen_flags: <defaults>
</compile_context>

<pallas_src>
import jax
import jax.numpy as jnp
import numpy as np
from jax.experimental import pallas as pl
from jax.experimental.pallas import tpu as pltpu

IN_DIM, H1, H2, H3 = 220500, 250, 100, 50   # dims fixed by the PyTorch module
H1_PAD = 256                                 # lane-dense layer-1 width (2 x 128)
TK = 8192                                    # K tile for the streamed layer-1 matmul
TN = 128                                     # N tile for layer 1 (2 tiles -> megacore split)
GRID_K = pl.cdiv(IN_DIM, TK)                 # 27
K_PAD = GRID_K * TK                          # 221184


def encode1_kernel(x_ref, w1_ref, b1_ref, h1_ref, acc_ref):
    """ReLU(x @ W1 + b1): K-tiled with f32 VMEM accumulator, N-split across cores."""
    k = pl.program_id(1)

    @pl.when(k == 0)
    def _init():
        acc_ref[...] = jnp.zeros_like(acc_ref)

    acc_ref[...] += jnp.dot(x_ref[...], w1_ref[...],
                            preferred_element_type=jnp.float32)

    @pl.when(k == pl.num_programs(1) - 1)
    def _finalize():
        h1_ref[...] = jnp.maximum(acc_ref[...] + b1_ref[...], 0.0).astype(h1_ref.dtype)


def encode23_kernel(h1_ref, w2_ref, b2_ref, w3_ref, b3_ref, o_ref):
    """Tiny fused epilogue: ReLU(ReLU(h1 @ W2 + b2) @ W3 + b3), fully VMEM-resident."""
    h2 = jnp.maximum(
        jnp.dot(h1_ref[...], w2_ref[...], preferred_element_type=jnp.float32)
        + b2_ref[...], 0.0)
    h3 = jnp.maximum(
        jnp.dot(h2, w3_ref[...], preferred_element_type=jnp.float32)
        + b3_ref[...], 0.0)
    o_ref[...] = h3.astype(o_ref.dtype)


def prepare_encoder_params(w1, b1, w2, b2, w3, b3):
    """One-time (init-time) padding of static parameters.

    - W1: rows padded K -> K_PAD with zeros, cols padded 250 -> 256 with zeros.
    - b1: padded to 256 with zeros (so padded h1 columns are ReLU(0) = 0).
    - W2: input rows padded 250 -> 256 with zeros (padded h1 columns contribute 0).
    Keeping this out of the per-call path removes ~2x extra HBM traffic per forward.
    """
    w1_p = jnp.zeros((K_PAD, H1_PAD), w1.dtype).at[:IN_DIM, :H1].set(w1)
    b1_p = jnp.zeros((1, H1_PAD), b1.dtype).at[0, :H1].set(b1)
    w2_p = jnp.zeros((H1_PAD, H2), w2.dtype).at[:H1, :].set(w2)
    return (w1_p, b1_p, w2_p, b2.reshape(1, H2), w3, b3.reshape(1, H3))


@jax.jit
def complex_encoder(x, params):
    w1_p, b1_p, w2_p, b2_r, w3, b3_r = params
    B, K = x.shape
    assert K == IN_DIM
    # Per-call zero-pad of the activation's contraction dim only (~1.7 MiB: cheap).
    x_p = jnp.pad(x, ((0, 0), (0, K_PAD - K)))

    cost = pl.CostEstimate(
        flops=2 * B * K_PAD * H1_PAD,
        transcendentals=0,
        bytes_accessed=(K_PAD * H1_PAD + B * K_PAD + B * H1_PAD) * 4,
    )

    # ---- Layer 1: HBM-streaming matmul over W1 (the only expensive part) ----
    h1 = pl.pallas_call(
        encode1_kernel,
        out_shape=jax.ShapeDtypeStruct((B, H1_PAD), jnp.float32),
        grid_spec=pltpu.PrefetchScalarGridSpec(
            num_scalar_prefetch=0,
            grid=(H1_PAD // TN, GRID_K),              # (N tiles, K tiles); K last
            in_specs=[
                pl.BlockSpec((B, TK), lambda n, k: (0, k)),    # x tile
                pl.BlockSpec((TK, TN), lambda n, k: (k, n)),   # W1 tile
                pl.BlockSpec((1, TN), lambda n, k: (0, n)),    # b1 tile
            ],
            out_specs=pl.BlockSpec((B, TN), lambda n, k: (0, n)),
            scratch_shapes=[pltpu.VMEM((B, TN), jnp.float32)],
        ),
        compiler_params=pltpu.CompilerParams(
            dimension_semantics=("parallel", "arbitrary"),
            vmem_limit_bytes=32 * 1024 * 1024),
        cost_estimate=cost,
    )(x_p, w1_p, b1_p)

    # ---- Layers 2 + 3: tiny, single-step kernel, everything in VMEM ----
    out = pl.pallas_call(
        encode23_kernel,
        out_shape=jax.ShapeDtypeStruct((B, H3), jnp.float32),
        grid_spec=pltpu.PrefetchScalarGridSpec(
            num_scalar_prefetch=0,
            grid=(1,),
            in_specs=[
                pl.BlockSpec((B, H1_PAD), lambda i: (0, 0)),
                pl.BlockSpec((H1_PAD, H2), lambda i: (0, 0)),
                pl.BlockSpec((1, H2), lambda i: (0, 0)),
                pl.BlockSpec((H2, H3), lambda i: (0, 0)),
                pl.BlockSpec((1, H3), lambda i: (0, 0)),
            ],
            out_specs=pl.BlockSpec((B, H3), lambda i: (0, 0)),
        ),
        compiler_params=pltpu.CompilerParams(
            dimension_semantics=("arbitrary",)),
    )(h1, w2_p, b2_r, w3, b3_r)

    return out


if __name__ == "__main__":
    key = jax.random.PRNGKey(0)
    k_x, k_w1, k_b1, k_w2, k_b2, k_w3, k_b3 = jax.random.split(key, 7)

    B = 2  # small batch
    x = jax.random.normal(k_x, (B, IN_DIM), dtype=jnp.float32)

    # Deterministic synthetic parameters (W stored as (in, out) = torch W.T).
    w1 = jax.random.normal(k_w1, (IN_DIM, H1), dtype=jnp.float32) * 0.01
    b1 = jax.random.normal(k_b1, (H1,), dtype=jnp.float32) * 0.01
    w2 = jax.random.normal(k_w2, (H1, H2), dtype=jnp.float32) * 0.01
    b2 = jax.random.normal(k_b2, (H2,), dtype=jnp.float32) * 0.01
    w3 = jax.random.normal(k_w3, (H2, H3), dtype=jnp.float32) * 0.01
    b3 = jax.random.normal(k_b3, (H3,), dtype=jnp.float32) * 0.01

    # One-time parameter preparation (padding) — outside the per-call path.
    params = jax.block_until_ready(prepare_encoder_params(w1, b1, w2, b2, w3, b3))

    out = complex_encoder(x, params)
    out = jax.block_until_ready(out)

    # Pure-JAX reference check of the fused pipeline.
    h1 = jnp.maximum(x @ w1 + b1, 0.0)
    h2 = jnp.maximum(h1 @ w2 + b2, 0.0)
    ref = jnp.maximum(h2 @ w3 + b3, 0.0)
    ref = jax.block_until_ready(ref)

    np.testing.assert_allclose(np.asarray(out), np.asarray(ref),
                               rtol=2e-4, atol=2e-4)
    assert out.shape == (B, H3) and out.dtype == jnp.float32
    print("KERNEL_OK")
</pallas_src>

<mosaic_0001>
module attributes {stable_mosaic.version = 11 : i64} {
  func.func @encode1_kernel(%arg0: i32, %arg1: i32, %arg2: memref<2x8192xf32, #tpu.memory_space<vmem>>, %arg3: memref<8192x128xf32, #tpu.memory_space<vmem>>, %arg4: memref<1x128xf32, #tpu.memory_space<vmem>>, %arg5: memref<2x128xf32, #tpu.memory_space<vmem>>, %arg6: memref<2x128xf32, #tpu.memory_space<vmem>>) attributes {dimension_semantics = [#tpu.dimension_semantics<parallel>, #tpu.dimension_semantics<arbitrary>], iteration_bounds = array<i64: 2, 27>, scalar_prefetch = 0 : i64, scratch_operands = 1 : i64, tpu.core_type = #tpu.core_type<tc>, window_params = [{transform_indices = @transform_0, window_bounds = array<i64: 2, 8192>}, {transform_indices = @transform_1, window_bounds = array<i64: 8192, 128>}, {transform_indices = @transform_2, window_bounds = array<i64: 1, 128>}, {transform_indices = @transform_3, window_bounds = array<i64: 2, 128>}]} {
    %c0_i32 = arith.constant 0 : i32
    %0 = arith.cmpi eq, %arg1, %c0_i32 : i32
    %1 = arith.extui %0 : i1 to i32
    %c0_i32_0 = arith.constant 0 : i32
    %2 = arith.cmpi ne, %1, %c0_i32_0 : i32
    scf.if %2 {
      %cst_9 = arith.constant 0.000000e+00 : f32
      %12 = vector.broadcast %cst_9 : f32 to vector<2x128xf32>
      %c0_10 = arith.constant 0 : index
      %c0_11 = arith.constant 0 : index
      %13 = vector.load %arg6[%c0_10, %c0_11] : memref<2x128xf32, #tpu.memory_space<vmem>>, vector<2x128xf32>
      tpu.vector_store %arg6[%c0_10, %c0_11], %12 {strides = array<i32>} : memref<2x128xf32, #tpu.memory_space<vmem>>, vector<2x128xf32>,
    } else {
    }
    %c0 = arith.constant 0 : index
    %c0_1 = arith.constant 0 : index
    %3 = vector.load %arg6[%c0, %c0_1] : memref<2x128xf32, #tpu.memory_space<vmem>>, vector<2x128xf32>
    %c0_2 = arith.constant 0 : index
    %c0_3 = arith.constant 0 : index
    %4 = vector.load %arg2[%c0_2, %c0_3] : memref<2x8192xf32, #tpu.memory_space<vmem>>, vector<2x8192xf32>
    %c0_4 = arith.constant 0 : index
    %c0_5 = arith.constant 0 : index
    %5 = vector.load %arg3[%c0_4, %c0_5] : memref<8192x128xf32, #tpu.memory_space<vmem>>, vector<8192x128xf32>
    %cst = arith.constant dense<0.000000e+00> : vector<2x128xf32>
    %6 = tpu.matmul %4, %5, %cst {dimension_numbers = #tpu.dot_dimension_numbers<[1], [0], [0], [1], [0, 0, 1, 1], [], []>} : vector<2x8192xf32>, vector<8192x128xf32>, vector<2x128xf32> -> vector<2x128xf32>
    %7 = arith.addf %3, %6 : vector<2x128xf32>
    %c0_6 = arith.constant 0 : index
    %c0_7 = arith.constant 0 : index
    %8 = vector.load %arg6[%c0_6, %c0_7] : memref<2x128xf32, #tpu.memory_space<vmem>>, vector<2x128xf32>
    tpu.vector_store %arg6[%c0_6, %c0_7], %7 {strides = array<i32>} : memref<2x128xf32, #tpu.memory_space<vmem>>, vector<2x128xf32>,
    %c26_i32 = arith.constant 26 : i32
    %9 = arith.cmpi eq, %arg1, %c26_i32 : i32
    %10 = arith.extui %9 : i1 to i32
    %c0_i32_8 = arith.constant 0 : i32
    %11 = arith.cmpi ne, %10, %c0_i32_8 : i32
    scf.if %11 {
      %c0_9 = arith.constant 0 : index
      %c0_10 = arith.constant 0 : index
      %12 = vector.load %arg6[%c0_9, %c0_10] : memref<2x128xf32, #tpu.memory_space<vmem>>, vector<2x128xf32>
      %c0_11 = arith.constant 0 : index
      %c0_12 = arith.constant 0 : index
      %13 = vector.load %arg4[%c0_11, %c0_12] : memref<1x128xf32, #tpu.memory_space<vmem>>, vector<1x128xf32>
      %14 = vector.broadcast %13 : vector<1x128xf32> to vector<2x128xf32>
      %15 = arith.addf %12, %14 : vector<2x128xf32>
      %cst_13 = arith.constant 0.000000e+00 : f32
      %16 = vector.broadcast %cst_13 : f32 to vector<2x128xf32>
      %17 = arith.maximumf %15, %16 : vector<2x128xf32>
      %c0_14 = arith.constant 0 : index
      %c0_15 = arith.constant 0 : index
      %18 = vector.load %arg5[%c0_14, %c0_15] : memref<2x128xf32, #tpu.memory_space<vmem>>, vector<2x128xf32>
      tpu.vector_store %arg5[%c0_14, %c0_15], %17 {strides = array<i32>} : memref<2x128xf32, #tpu.memory_space<vmem>>, vector<2x128xf32>,
    } else {
    }
    return
  }
  func.func @transform_0(%arg0: i32, %arg1: i32) -> (i32, i32) {
    %c0_i32 = arith.constant 0 : i32
    %c0_i32_0 = arith.constant 0 : i32
    return %c0_i32, %arg1 : i32, i32
  }
  func.func @transform_1(%arg0: i32, %arg1: i32) -> (i32, i32) {
    %c0_i32 = arith.constant 0 : i32
    return %arg1, %arg0 : i32, i32
  }
  func.func @transform_2(%arg0: i32, %arg1: i32) -> (i32, i32) {
    %c0_i32 = arith.constant 0 : i32
    %c0_i32_0 = arith.constant 0 : i32
    return %c0_i32, %arg0 : i32, i32
  }
  func.func @transform_3(%arg0: i32, %arg1: i32) -> (i32, i32) {
    %c0_i32 = arith.constant 0 : i32
    %c0_i32_0 = arith.constant 0 : i32
    return %c0_i32, %arg0 : i32, i32
  }
}

module attributes {stable_mosaic.version = 11 : i64} {
  func.func @encode23_kernel(%arg0: i32, %arg1: memref<2x256xf32, #tpu.memory_space<vmem>>, %arg2: memref<256x100xf32, #tpu.memory_space<vmem>>, %arg3: memref<1x100xf32, #tpu.memory_space<vmem>>, %arg4: memref<100x50xf32, #tpu.memory_space<vmem>>, %arg5: memref<1x50xf32, #tpu.memory_space<vmem>>, %arg6: memref<2x50xf32, #tpu.memory_space<vmem>>) attributes {dimension_semantics = [#tpu.dimension_semantics<arbitrary>], iteration_bounds = array<i64: 1>, scalar_prefetch = 0 : i64, scratch_operands = 0 : i64, tpu.core_type = #tpu.core_type<tc>, window_params = [{pipeline_mode = #tpu.pipeline_mode<synchronous>, transform_indices = @transform_0, window_bounds = array<i64: 2, 256>}, {pipeline_mode = #tpu.pipeline_mode<synchronous>, transform_indices = @transform_1, window_bounds = array<i64: 256, 100>}, {pipeline_mode = #tpu.pipeline_mode<synchronous>, transform_indices = @transform_2, window_bounds = array<i64: 1, 100>}, {pipeline_mode = #tpu.pipeline_mode<synchronous>, transform_indices = @transform_3, window_bounds = array<i64: 100, 50>}, {pipeline_mode = #tpu.pipeline_mode<synchronous>, transform_indices = @transform_4, window_bounds = array<i64: 1, 50>}, {pipeline_mode = #tpu.pipeline_mode<synchronous>, transform_indices = @transform_5, window_bounds = array<i64: 2, 50>}]} {
    %c0 = arith.constant 0 : index
    %c0_0 = arith.constant 0 : index
    %0 = vector.load %arg1[%c0, %c0_0] : memref<2x256xf32, #tpu.memory_space<vmem>>, vector<2x256xf32>
    %c0_1 = arith.constant 0 : index
    %c0_2 = arith.constant 0 : index
    %1 = vector.load %arg2[%c0_1, %c0_2] : memref<256x100xf32, #tpu.memory_space<vmem>>, vector<256x100xf32>
    %cst = arith.constant dense<0.000000e+00> : vector<2x100xf32>
    %2 = tpu.matmul %0, %1, %cst {dimension_numbers = #tpu.dot_dimension_numbers<[1], [0], [0], [1], [0, 0, 1, 1], [], []>} : vector<2x256xf32>, vector<256x100xf32>, vector<2x100xf32> -> vector<2x100xf32>
    %c0_3 = arith.constant 0 : index
    %c0_4 = arith.constant 0 : index
    %3 = vector.load %arg3[%c0_3, %c0_4] : memref<1x100xf32, #tpu.memory_space<vmem>>, vector<1x100xf32>
    %4 = vector.broadcast %3 : vector<1x100xf32> to vector<2x100xf32>
    %5 = arith.addf %2, %4 : vector<2x100xf32>
    %cst_5 = arith.constant 0.000000e+00 : f32
    %6 = vector.broadcast %cst_5 : f32 to vector<2x100xf32>
    %7 = arith.maximumf %5, %6 : vector<2x100xf32>
    %c0_6 = arith.constant 0 : index
    %c0_7 = arith.constant 0 : index
    %8 = vector.load %arg4[%c0_6, %c0_7] : memref<100x50xf32, #tpu.memory_space<vmem>>, vector<100x50xf32>
    %cst_8 = arith.constant dense<0.000000e+00> : vector<2x50xf32>
    %9 = tpu.matmul %7, %8, %cst_8 {dimension_numbers = #tpu.dot_dimension_numbers<[1], [0], [0], [1], [0, 0, 1, 1], [], []>} : vector<2x100xf32>, vector<100x50xf32>, vector<2x50xf32> -> vector<2x50xf32>
    %c0_9 = arith.constant 0 : index
    %c0_10 = arith.constant 0 : index
    %10 = vector.load %arg5[%c0_9, %c0_10] : memref<1x50xf32, #tpu.memory_space<vmem>>, vector<1x50xf32>
    %11 = vector.broadcast %10 : vector<1x50xf32> to vector<2x50xf32>
    %12 = arith.addf %9, %11 : vector<2x50xf32>
    %cst_11 = arith.constant 0.000000e+00 : f32
    %13 = vector.broadcast %cst_11 : f32 to vector<2x50xf32>
    %14 = arith.maximumf %12, %13 : vector<2x50xf32>
    %c0_12 = arith.constant 0 : index
    %c0_13 = arith.constant 0 : index
    %15 = vector.load %arg6[%c0_12, %c0_13] : memref<2x50xf32, #tpu.memory_space<vmem>>, vector<2x50xf32>
    tpu.vector_store %arg6[%c0_12, %c0_13], %14 {strides = array<i32>} : memref<2x50xf32, #tpu.memory_space<vmem>>, vector<2x50xf32>,
    return
  }
  func.func @transform_0(%arg0: i32) -> (i32, i32) {
    %c0_i32 = arith.constant 0 : i32
    %c0_i32_0 = arith.constant 0 : i32
    %c0_i32_1 = arith.constant 0 : i32
    return %c0_i32, %c0_i32_0 : i32, i32
  }
  func.func @transform_1(%arg0: i32) -> (i32, i32) {
    %c0_i32 = arith.constant 0 : i32
    %c0_i32_0 = arith.constant 0 : i32
    %c0_i32_1 = arith.constant 0 : i32
    return %c0_i32, %c0_i32_0 : i32, i32
  }
  func.func @transform_2(%arg0: i32) -> (i32, i32) {
    %c0_i32 = arith.constant 0 : i32
    %c0_i32_0 = arith.constant 0 : i32
    %c0_i32_1 = arith.constant 0 : i32
    return %c0_i32, %c0_i32_0 : i32, i32
  }
  func.func @transform_3(%arg0: i32) -> (i32, i32) {
    %c0_i32 = arith.constant 0 : i32
    %c0_i32_0 = arith.constant 0 : i32
    %c0_i32_1 = arith.constant 0 : i32
    return %c0_i32, %c0_i32_0 : i32, i32
  }
  func.func @transform_4(%arg0: i32) -> (i32, i32) {
    %c0_i32 = arith.constant 0 : i32
    %c0_i32_0 = arith.constant 0 : i32
    %c0_i32_1 = arith.constant 0 : i32
    return %c0_i32, %c0_i32_0 : i32, i32
  }
  func.func @transform_5(%arg0: i32) -> (i32, i32) {
    %c0_i32 = arith.constant 0 : i32
    %c0_i32_0 = arith.constant 0 : i32
    %c0_i32_1 = arith.constant 0 : i32
    return %c0_i32, %c0_i32_0 : i32, i32
  }
}

</mosaic_0001>

<llo_original>
// kernel: complex_encoder.3
$region0: #{complex_encoder.3}
  #allocation0 [shape = 'u32[]', space=smem, size = 0x4, offset = 0x4, fixed_abs, tag = 'smem constant byte address 0x4 - core index']
  #allocation1 [shape = 'u32[144,128]{1,0:T(1,128)}', space=vmem, size = 0x12000, scoped, tag = 'internal scratch']
  %s0 = inlined_call_operand.vmem [shape: f32[2,256], index: 0, kind: input, shape index: {}]
  %s1 = inlined_call_operand.vmem [shape: f32[256,100], index: 1, kind: input, shape index: {}]
  %s2 = inlined_call_operand.vmem [shape: f32[1,100], index: 2, kind: input, shape index: {}]
  %s3 = inlined_call_operand.vmem [shape: f32[100,50], index: 3, kind: input, shape index: {}]
  %s4 = inlined_call_operand.vmem [shape: f32[1,50], index: 4, kind: input, shape index: {}]
  %s5 = inlined_call_operand.hbm [shape: f32[2,50], index: 5, kind: output, shape index: {}]
  %s6 = sld [smem:[#allocation0]]
  $region30: #{complex_encoder.3} parent=0
    _
  %s8 = ssub.s32 1, %s6
  %s9 = scalar_select 0, %s8, %s6
  $region1: #{complex_encoder.3} parent=0
    #allocation2 [shape = 'u8[1024]{0}', space=vmem, size = 0x400, scoped, tag = 'output window, operand 0, single buffered']
    #allocation3 [shape = 's32[1]{0}', space=sflag, size = 0x4, scoped, tag = 'scoped memory for complex_encoder.3']
    %10 = vsyncpa [#allocation3], 0
    // Predicated region
    $region2: #{complex_encoder.3} parent=1 // pred_check
      _
    $region3: #{complex_encoder.3} parent=1 // pred_check_branch
      %12 = sbr.rel (0) target = $region5
    $region4: #{complex_encoder.3} parent=1 // pred_region
      _
    $region5: #{complex_encoder.3} parent=1 // pred_fallthru
      _
    // Predicated region
    $region6: #{complex_encoder.3} parent=1 // pred_check
      _
    $region7: #{complex_encoder.3} parent=1 // pred_check_branch
      %14 = sbr.rel (0) target = $region9
    $region8: #{complex_encoder.3} parent=1 // pred_region
      _
    $region9: #{complex_encoder.3} parent=1 // pred_fallthru
      _
    // Predicated region
    $region10: #{complex_encoder.3} parent=1 // pred_check
      _
    $region11: #{complex_encoder.3} parent=1 // pred_check_branch
      %16 = sbr.rel (0) target = $region13
    $region12: #{complex_encoder.3} parent=1 // pred_region
      _
    $region13: #{complex_encoder.3} parent=1 // pred_fallthru
      _
    // Predicated region
    $region14: #{complex_encoder.3} parent=1 // pred_check
      _
    $region15: #{complex_encoder.3} parent=1 // pred_check_branch
      %18 = sbr.rel (0) target = $region17
    $region16: #{complex_encoder.3} parent=1 // pred_region
      _
    $region17: #{complex_encoder.3} parent=1 // pred_fallthru
      _
    // Predicated region
    $region18: #{complex_encoder.3} parent=1 // pred_check
      _
    $region19: #{complex_encoder.3} parent=1 // pred_check_branch
      %20 = sbr.rel (0) target = $region21
    $region20: #{complex_encoder.3} parent=1 // pred_region
      _
    $region21: #{complex_encoder.3} parent=1 // pred_fallthru
      _
    %v21 = vld [vmem:[%s0] sm:$0xf]
    %v22 = vld [vmem:[%s1] sm:$0xff]
    %v23 = vld [vmem:[%s1 + $0x8] sm:$0xff]
    %v24 = vld [vmem:[%s1 + $0x10] sm:$0xff]
    %v25 = vld [vmem:[%s1 + $0x18] sm:$0xff]
    %v26 = vld [vmem:[%s1 + $0x20] sm:$0xff]
    %v27 = vld [vmem:[%s1 + $0x28] sm:$0xff]
    %v28 = vld [vmem:[%s1 + $0x30] sm:$0xff]
    %v29 = vld [vmem:[%s1 + $0x38] sm:$0xff]
    %v30 = vld [vmem:[%s1 + $0x40] sm:$0xff]
    %v31 = vld [vmem:[%s1 + $0x48] sm:$0xff]
    %v32 = vld [vmem:[%s1 + $0x50] sm:$0xff]
    %v33 = vld [vmem:[%s1 + $0x58] sm:$0xff]
    %v34 = vld [vmem:[%s1 + $0x60] sm:$0xff]
    %v35 = vld [vmem:[%s1 + $0x68] sm:$0xff]
    %v36 = vld [vmem:[%s1 + $0x70] sm:$0xff]
    %v37 = vld [vmem:[%s1 + $0x78] sm:$0xff]
    %v38 = vld [vmem:[%s1 + $0x80] sm:$0xff]
    %v39 = vld [vmem:[%s1 + $0x88] sm:$0xff]
    %v40 = vld [vmem:[%s1 + $0x90] sm:$0xff]
    %v41 = vld [vmem:[%s1 + $0x98] sm:$0xff]
    %v42 = vld [vmem:[%s1 + $0xa0] sm:$0xff]
    %v43 = vld [vmem:[%s1 + $0xa8] sm:$0xff]
    %v44 = vld [vmem:[%s1 + $0xb0] sm:$0xff]
    %v45 = vld [vmem:[%s1 + $0xb8] sm:$0xff]
    %v46 = vld [vmem:[%s1 + $0xc0] sm:$0xff]
    %v47 = vld [vmem:[%s1 + $0xc8] sm:$0xff]
    %v48 = vld [vmem:[%s1 + $0xd0] sm:$0xff]
    %v49 = vld [vmem:[%s1 + $0xd8] sm:$0xff]
    %v50 = vld [vmem:[%s1 + $0xe0] sm:$0xff]
    %v51 = vld [vmem:[%s1 + $0xe8] sm:$0xff]
    %v52 = vld [vmem:[%s1 + $0xf0] sm:$0xff]
    %v53 = vld [vmem:[%s1 + $0xf8] sm:$0xff]
    %v54 = vld [vmem:[%s2] sm:$0x1]
    %v56 = vlaneseq
    %v57 = vshrl.u32 %v56, 7
    %v58 = vsub.s32 0, %v57
    %v59 = vrot.slane %v54, %v58
    %v63 = vunpack.c.l.s4 1983009808
    %v64 = vunpack.c.0.s8 %v63
    %v65 = vlaneseq
    %v66 = vshrl.u32 %v65, 7
    %v67 = vsub.s32 %v64, %v66
    %v68 = vrot.slane %v21, %v67
    %v69 = vcombine.high %v68, %v68
    %72 = vmatprep.subr.mxu0 0.0
    %73 = vmatpush1.msra.mxu0 %v37
    %74 = vmatprep.subr.mxu0 0.0
    %75 = vmatpush1.msra.mxu0 %v36
    %76 = vmatprep.subr.mxu0 0.0
    %77 = vmatpush1.msra.mxu0 %v35
    %78 = vmatprep.subr.mxu0 0.0
    %79 = vmatpush1.msra.mxu0 %v34
    %80 = vmatprep.subr.mxu0 0.0
    %81 = vmatpush1.msra.mxu0 %v33
    %82 = vmatprep.subr.mxu0 0.0
    %83 = vmatpush1.msra.mxu0 %v32
    %84 = vmatprep.subr.mxu0 0.0
    %85 = vmatpush1.msra.mxu0 %v31
    %86 = vmatprep.subr.mxu0 0.0
    %87 = vmatpush1.msra.mxu0 %v30
    %88 = vmatprep.subr.mxu0 0.0
    %89 = vmatpush1.msra.mxu0 %v29
    %90 = vmatprep.subr.mxu0 0.0
    %91 = vmatpush1.msra.mxu0 %v28
    %92 = vmatprep.subr.mxu0 0.0
    %93 = vmatpush1.msra.mxu0 %v27
    %94 = vmatprep.subr.mxu0 0.0
    %95 = vmatpush1.msra.mxu0 %v26
    %96 = vmatprep.subr.mxu0 0.0
    %97 = vmatpush1.msra.mxu0 %v25
    %98 = vmatprep.subr.mxu0 0.0
    %99 = vmatpush1.msra.mxu0 %v24
    %100 = vmatprep.subr.mxu0 0.0
    %101 = vmatpush1.msra.mxu0 %v23
    %102 = vmatprep.subr.mxu0 0.0
    %103 = vmatpush1.msra.mxu0 %v22
    %104 = vmatprep.subr.mxu0 0.0
    %105 = vmatpush2.msra.mxu0 %v53
    %106 = vmatprep.subr.mxu0 0.0
    %107 = vmatpush2.msra.mxu0 %v52
    %108 = vmatprep.subr.mxu0 0.0
    %109 = vmatpush2.msra.mxu0 %v51
    %110 = vmatprep.subr.mxu0 0.0
    %111 = vmatpush2.msra.mxu0 %v50
    %112 = vmatprep.subr.mxu0 0.0
    %113 = vmatpush2.msra.mxu0 %v49
    %114 = vmatprep.subr.mxu0 0.0
    %115 = vmatpush2.msra.mxu0 %v48
    %116 = vmatprep.subr.mxu0 0.0
    %117 = vmatpush2.msra.mxu0 %v47
    %118 = vmatprep.subr.mxu0 0.0
    %119 = vmatpush2.msra.mxu0 %v46
    %120 = vmatprep.subr.mxu0 0.0
    %121 = vmatpush2.msra.mxu0 %v45
    %122 = vmatprep.subr.mxu0 0.0
    %123 = vmatpush2.msra.mxu0 %v44
    %124 = vmatprep.subr.mxu0 0.0
    %125 = vmatpush2.msra.mxu0 %v43
    %126 = vmatprep.subr.mxu0 0.0
    %127 = vmatpush2.msra.mxu0 %v42
    %128 = vmatprep.subr.mxu0 0.0
    %129 = vmatpush2.msra.mxu0 %v41
    %130 = vmatprep.subr.mxu0 0.0
    %131 = vmatpush2.msra.mxu0 %v40
    %132 = vmatprep.subr.mxu0 0.0
    %133 = vmatpush2.msra.mxu0 %v39
    %134 = vmatprep.subr.mxu0 0.0
    %135 = vmatpush2.msra.mxu0 %v38
    %136 = vmatprep.mubr.f32.mxu0 %v69
    %137 = vmatmul.mubr.f32.gmra.mxu0 %v68
    %v138 = vpop.f32.mrf.mxu0
    %v139 = vadd.f32 %v59, %v138
    %v140 = vpop.f32.mrf.mxu0
    %141 = vdwg.mxu0
    %v142 = vmax.f32 %v139, 0.0
    %v143 = vld [vmem:[%s3] sm:$0xff]
    %v144 = vld [vmem:[%s3 + $0x8] sm:$0xff]
    %v145 = vld [vmem:[%s3 + $0x10] sm:$0xff]
    %v146 = vld [vmem:[%s3 + $0x18] sm:$0xff]
    %v147 = vld [vmem:[%s3 + $0x20] sm:$0xff]
    %v148 = vld [vmem:[%s3 + $0x28] sm:$0xff]
    %v149 = vld [vmem:[%s3 + $0x30] sm:$0xff]
    %v150 = vld [vmem:[%s3 + $0x38] sm:$0xff]
    %v151 = vld [vmem:[%s3 + $0x40] sm:$0xff]
    %v152 = vld [vmem:[%s3 + $0x48] sm:$0xff]
    %v153 = vld [vmem:[%s3 + $0x50] sm:$0xff]
    %v154 = vld [vmem:[%s3 + $0x58] sm:$0xff]
    %v155 = vld [vmem:[%s3 + $0x60] sm:$0xf]
    %v156 = vld [vmem:[%s4] sm:$0x1]
    %v158 = vlaneseq
    %v159 = vshrl.u32 %v158, 7
    %v160 = vsub.s32 0, %v159
    %v161 = vrot.slane %v156, %v160
    %vm163 = vcmask 818176
    %v165 = vsel %vm163, %v142, 0
    %vm167 = vcmask 1043456
    %v169 = vsel %vm167, %v155, 0
    %171 = vmatprep.subr.mxu0 0.0
    %172 = vmatpush1.msra.mxu0 0.0
    %173 = vmatprep.subr.mxu0 0.0
    %174 = vmatpush1.msra.mxu0 0.0
    %175 = vmatprep.subr.mxu0 0.0
    %176 = vmatpush1.msra.mxu0 0.0
    %177 = vmatprep.subr.mxu0 0.0
    %178 = vmatpush1.msra.mxu0 %v169
    %179 = vmatprep.subr.mxu0 0.0
    %180 = vmatpush1.msra.mxu0 %v154
    %181 = vmatprep.subr.mxu0 0.0
    %182 = vmatpush1.msra.mxu0 %v153
    %183 = vmatprep.subr.mxu0 0.0
    %184 = vmatpush1.msra.mxu0 %v152
    %185 = vmatprep.subr.mxu0 0.0
    %186 = vmatpush1.msra.mxu0 %v151
    %187 = vmatprep.subr.mxu0 0.0
    %188 = vmatpush1.msra.mxu0 %v150
    %189 = vmatprep.subr.mxu0 0.0
    %190 = vmatpush1.msra.mxu0 %v149
    %191 = vmatprep.subr.mxu0 0.0
    %192 = vmatpush1.msra.mxu0 %v148
    %193 = vmatprep.subr.mxu0 0.0
    %194 = vmatpush1.msra.mxu0 %v147
    %195 = vmatprep.subr.mxu0 0.0
    %196 = vmatpush1.msra.mxu0 %v146
    %197 = vmatprep.subr.mxu0 0.0
    %198 = vmatpush1.msra.mxu0 %v145
    %199 = vmatprep.subr.mxu0 0.0
    %200 = vmatpush1.msra.mxu0 %v144
    %201 = vmatprep.subr.mxu0 0.0
    %202 = vmatpush1.msra.mxu0 %v143
    %203 = vmatprep.subr.mxu0 0.0
    %204 = vmatpush2.msra.mxu0 0.0
    %205 = vmatprep.subr.mxu0 0.0
    %206 = vmatpush2.msra.mxu0 0.0
    %207 = vmatprep.subr.mxu0 0.0
    %208 = vmatpush2.msra.mxu0 0.0
    %209 = vmatprep.subr.mxu0 0.0
    %210 = vmatpush2.msra.mxu0 0.0
    %211 = vmatprep.subr.mxu0 0.0
    %212 = vmatpush2.msra.mxu0 0.0
    %213 = vmatprep.subr.mxu0 0.0
    %214 = vmatpush2.msra.mxu0 0.0
    %215 = vmatprep.subr.mxu0 0.0
    %216 = vmatpush2.msra.mxu0 0.0
    %217 = vmatprep.subr.mxu0 0.0
    %218 = vmatpush2.msra.mxu0 0.0
    %219 = vmatprep.subr.mxu0 0.0
    %220 = vmatpush2.msra.mxu0 0.0
    %221 = vmatprep.subr.mxu0 0.0
    %222 = vmatpush2.msra.mxu0 0.0
    %223 = vmatprep.subr.mxu0 0.0
    %224 = vmatpush2.msra.mxu0 0.0
    %225 = vmatprep.subr.mxu0 0.0
    %226 = vmatpush2.msra.mxu0 0.0
    %227 = vmatprep.subr.mxu0 0.0
    %228 = vmatpush2.msra.mxu0 0.0
    %229 = vmatprep.subr.mxu0 0.0
    %230 = vmatpush2.msra.mxu0 0.0
    %231 = vmatprep.subr.mxu0 0.0
    %232 = vmatpush2.msra.mxu0 0.0
    %233 = vmatprep.subr.mxu0 0.0
    %234 = vmatpush2.msra.mxu0 0.0
    %235 = vmatprep.mubr.f32.mxu0 0.0
    %236 = vmatmul.mubr.f32.gmra.mxu0 %v165
    %v237 = vpop.f32.mrf.mxu0
    %v238 = vadd.f32 %v161, %v237
    %v239 = vpop.f32.mrf.mxu0
    %240 = vdwg.mxu0
    %v241 = vmax.f32 %v238, 0.0
    %vm242 = vcmask 402432
    %243 = vst.msk [vmem:[#allocation2] sm:$0x3] %vm242, %v241
    // Predicated region
    $region22: #{complex_encoder.3} parent=1 // pred_check
      _
    $region23: #{complex_encoder.3} parent=1 // pred_check_branch
      %245 = sbr.rel (0) target = $region25
    $region24: #{complex_encoder.3} parent=1 // pred_region
      %s247 = ssub.s32 32, 32
      %248 = vsyncadd [#allocation3], %s247
      %s250 = sshll.u32 [#allocation2], 4
      %s251 = int_to_ptr.vmem [resolvable:$true] %s250
      %253 = dma.vmem_to_hbm [thread:$0]  %s251, 32, %s5, [#allocation3]
    $region25: #{complex_encoder.3} parent=1 // pred_fallthru
      _
    // Predicated region
    $region26: #{complex_encoder.3} parent=1 // pred_check
      _
    $region27: #{complex_encoder.3} parent=1 // pred_check_branch
      %255 = sbr.rel (0) target = $region29
    $region28: #{complex_encoder.3} parent=1 // pred_region
      %256 = dma.done [#allocation3], 32
    $region29: #{complex_encoder.3} parent=1 // pred_fallthru
      _
    %257 = vsyncpa [#allocation3], 1

// kernel: complex_encoder.2
$region0: #{complex_encoder.2}
  #allocation0 [shape = 'u32[]', space=smem, size = 0x4, offset = 0x4, fixed_abs, tag = 'smem constant byte address 0x4 - core index']
  #allocation1 [shape = 'u32[144,128]{1,0:T(1,128)}', space=vmem, size = 0x12000, scoped, tag = 'internal scratch']
  #allocation2 [shape = 'f32[2,128]{1,0:T(2,128)}', space=vmem, size = 0x400, scoped, tag = 'scratch operand']
  %s0 = inlined_call_operand.vmem [shape: f32[2,221184], index: 0, kind: input, shape index: {}]
  %s1 = inlined_call_operand.hbm [shape: f32[221184,256], index: 1, kind: input, shape index: {}]
  %s2 = inlined_call_operand.vmem [shape: f32[1,256], index: 2, kind: input, shape index: {}]
  %s3 = inlined_call_operand.vmem [shape: f32[2,256], index: 3, kind: output, shape index: {}]
  %s4 = sld [smem:[#allocation0]]
  $region57: #{complex_encoder.2} parent=0
    _
  %s6 = ssub.s32 1, %s4
  %s7 = scalar_select 0, %s6, %s4
  $region1: #{complex_encoder.2} parent=0
    #allocation3 [shape = 'u8[8388608]{0}', space=vmem, size = 0x800000, scoped, tag = 'input window, operand 1']
    #allocation4 [shape = 's32[2]{0}', space=sflag, size = 0x8, scoped, tag = 'scoped memory for complex_encoder.2']
    %8 = vsyncpa [#allocation4], 0
    %s9 = scalar_lea.sflag [#allocation4], 1
    %10 = vsyncpa %s9, 0
    loop: start=0, step=1, limit=56
    $region2: #{complex_encoder.2} parent=1 // loop_pre_header
      _
    $region3: #{complex_encoder.2} parent=1 // loop_header
      %s12 = sphi 0, %s16
      %p13 = scmp.ge.s32.totalorder %s12, 56
      %s19 = sphi 0, %s31
      %s20 = sphi 0, %s27
      %s21 = sphi 0, %s19
      %s22 = sphi 0, %s20
      %s23 = sphi 0, %s21
      %s24 = sphi 0, %s22
      %s34 = sphi 0, %s36
      %s37 = sphi 0, %s34
      %s38 = sphi 0, %s37
      %s54 = sphi 0, %s38
      %s62 = sphi 0, %s64
      %s65 = sphi 0, %s62
      %s66 = sphi 0, %s65
      %s82 = sphi 0, %s66
      %s88 = sphi 0, %s90
      %s91 = sphi 0, %s88
      %s92 = sphi 0, %s91
      %s108 = sphi 0, %s92
      %s114 = sphi 0, %s116
      %s117 = sphi 0, %s114
      %s118 = sphi 0, %s117
      %s134 = sphi 0, %s118
    $region4: #{complex_encoder.2} parent=1 // loop_header_branch
      %15 = sbr.rel (%p13) target = $region8
    $region5: #{complex_encoder.2} parent=1 // loop_body
      %s17 = ssub.s32 %s12, 1
      %s18 = ssub.s32 %s12, 2
      %s25 = sadd.s32 1, %s20
      %p26 = scmp.ge.s32.totalorder %s25, 27
      %s27 = scalar_select %p26, 0, %s25
      %s28 = sadd.s32 1, %s19
      %s29 = scalar_select %p26, %s28, %s19
      %p30 = scmp.ge.s32.totalorder %s29, 2
      %s31 = scalar_select %p30, 0, %s29
      %s32 = ssub.s32 %s20, %s27
      %p33 = scmp.eq.s32.totalorder %s32, 0
      %s35 = sadd.s32 %s34, 1
      %s36 = scalar_select %p33, %s34, %s35
      %p39 = pneg %p33
      %p40 = scmp.eq.s32.totalorder %s12, 53
      %p41 = por %p39, %p40
      %p42 = scmp.ne.s32.totalorder %s34, %s37
      %p43 = scmp.eq.s32.totalorder %s12, 0
      %p44 = por %p42, %p43
      %p45 = scmp.ne.s32.totalorder %s34, %s37
      %p46 = scmp.eq.s32.totalorder %s17, 53
      %p47 = por %p45, %p46
      %p48 = scmp.ne.s32.totalorder %s37, %s38
      %p49 = scmp.eq.s32.totalorder %s17, 0
      %p50 = por %p48, %p49
      %p51 = scmp.ne.s32.totalorder %s37, %s38
      %p52 = scmp.eq.s32.totalorder %s18, 53
      %p53 = por %p51, %p52
      %p55 = scmp.ne.s32.totalorder %s38, %s54
      %p56 = scmp.eq.s32.totalorder %s18, 0
      %p57 = por %p55, %p56
      %s58 = ssub.s32 %s20, %s27
      %s59 = ssub.s32 %s19, %s31
      %s60 = sor.u32 %s58, %s59
      %p61 = scmp.eq.s32.totalorder %s60, 0
      %s63 = sadd.s32 %s62, 1
      %s64 = scalar_select %p61, %s62, %s63
      %p67 = pneg %p61
      %p68 = scmp.eq.s32.totalorder %s12, 53
      %p69 = por %p67, %p68
      %p70 = scmp.ne.s32.totalorder %s62, %s65
      %p71 = scmp.eq.s32.totalorder %s12, 0
      %p72 = por %p70, %p71
      %p73 = scmp.ne.s32.totalorder %s62, %s65
      %p74 = scmp.eq.s32.totalorder %s17, 53
      %p75 = por %p73, %p74
      %p76 = scmp.ne.s32.totalorder %s65, %s66
      %p77 = scmp.eq.s32.totalorder %s17, 0
      %p78 = por %p76, %p77
      %p79 = scmp.ne.s32.totalorder %s65, %s66
      %p80 = scmp.eq.s32.totalorder %s18, 53
      %p81 = por %p79, %p80
      %p83 = scmp.ne.s32.totalorder %s66, %s82
      %p84 = scmp.eq.s32.totalorder %s18, 0
      %p85 = por %p83, %p84
      %s86 = ssub.s32 %s19, %s31
      %p87 = scmp.eq.s32.totalorder %s86, 0
      %s89 = sadd.s32 %s88, 1
      %s90 = scalar_select %p87, %s88, %s89
      %p93 = pneg %p87
      %p94 = scmp.eq.s32.totalorder %s12, 53
      %p95 = por %p93, %p94
      %p96 = scmp.ne.s32.totalorder %s88, %s91
      %p97 = scmp.eq.s32.totalorder %s12, 0
      %p98 = por %p96, %p97
      %p99 = scmp.ne.s32.totalorder %s88, %s91
      %p100 = scmp.eq.s32.totalorder %s17, 53
      %p101 = por %p99, %p100
      %p102 = scmp.ne.s32.totalorder %s91, %s92
      %p103 = scmp.eq.s32.totalorder %s17, 0
      %p104 = por %p102, %p103
      %p105 = scmp.ne.s32.totalorder %s91, %s92
      %p106 = scmp.eq.s32.totalorder %s18, 53
      %p107 = por %p105, %p106
      %p109 = scmp.ne.s32.totalorder %s92, %s108
      %p110 = scmp.eq.s32.totalorder %s18, 0
      %p111 = por %p109, %p110
      %s112 = ssub.s32 %s19, %s31
      %p113 = scmp.eq.s32.totalorder %s112, 0
      %s115 = sadd.s32 %s114, 1
      %s116 = scalar_select %p113, %s114, %s115
      %p119 = pneg %p113
      %p120 = scmp.eq.s32.totalorder %s12, 53
      %p121 = por %p119, %p120
      %p122 = scmp.ne.s32.totalorder %s114, %s117
      %p123 = scmp.eq.s32.totalorder %s12, 0
      %p124 = por %p122, %p123
      %p125 = scmp.ne.s32.totalorder %s114, %s117
      %p126 = scmp.eq.s32.totalorder %s17, 53
      %p127 = por %p125, %p126
      %p128 = scmp.ne.s32.totalorder %s117, %s118
      %p129 = scmp.eq.s32.totalorder %s17, 0
      %p130 = por %p128, %p129
      %p131 = scmp.ne.s32.totalorder %s117, %s118
      %p132 = scmp.eq.s32.totalorder %s18, 53
      %p133 = por %p131, %p132
      %p135 = scmp.ne.s32.totalorder %s118, %s134
      %p136 = scmp.eq.s32.totalorder %s18, 0
      %p137 = por %p135, %p136
      %p138 = scmp.le.s32.totalorder 1, %s12
      %p139 = scmp.lt.s32.totalorder %s12, 55
      %p140 = pnand %p138, %p139
      %p141 = pneg %p140
      // Predicated region
      $region9: #{complex_encoder.2} parent=5 // pred_check
        _
      $region10: #{complex_encoder.2} parent=5 // pred_check_branch
        %143 = sbr.rel (%p140) target = $region12
      $region11: #{complex_encoder.2} parent=5 // pred_region
        %s144 = ssub.s32 %s12, 1
      $region12: #{complex_encoder.2} parent=5 // pred_fallthru
        _
      %p145 = scmp.lt.s32.totalorder %s12, 54
      // Predicated region
      $region13: #{complex_encoder.2} parent=5 // pred_check
        %p146 = pneg %p145
      $region14: #{complex_encoder.2} parent=5 // pred_check_branch
        %148 = sbr.rel (%p146) target = $region16
      $region15: #{complex_encoder.2} parent=5 // pred_region
        // Predicated region
        $region17: #{complex_encoder.2} parent=15 // pred_check
          %p149 = pneg %p44
        $region18: #{complex_encoder.2} parent=15 // pred_check_branch
          %151 = sbr.rel (%p149) target = $region20
        $region19: #{complex_encoder.2} parent=15 // pred_region
          %s152 = smul.u32 64, %s20
          %p153 = scmp.lt.s32.totalorder %s152, 1727
          %s154 = scalar_select %p153, %s152, 1727
          %s155 = smul.addr %s154, 2
          %s156 = scalar_lea.vmem %s0, %s155
          %s157 = smul.u32 64, %s20
        $region20: #{complex_encoder.2} parent=15 // pred_fallthru
          _
        // Predicated region
        $region21: #{complex_encoder.2} parent=15 // pred_check
          %p158 = pneg %p72
        $region22: #{complex_encoder.2} parent=15 // pred_check_branch
          %160 = sbr.rel (%p158) target = $region24
        $region23: #{complex_encoder.2} parent=15 // pred_region
          %s161 = sand.u32 %s62, 1
          %s162 = scalar_lea.sflag [#allocation4], %s161
          %s163 = sand.u32 %s62, 1
          %s164 = smul.addr %s163, 8192
          %s165 = scalar_lea.vmem [#allocation3], %s164
          %s166 = smul.u32 1024, %s20
          %s168 = ssub.s32 131072, 131072
          %169 = vsyncadd %s162, %s168
          %s170 = smul.addr %s166, 2
          %s171 = sadd.s32 %s19, %s170
          %s172 = smul.addr %s171, 128
          %s173 = scalar_lea.hbm %s1, %s172
          %s174 = sshll.u32 %s165, 4
          %s175 = int_to_ptr.vmem [resolvable:$true] %s174
          %180 = dma.hbm_to_vmem [thread:$0]  %s173, 131072, %s175, %s162, 256, 128, 8
        $region24: #{complex_encoder.2} parent=15 // pred_fallthru
          _
        // Predicated region
        $region25: #{complex_encoder.2} parent=15 // pred_check
          %p181 = pneg %p98
        $region26: #{complex_encoder.2} parent=15 // pred_check_branch
          %183 = sbr.rel (%p181) target = $region28
        $region27: #{complex_encoder.2} parent=15 // pred_region
          %p184 = scmp.lt.s32.totalorder %s19, 1
          %s185 = scalar_select %p184, %s19, 1
          %s186 = scalar_lea.vmem %s2, %s185
        $region28: #{complex_encoder.2} parent=15 // pred_fallthru
          _
      $region16: #{complex_encoder.2} parent=5 // pred_fallthru
        _
      %p187 = scmp.le.s32.totalorder 1, %s12
      %p188 = scmp.lt.s32.totalorder %s12, 55
      %p189 = pnand %p187, %p188
      %p190 = pneg %p189
      // Predicated region
      $region29: #{complex_encoder.2} parent=5 // pred_check
        _
      $region30: #{complex_encoder.2} parent=5 // pred_check_branch
        %192 = sbr.rel (%p189) target = $region32
      $region31: #{complex_encoder.2} parent=5 // pred_region
        %s193 = ssub.s32 %s12, 1
        %s194 = sand.u32 %s65, 1
        %s195 = scalar_lea.sflag [#allocation4], %s194
        %s196 = sand.u32 %s65, 1
        %s197 = smul.addr %s196, 8192
        %s198 = scalar_lea.vmem [#allocation3], %s197
        // Predicated region
        $region33: #{complex_encoder.2} parent=31 // pred_check
          %p199 = pneg %p78
        $region34: #{complex_encoder.2} parent=31 // pred_check_branch
          %201 = sbr.rel (%p199) target = $region36
        $region35: #{complex_encoder.2} parent=31 // pred_region
          %202 = dma.done %s195, 131072
        $region36: #{complex_encoder.2} parent=31 // pred_fallthru
          _
        %s203 = smul.u32 64, %s22
        %p204 = scmp.lt.s32.totalorder %s203, 1727
        %s205 = scalar_select %p204, %s203, 1727
        %s206 = smul.addr %s205, 2
        %s207 = scalar_lea.vmem %s0, %s206
        %p208 = pneg %p50
        %p209 = pneg %p47
        %s210 = sand.u32 %s65, 1
        %s211 = scalar_lea.sflag [#allocation4], %s210
        %s212 = sand.u32 %s65, 1
        %s213 = smul.addr %s212, 8192
        %s214 = scalar_lea.vmem [#allocation3], %s213
        %p215 = pneg %p78
        %p216 = pneg %p75
        %p217 = scmp.lt.s32.totalorder %s21, 1
        %s218 = scalar_select %p217, %s21, 1
        %s219 = scalar_lea.vmem %s2, %s218
        %p220 = pneg %p104
        %p221 = pneg %p101
        %p222 = pneg %p130
        %p223 = pneg %p127
        %p224 = scmp.lt.s32.totalorder %s21, 1
        %s225 = scalar_select %p224, %s21, 1
        %s226 = smul.addr %s225, 2
        %s227 = scalar_lea.vmem %s3, %s226
        %s228 = smul.u32 64, %s22
        %p229 = scmp.lt.s32.totalorder %s228, 1727
        %s230 = scalar_select %p229, %s228, 1727
        %s231 = smul.addr %s230, 2
        %s232 = scalar_lea.vmem %s0, %s231
        %s233 = smul.u32 64, %s22
        %s234 = smul.u32 1024, %s22
        %p235 = scmp.lt.s32.totalorder %s21, 1
        %s236 = scalar_select %p235, %s21, 1
        %s237 = scalar_lea.vmem %s2, %s236
        %p238 = scmp.lt.s32.totalorder %s21, 1
        %s239 = scalar_select %p238, %s21, 1
        %s240 = smul.addr %s239, 2
        %s241 = scalar_lea.vmem %s3, %s240
        %p242 = scmp.eq.s32.totalorder %s22, 0
        // Predicated region
        $region37: #{complex_encoder.2} parent=31 // pred_check
          %p243 = pneg %p242
        $region38: #{complex_encoder.2} parent=31 // pred_check_branch
          %245 = sbr.rel (%p243) target = $region40
        $region39: #{complex_encoder.2} parent=31 // pred_region
          %246 = vst [vmem:[#allocation2] sm:$0x3] 0.0
        $region40: #{complex_encoder.2} parent=31 // pred_fallthru
          _
        %v247 = vld [vmem:[#allocation2] sm:$0x3]
        %v248 = vld [vmem:[%s232] sm:$0xff]
        %v249 = vld [vmem:[%s232 + $0x8] sm:$0xff]
        %v250 = vld [vmem:[%s232 + $0x10] sm:$0xff]
        %v251 = vld [vmem:[%s232 + $0x18] sm:$0xff]
        %v252 = vld [vmem:[%s232 + $0x20] sm:$0xff]
        %v253 = vld [vmem:[%s232 + $0x28] sm:$0xff]
        %v254 = vld [vmem:[%s232 + $0x30] sm:$0xff]
        %v255 = vld [vmem:[%s232 + $0x38] sm:$0xff]
        %v256 = vld [vmem:[%s232 + $0x40] sm:$0xff]
        %v257 = vld [vmem:[%s232 + $0x48] sm:$0xff]
        %v258 = vld [vmem:[%s232 + $0x50] sm:$0xff]
        %v259 = vld [vmem:[%s232 + $0x58] sm:$0xff]
        %v260 = vld [vmem:[%s232 + $0x60] sm:$0xff]
        %v261 = vld [vmem:[%s232 + $0x68] sm:$0xff]
        %v262 = vld [vmem:[%s232 + $0x70] sm:$0xff]
        %v263 = vld [vmem:[%s232 + $0x78] sm:$0xff]
        %v264 = vld [vmem:[%s198] sm:$0xff]
        %v265 = vld [vmem:[%s198 + $0x8] sm:$0xff]
        %v266 = vld [vmem:[%s198 + $0x10] sm:$0xff]
        %v267 = vld [vmem:[%s198 + $0x18] sm:$0xff]
        %v268 = vld [vmem:[%s198 + $0x20] sm:$0xff]
        %v269 = vld [vmem:[%s198 + $0x28] sm:$0xff]
        %v270 = vld [vmem:[%s198 + $0x30] sm:$0xff]
        %v271 = vld [vmem:[%s198 + $0x38] sm:$0xff]
        %v272 = vld [vmem:[%s198 + $0x40] sm:$0xff]
        %v273 = vld [vmem:[%s198 + $0x48] sm:$0xff]
        %v274 = vld [vmem:[%s198 + $0x50] sm:$0xff]
        %v275 = vld [vmem:[%s198 + $0x58] sm:$0xff]
        %v276 = vld [vmem:[%s198 + $0x60] sm:$0xff]
        %v277 = vld [vmem:[%s198 + $0x68] sm:$0xff]
        %v278 = vld [vmem:[%s198 + $0x70] sm:$0xff]
        %v279 = vld [vmem:[%s198 + $0x78] sm:$0xff]
        %v280 = vld [vmem:[%s198 + $0x80] sm:$0xff]
        %v281 = vld [vmem:[%s198 + $0x88] sm:$0xff]
        %v282 = vld [vmem:[%s198 + $0x90] sm:$0xff]
        %v283 = vld [vmem:[%s198 + $0x98] sm:$0xff]
        %v284 = vld [vmem:[%s198 + $0xa0] sm:$0xff]
        %v285 = vld [vmem:[%s198 + $0xa8] sm:$0xff]
        %v286 = vld [vmem:[%s198 + $0xb0] sm:$0xff]
        %v287 = vld [vmem:[%s198 + $0xb8] sm:$0xff]
        %v288 = vld [vmem:[%s198 + $0xc0] sm:$0xff]
        %v289 = vld [vmem:[%s198 + $0xc8] sm:$0xff]
        %v290 = vld [vmem:[%s198 + $0xd0] sm:$0xff]
        %v291 = vld [vmem:[%s198 + $0xd8] sm:$0xff]
        %v292 = vld [vmem:[%s198 + $0xe0] sm:$0xff]
        %v293 = vld [vmem:[%s198 + $0xe8] sm:$0xff]
        %v294 = vld [vmem:[%s198 + $0xf0] sm:$0xff]
        %v295 = vld [vmem:[%s198 + $0xf8] sm:$0xff]
        %v296 = vld [vmem:[%s198 + $0x100] sm:$0xff]
        %v297 = vld [vmem:[%s198 + $0x108] sm:$0xff]
        %v298 = vld [vmem:[%s198 + $0x110] sm:$0xff]
        %v299 = vld [vmem:[%s198 + $0x118] sm:$0xff]
        %v300 = vld [vmem:[%s198 + $0x120] sm:$0xff]
        %v301 = vld [vmem:[%s198 + $0x128] sm:$0xff]
        %v302 = vld [vmem:[%s198 + $0x130] sm:$0xff]
        %v303 = vld [vmem:[%s198 + $0x138] sm:$0xff]
        %v304 = vld [vmem:[%s198 + $0x140] sm:$0xff]
        %v305 = vld [vmem:[%s198 + $0x148] sm:$0xff]
        %v306 = vld [vmem:[%s198 + $0x150] sm:$0xff]
        %v307 = vld [vmem:[%s198 + $0x158] sm:$0xff]
        %v308 = vld [vmem:[%s198 + $0x160] sm:$0xff]
        %v309 = vld [vmem:[%s198 + $0x168] sm:$0xff]
        %v310 = vld [vmem:[%s198 + $0x170] sm:$0xff]
        %v311 = vld [vmem:[%s198 + $0x178] sm:$0xff]
        %v312 = vld [vmem:[%s198 + $0x180] sm:$0xff]
        %v313 = vld [vmem:[%s198 + $0x188] sm:$0xff]
        %v314 = vld [vmem:[%s198 + $0x190] sm:$0xff]
        %v315 = vld [vmem:[%s198 + $0x198] sm:$0xff]
        %v316 = vld [vmem:[%s198 + $0x1a0] sm:$0xff]
        %v317 = vld [vmem:[%s198 + $0x1a8] sm:$0xff]
        %v318 = vld [vmem:[%s198 + $0x1b0] sm:$0xff]
        %v319 = vld [vmem:[%s198 + $0x1b8] sm:$0xff]
        %v320 = vld [vmem:[%s198 + $0x1c0] sm:$0xff]
        %v321 = vld [vmem:[%s198 + $0x1c8] sm:$0xff]
        %v322 = vld [vmem:[%s198 + $0x1d0] sm:$0xff]
        %v323 = vld [vmem:[%s198 + $0x1d8] sm:$0xff]
        %v324 = vld [vmem:[%s198 + $0x1e0] sm:$0xff]
        %v325 = vld [vmem:[%s198 + $0x1e8] sm:$0xff]
        %v326 = vld [vmem:[%s198 + $0x1f0] sm:$0xff]
        %v327 = vld [vmem:[%s198 + $0x1f8] sm:$0xff]
        %v328 = vld [vmem:[%s198 + $0x200] sm:$0xff]
        %v329 = vld [vmem:[%s198 + $0x208] sm:$0xff]
        %v330 = vld [vmem:[%s198 + $0x210] sm:$0xff]
        %v331 = vld [vmem:[%s198 + $0x218] sm:$0xff]
        %v332 = vld [vmem:[%s198 + $0x220] sm:$0xff]
        %v333 = vld [vmem:[%s198 + $0x228] sm:$0xff]
        %v334 = vld [vmem:[%s198 + $0x230] sm:$0xff]
        %v335 = vld [vmem:[%s198 + $0x238] sm:$0xff]
        %v336 = vld [vmem:[%s198 + $0x240] sm:$0xff]
        %v337 = vld [vmem:[%s198 + $0x248] sm:$0xff]
        %v338 = vld [vmem:[%s198 + $0x250] sm:$0xff]
        %v339 = vld [vmem:[%s198 + $0x258] sm:$0xff]
        %v340 = vld [vmem:[%s198 + $0x260] sm:$0xff]
        %v341 = vld [vmem:[%s198 + $0x268] sm:$0xff]
        %v342 = vld [vmem:[%s198 + $0x270] sm:$0xff]
        %v343 = vld [vmem:[%s198 + $0x278] sm:$0xff]
        %v344 = vld [vmem:[%s198 + $0x280] sm:$0xff]
        %v345 = vld [vmem:[%s198 + $0x288] sm:$0xff]
        %v346 = vld [vmem:[%s198 + $0x290] sm:$0xff]
        %v347 = vld [vmem:[%s198 + $0x298] sm:$0xff]
        %v348 = vld [vmem:[%s198 + $0x2a0] sm:$0xff]
        %v349 = vld [vmem:[%s198 + $0x2a8] sm:$0xff]
        %v350 = vld [vmem:[%s198 + $0x2b0] sm:$0xff]
        %v351 = vld [vmem:[%s198 + $0x2b8] sm:$0xff]
        %v352 = vld [vmem:[%s198 + $0x2c0] sm:$0xff]
        %v353 = vld [vmem:[%s198 + $0x2c8] sm:$0xff]
        %v354 = vld [vmem:[%s198 + $0x2d0] sm:$0xff]
        %v355 = vld [vmem:[%s198 + $0x2d8] sm:$0xff]
        %v356 = vld [vmem:[%s198 + $0x2e0] sm:$0xff]
        %v357 = vld [vmem:[%s198 + $0x2e8] sm:$0xff]
        %v358 = vld [vmem:[%s198 + $0x2f0] sm:$0xff]
        %v359 = vld [vmem:[%s198 + $0x2f8] sm:$0xff]
        %v360 = vld [vmem:[%s198 + $0x300] sm:$0xff]
        %v361 = vld [vmem:[%s198 + $0x308] sm:$0xff]
        %v362 = vld [vmem:[%s198 + $0x310] sm:$0xff]
        %v363 = vld [vmem:[%s198 + $0x318] sm:$0xff]
        %v364 = vld [vmem:[%s198 + $0x320] sm:$0xff]
        %v365 = vld [vmem:[%s198 + $0x328] sm:$0xff]
        %v366 = vld [vmem:[%s198 + $0x330] sm:$0xff]
        %v367 = vld [vmem:[%s198 + $0x338] sm:$0xff]
        %v368 = vld [vmem:[%s198 + $0x340] sm:$0xff]
        %v369 = vld [vmem:[%s198 + $0x348] sm:$0xff]
        %v370 = vld [vmem:[%s198 + $0x350] sm:$0xff]
        %v371 = vld [vmem:[%s198 + $0x358] sm:$0xff]
        %v372 = vld [vmem:[%s198 + $0x360] sm:$0xff]
        %v373 = vld [vmem:[%s198 + $0x368] sm:$0xff]
        %v374 = vld [vmem:[%s198 + $0x370] sm:$0xff]
        %v375 = vld [vmem:[%s198 + $0x378] sm:$0xff]
        %v376 = vld [vmem:[%s198 + $0x380] sm:$0xff]
        %v377 = vld [vmem:[%s198 + $0x388] sm:$0xff]
        %v378 = vld [vmem:[%s198 + $0x390] sm:$0xff]
        %v379 = vld [vmem:[%s198 + $0x398] sm:$0xff]
        %v380 = vld [vmem:[%s198 + $0x3a0] sm:$0xff]
        %v381 = vld [vmem:[%s198 + $0x3a8] sm:$0xff]
        %v382 = vld [vmem:[%s198 + $0x3b0] sm:$0xff]
        %v383 = vld [vmem:[%s198 + $0x3b8] sm:$0xff]
        %v384 = vld [vmem:[%s198 + $0x3c0] sm:$0xff]
        %v385 = vld [vmem:[%s198 + $0x3c8] sm:$0xff]
        %v386 = vld [vmem:[%s198 + $0x3d0] sm:$0xff]
        %v387 = vld [vmem:[%s198 + $0x3d8] sm:$0xff]
        %v388 = vld [vmem:[%s198 + $0x3e0] sm:$0xff]
        %v389 = vld [vmem:[%s198 + $0x3e8] sm:$0xff]
        %v390 = vld [vmem:[%s198 + $0x3f0] sm:$0xff]
        %v391 = vld [vmem:[%s198 + $0x3f8] sm:$0xff]
        %v392 = vld [vmem:[%s198 + $0x400] sm:$0xff]
        %v393 = vld [vmem:[%s198 + $0x408] sm:$0xff]
        %v394 = vld [vmem:[%s198 + $0x410] sm:$0xff]
        %v395 = vld [vmem:[%s198 + $0x418] sm:$0xff]
        %v396 = vld [vmem:[%s198 + $0x420] sm:$0xff]
        %v397 = vld [vmem:[%s198 + $0x428] sm:$0xff]
        %v398 = vld [vmem:[%s198 + $0x430] sm:$0xff]
        %v399 = vld [vmem:[%s198 + $0x438] sm:$0xff]
        %v400 = vld [vmem:[%s198 + $0x440] sm:$0xff]
        %v401 = vld [vmem:[%s198 + $0x448] sm:$0xff]
        %v402 = vld [vmem:[%s198 + $0x450] sm:$0xff]
        %v403 = vld [vmem:[%s198 + $0x458] sm:$0xff]
        %v404 = vld [vmem:[%s198 + $0x460] sm:$0xff]
        %v405 = vld [vmem:[%s198 + $0x468] sm:$0xff]
        %v406 = vld [vmem:[%s198 + $0x470] sm:$0xff]
        %v407 = vld [vmem:[%s198 + $0x478] sm:$0xff]
        %v408 = vld [vmem:[%s198 + $0x480] sm:$0xff]
        %v409 = vld [vmem:[%s198 + $0x488] sm:$0xff]
        %v410 = vld [vmem:[%s198 + $0x490] sm:$0xff]
        %v411 = vld [vmem:[%s198 + $0x498] sm:$0xff]
        %v412 = vld [vmem:[%s198 + $0x4a0] sm:$0xff]
        %v413 = vld [vmem:[%s198 + $0x4a8] sm:$0xff]
        %v414 = vld [vmem:[%s198 + $0x4b0] sm:$0xff]
        %v415 = vld [vmem:[%s198 + $0x4b8] sm:$0xff]
        %v416 = vld [vmem:[%s198 + $0x4c0] sm:$0xff]
        %v417 = vld [vmem:[%s198 + $0x4c8] sm:$0xff]
        %v418 = vld [vmem:[%s198 + $0x4d0] sm:$0xff]
        %v419 = vld [vmem:[%s198 + $0x4d8] sm:$0xff]
        %v420 = vld [vmem:[%s198 + $0x4e0] sm:$0xff]
        %v421 = vld [vmem:[%s198 + $0x4e8] sm:$0xff]
        %v422 = vld [vmem:[%s198 + $0x4f0] sm:$0xff]
        %v423 = vld [vmem:[%s198 + $0x4f8] sm:$0xff]
        %v424 = vld [vmem:[%s198 + $0x500] sm:$0xff]
        %v425 = vld [vmem:[%s198 + $0x508] sm:$0xff]
        %v426 = vld [vmem:[%s198 + $0x510] sm:$0xff]
        %v427 = vld [vmem:[%s198 + $0x518] sm:$0xff]
        %v428 = vld [vmem:[%s198 + $0x520] sm:$0xff]
        %v429 = vld [vmem:[%s198 + $0x528] sm:$0xff]
        %v430 = vld [vmem:[%s198 + $0x530] sm:$0xff]
        %v431 = vld [vmem:[%s198 + $0x538] sm:$0xff]
        %v432 = vld [vmem:[%s198 + $0x540] sm:$0xff]
        %v433 = vld [vmem:[%s198 + $0x548] sm:$0xff]
        %v434 = vld [vmem:[%s198 + $0x550] sm:$0xff]
        %v435 = vld [vmem:[%s198 + $0x558] sm:$0xff]
        %v436 = vld [vmem:[%s198 + $0x560] sm:$0xff]
        %v437 = vld [vmem:[%s198 + $0x568] sm:$0xff]
        %v438 = vld [vmem:[%s198 + $0x570] sm:$0xff]
        %v439 = vld [vmem:[%s198 + $0x578] sm:$0xff]
        %v440 = vld [vmem:[%s198 + $0x580] sm:$0xff]
        %v441 = vld [vmem:[%s198 + $0x588] sm:$0xff]
        %v442 = vld [vmem:[%s198 + $0x590] sm:$0xff]
        %v443 = vld [vmem:[%s198 + $0x598] sm:$0xff]
        %v444 = vld [vmem:[%s198 + $0x5a0] sm:$0xff]
        %v445 = vld [vmem:[%s198 + $0x5a8] sm:$0xff]
        %v446 = vld [vmem:[%s198 + $0x5b0] sm:$0xff]
        %v447 = vld [vmem:[%s198 + $0x5b8] sm:$0xff]
        %v448 = vld [vmem:[%s198 + $0x5c0] sm:$0xff]
        %v449 = vld [vmem:[%s198 + $0x5c8] sm:$0xff]
        %v450 = vld [vmem:[%s198 + $0x5d0] sm:$0xff]
        %v451 = vld [vmem:[%s198 + $0x5d8] sm:$0xff]
        %v452 = vld [vmem:[%s198 + $0x5e0] sm:$0xff]
        %v453 = vld [vmem:[%s198 + $0x5e8] sm:$0xff]
        %v454 = vld [vmem:[%s198 + $0x5f0] sm:$0xff]
        %v455 = vld [vmem:[%s198 + $0x5f8] sm:$0xff]
        %v456 = vld [vmem:[%s198 + $0x600] sm:$0xff]
        %v457 = vld [vmem:[%s198 + $0x608] sm:$0xff]
        %v458 = vld [vmem:[%s198 + $0x610] sm:$0xff]
        %v459 = vld [vmem:[%s198 + $0x618] sm:$0xff]
        %v460 = vld [vmem:[%s198 + $0x620] sm:$0xff]
        %v461 = vld [vmem:[%s198 + $0x628] sm:$0xff]
        %v462 = vld [vmem:[%s198 + $0x630] sm:$0xff]
        %v463 = vld [vmem:[%s198 + $0x638] sm:$0xff]
        %v464 = vld [vmem:[%s198 + $0x640] sm:$0xff]
        %v465 = vld [vmem:[%s198 + $0x648] sm:$0xff]
        %v466 = vld [vmem:[%s198 + $0x650] sm:$0xff]
        %v467 = vld [vmem:[%s198 + $0x658] sm:$0xff]
        %v468 = vld [vmem:[%s198 + $0x660] sm:$0xff]
        %v469 = vld [vmem:[%s198 + $0x668] sm:$0xff]
        %v470 = vld [vmem:[%s198 + $0x670] sm:$0xff]
        %v471 = vld [vmem:[%s198 + $0x678] sm:$0xff]
        %v472 = vld [vmem:[%s198 + $0x680] sm:$0xff]
        %v473 = vld [vmem:[%s198 + $0x688] sm:$0xff]
        %v474 = vld [vmem:[%s198 + $0x690] sm:$0xff]
        %v475 = vld [vmem:[%s198 + $0x698] sm:$0xff]
        %v476 = vld [vmem:[%s198 + $0x6a0] sm:$0xff]
        %v477 = vld [vmem:[%s198 + $0x6a8] sm:$0xff]
        %v478 = vld [vmem:[%s198 + $0x6b0] sm:$0xff]
        %v479 = vld [vmem:[%s198 + $0x6b8] sm:$0xff]
        %v480 = vld [vmem:[%s198 + $0x6c0] sm:$0xff]
        %v481 = vld [vmem:[%s198 + $0x6c8] sm:$0xff]
        %v482 = vld [vmem:[%s198 + $0x6d0] sm:$0xff]
        %v483 = vld [vmem:[%s198 + $0x6d8] sm:$0xff]
        %v484 = vld [vmem:[%s198 + $0x6e0] sm:$0xff]
        %v485 = vld [vmem:[%s198 + $0x6e8] sm:$0xff]
        %v486 = vld [vmem:[%s198 + $0x6f0] sm:$0xff]
        %v487 = vld [vmem:[%s198 + $0x6f8] sm:$0xff]
        %v488 = vld [vmem:[%s198 + $0x700] sm:$0xff]
        %v489 = vld [vmem:[%s198 + $0x708] sm:$0xff]
        %v490 = vld [vmem:[%s198 + $0x710] sm:$0xff]
        %v491 = vld [vmem:[%s198 + $0x718] sm:$0xff]
        %v492 = vld [vmem:[%s198 + $0x720] sm:$0xff]
        %v493 = vld [vmem:[%s198 + $0x728] sm:$0xff]
        %v494 = vld [vmem:[%s198 + $0x730] sm:$0xff]
        %v495 = vld [vmem:[%s198 + $0x738] sm:$0xff]
        %v496 = vld [vmem:[%s198 + $0x740] sm:$0xff]
        %v497 = vld [vmem:[%s198 + $0x748] sm:$0xff]
        %v498 = vld [vmem:[%s198 + $0x750] sm:$0xff]
        %v499 = vld [vmem:[%s198 + $0x758] sm:$0xff]
        %v500 = vld [vmem:[%s198 + $0x760] sm:$0xff]
        %v501 = vld [vmem:[%s198 + $0x768] sm:$0xff]
        %v502 = vld [vmem:[%s198 + $0x770] sm:$0xff]
        %v503 = vld [vmem:[%s198 + $0x778] sm:$0xff]
        %v504 = vld [vmem:[%s198 + $0x780] sm:$0xff]
        %v505 = vld [vmem:[%s198 + $0x788] sm:$0xff]
        %v506 = vld [vmem:[%s198 + $0x790] sm:$0xff]
        %v507 = vld [vmem:[%s198 + $0x798] sm:$0xff]
        %v508 = vld [vmem:[%s198 + $0x7a0] sm:$0xff]
        %v509 = vld [vmem:[%s198 + $0x7a8] sm:$0xff]
        %v510 = vld [vmem:[%s198 + $0x7b0] sm:$0xff]
        %v511 = vld [vmem:[%s198 + $0x7b8] sm:$0xff]
        %v512 = vld [vmem:[%s198 + $0x7c0] sm:$0xff]
        %v513 = vld [vmem:[%s198 + $0x7c8] sm:$0xff]
        %v514 = vld [vmem:[%s198 + $0x7d0] sm:$0xff]
        %v515 = vld [vmem:[%s198 + $0x7d8] sm:$0xff]
        %v516 = vld [vmem:[%s198 + $0x7e0] sm:$0xff]
        %v517 = vld [vmem:[%s198 + $0x7e8] sm:$0xff]
        %v518 = vld [vmem:[%s198 + $0x7f0] sm:$0xff]
        %v519 = vld [vmem:[%s198 + $0x7f8] sm:$0xff]
        %v520 = vld [vmem:[%s198 + $0x800] sm:$0xff]
        %v521 = vld [vmem:[%s198 + $0x808] sm:$0xff]
        %v522 = vld [vmem:[%s198 + $0x810] sm:$0xff]
        %v523 = vld [vmem:[%s198 + $0x818] sm:$0xff]
        %v524 = vld [vmem:[%s198 + $0x820] sm:$0xff]
        %v525 = vld [vmem:[%s198 + $0x828] sm:$0xff]
        %v526 = vld [vmem:[%s198 + $0x830] sm:$0xff]
        %v527 = vld [vmem:[%s198 + $0x838] sm:$0xff]
        %v528 = vld [vmem:[%s198 + $0x840] sm:$0xff]
        %v529 = vld [vmem:[%s198 + $0x848] sm:$0xff]
        %v530 = vld [vmem:[%s198 + $0x850] sm:$0xff]
        %v531 = vld [vmem:[%s198 + $0x858] sm:$0xff]
        %v532 = vld [vmem:[%s198 + $0x860] sm:$0xff]
        %v533 = vld [vmem:[%s198 + $0x868] sm:$0xff]
        %v534 = vld [vmem:[%s198 + $0x870] sm:$0xff]
        %v535 = vld [vmem:[%s198 + $0x878] sm:$0xff]
        %v536 = vld [vmem:[%s198 + $0x880] sm:$0xff]
        %v537 = vld [vmem:[%s198 + $0x888] sm:$0xff]
        %v538 = vld [vmem:[%s198 + $0x890] sm:$0xff]
        %v539 = vld [vmem:[%s198 + $0x898] sm:$0xff]
        %v540 = vld [vmem:[%s198 + $0x8a0] sm:$0xff]
        %v541 = vld [vmem:[%s198 + $0x8a8] sm:$0xff]
        %v542 = vld [vmem:[%s198 + $0x8b0] sm:$0xff]
        %v543 = vld [vmem:[%s198 + $0x8b8] sm:$0xff]
        %v544 = vld [vmem:[%s198 + $0x8c0] sm:$0xff]
        %v545 = vld [vmem:[%s198 + $0x8c8] sm:$0xff]
        %v546 = vld [vmem:[%s198 + $0x8d0] sm:$0xff]
        %v547 = vld [vmem:[%s198 + $0x8d8] sm:$0xff]
        %v548 = vld [vmem:[%s198 + $0x8e0] sm:$0xff]
        %v549 = vld [vmem:[%s198 + $0x8e8] sm:$0xff]
        %v550 = vld [vmem:[%s198 + $0x8f0] sm:$0xff]
        %v551 = vld [vmem:[%s198 + $0x8f8] sm:$0xff]
        %v552 = vld [vmem:[%s198 + $0x900] sm:$0xff]
        %v553 = vld [vmem:[%s198 + $0x908] sm:$0xff]
        %v554 = vld [vmem:[%s198 + $0x910] sm:$0xff]
        %v555 = vld [vmem:[%s198 + $0x918] sm:$0xff]
        %v556 = vld [vmem:[%s198 + $0x920] sm:$0xff]
        %v557 = vld [vmem:[%s198 + $0x928] sm:$0xff]
        %v558 = vld [vmem:[%s198 + $0x930] sm:$0xff]
        %v559 = vld [vmem:[%s198 + $0x938] sm:$0xff]
        %v560 = vld [vmem:[%s198 + $0x940] sm:$0xff]
        %v561 = vld [vmem:[%s198 + $0x948] sm:$0xff]
        %v562 = vld [vmem:[%s198 + $0x950] sm:$0xff]
        %v563 = vld [vmem:[%s198 + $0x958] sm:$0xff]
        %v564 = vld [vmem:[%s198 + $0x960] sm:$0xff]
        %v565 = vld [vmem:[%s198 + $0x968] sm:$0xff]
        %v566 = vld [vmem:[%s198 + $0x970] sm:$0xff]
        %v567 = vld [vmem:[%s198 + $0x978] sm:$0xff]
        %v568 = vld [vmem:[%s198 + $0x980] sm:$0xff]
        %v569 = vld [vmem:[%s198 + $0x988] sm:$0xff]
        %v570 = vld [vmem:[%s198 + $0x990] sm:$0xff]
        %v571 = vld [vmem:[%s198 + $0x998] sm:$0xff]
        %v572 = vld [vmem:[%s198 + $0x9a0] sm:$0xff]
        %v573 = vld [vmem:[%s198 + $0x9a8] sm:$0xff]
        %v574 = vld [vmem:[%s198 + $0x9b0] sm:$0xff]
        %v575 = vld [vmem:[%s198 + $0x9b8] sm:$0xff]
        %v576 = vld [vmem:[%s198 + $0x9c0] sm:$0xff]
        %v577 = vld [vmem:[%s198 + $0x9c8] sm:$0xff]
        %v578 = vld [vmem:[%s198 + $0x9d0] sm:$0xff]
        %v579 = vld [vmem:[%s198 + $0x9d8] sm:$0xff]
        %v580 = vld [vmem:[%s198 + $0x9e0] sm:$0xff]
        %v581 = vld [vmem:[%s198 + $0x9e8] sm:$0xff]
        %v582 = vld [vmem:[%s198 + $0x9f0] sm:$0xff]
        %v583 = vld [vmem:[%s198 + $0x9f8] sm:$0xff]
        %v584 = vld [vmem:[%s198 + $0xa00] sm:$0xff]
        %v585 = vld [vmem:[%s198 + $0xa08] sm:$0xff]
        %v586 = vld [vmem:[%s198 + $0xa10] sm:$0xff]
        %v587 = vld [vmem:[%s198 + $0xa18] sm:$0xff]
        %v588 = vld [vmem:[%s198 + $0xa20] sm:$0xff]
        %v589 = vld [vmem:[%s198 + $0xa28] sm:$0xff]
        %v590 = vld [vmem:[%s198 + $0xa30] sm:$0xff]
        %v591 = vld [vmem:[%s198 + $0xa38] sm:$0xff]
        %v592 = vld [vmem:[%s198 + $0xa40] sm:$0xff]
        %v593 = vld [vmem:[%s198 + $0xa48] sm:$0xff]
        %v594 = vld [vmem:[%s198 + $0xa50] sm:$0xff]
        %v595 = vld [vmem:[%s198 + $0xa58] sm:$0xff]
        %v596 = vld [vmem:[%s198 + $0xa60] sm:$0xff]
        %v597 = vld [vmem:[%s198 + $0xa68] sm:$0xff]
        %v598 = vld [vmem:[%s198 + $0xa70] sm:$0xff]
        %v599 = vld [vmem:[%s198 + $0xa78] sm:$0xff]
        %v600 = vld [vmem:[%s198 + $0xa80] sm:$0xff]
        %v601 = vld [vmem:[%s198 + $0xa88] sm:$0xff]
        %v602 = vld [vmem:[%s198 + $0xa90] sm:$0xff]
        %v603 = vld [vmem:[%s198 + $0xa98] sm:$0xff]
        %v604 = vld [vmem:[%s198 + $0xaa0] sm:$0xff]
        %v605 = vld [vmem:[%s198 + $0xaa8] sm:$0xff]
        %v606 = vld [vmem:[%s198 + $0xab0] sm:$0xff]
        %v607 = vld [vmem:[%s198 + $0xab8] sm:$0xff]
        %v608 = vld [vmem:[%s198 + $0xac0] sm:$0xff]
        %v609 = vld [vmem:[%s198 + $0xac8] sm:$0xff]
        %v610 = vld [vmem:[%s198 + $0xad0] sm:$0xff]
        %v611 = vld [vmem:[%s198 + $0xad8] sm:$0xff]
        %v612 = vld [vmem:[%s198 + $0xae0] sm:$0xff]
        %v613 = vld [vmem:[%s198 + $0xae8] sm:$0xff]
        %v614 = vld [vmem:[%s198 + $0xaf0] sm:$0xff]
        %v615 = vld [vmem:[%s198 + $0xaf8] sm:$0xff]
        %v616 = vld [vmem:[%s198 + $0xb00] sm:$0xff]
        %v617 = vld [vmem:[%s198 + $0xb08] sm:$0xff]
        %v618 = vld [vmem:[%s198 + $0xb10] sm:$0xff]
        %v619 = vld [vmem:[%s198 + $0xb18] sm:$0xff]
        %v620 = vld [vmem:[%s198 + $0xb20] sm:$0xff]
        %v621 = vld [vmem:[%s198 + $0xb28] sm:$0xff]
        %v622 = vld [vmem:[%s198 + $0xb30] sm:$0xff]
        %v623 = vld [vmem:[%s198 + $0xb38] sm:$0xff]
        %v624 = vld [vmem:[%s198 + $0xb40] sm:$0xff]
        %v625 = vld [vmem:[%s198 + $0xb48] sm:$0xff]
        %v626 = vld [vmem:[%s198 + $0xb50] sm:$0xff]
        %v627 = vld [vmem:[%s198 + $0xb58] sm:$0xff]
        %v628 = vld [vmem:[%s198 + $0xb60] sm:$0xff]
        %v629 = vld [vmem:[%s198 + $0xb68] sm:$0xff]
        %v630 = vld [vmem:[%s198 + $0xb70] sm:$0xff]
        %v631 = vld [vmem:[%s198 + $0xb78] sm:$0xff]
        %v632 = vld [vmem:[%s198 + $0xb80] sm:$0xff]
        %v633 = vld [vmem:[%s198 + $0xb88] sm:$0xff]
        %v634 = vld [vmem:[%s198 + $0xb90] sm:$0xff]
        %v635 = vld [vmem:[%s198 + $0xb98] sm:$0xff]
        %v636 = vld [vmem:[%s198 + $0xba0] sm:$0xff]
        %v637 = vld [vmem:[%s198 + $0xba8] sm:$0xff]
        %v638 = vld [vmem:[%s198 + $0xbb0] sm:$0xff]
        %v639 = vld [vmem:[%s198 + $0xbb8] sm:$0xff]
        %v640 = vld [vmem:[%s198 + $0xbc0] sm:$0xff]
        %v641 = vld [vmem:[%s198 + $0xbc8] sm:$0xff]
        %v642 = vld [vmem:[%s198 + $0xbd0] sm:$0xff]
        %v643 = vld [vmem:[%s198 + $0xbd8] sm:$0xff]
        %v644 = vld [vmem:[%s198 + $0xbe0] sm:$0xff]
        %v645 = vld [vmem:[%s198 + $0xbe8] sm:$0xff]
        %v646 = vld [vmem:[%s198 + $0xbf0] sm:$0xff]
        %v647 = vld [vmem:[%s198 + $0xbf8] sm:$0xff]
        %v648 = vld [vmem:[%s198 + $0xc00] sm:$0xff]
        %v649 = vld [vmem:[%s198 + $0xc08] sm:$0xff]
        %v650 = vld [vmem:[%s198 + $0xc10] sm:$0xff]
        %v651 = vld [vmem:[%s198 + $0xc18] sm:$0xff]
        %v652 = vld [vmem:[%s198 + $0xc20] sm:$0xff]
        %v653 = vld [vmem:[%s198 + $0xc28] sm:$0xff]
        %v654 = vld [vmem:[%s198 + $0xc30] sm:$0xff]
        %v655 = vld [vmem:[%s198 + $0xc38] sm:$0xff]
        %v656 = vld [vmem:[%s198 + $0xc40] sm:$0xff]
        %v657 = vld [vmem:[%s198 + $0xc48] sm:$0xff]
        %v658 = vld [vmem:[%s198 + $0xc50] sm:$0xff]
        %v659 = vld [vmem:[%s198 + $0xc58] sm:$0xff]
        %v660 = vld [vmem:[%s198 + $0xc60] sm:$0xff]
        %v661 = vld [vmem:[%s198 + $0xc68] sm:$0xff]
        %v662 = vld [vmem:[%s198 + $0xc70] sm:$0xff]
        %v663 = vld [vmem:[%s198 + $0xc78] sm:$0xff]
        %v664 = vld [vmem:[%s198 + $0xc80] sm:$0xff]
        %v665 = vld [vmem:[%s198 + $0xc88] sm:$0xff]
        %v666 = vld [vmem:[%s198 + $0xc90] sm:$0xff]
        %v667 = vld [vmem:[%s198 + $0xc98] sm:$0xff]
        %v668 = vld [vmem:[%s198 + $0xca0] sm:$0xff]
        %v669 = vld [vmem:[%s198 + $0xca8] sm:$0xff]
        %v670 = vld [vmem:[%s198 + $0xcb0] sm:$0xff]
        %v671 = vld [vmem:[%s198 + $0xcb8] sm:$0xff]
        %v672 = vld [vmem:[%s198 + $0xcc0] sm:$0xff]
        %v673 = vld [vmem:[%s198 + $0xcc8] sm:$0xff]
        %v674 = vld [vmem:[%s198 + $0xcd0] sm:$0xff]
        %v675 = vld [vmem:[%s198 + $0xcd8] sm:$0xff]
        %v676 = vld [vmem:[%s198 + $0xce0] sm:$0xff]
        %v677 = vld [vmem:[%s198 + $0xce8] sm:$0xff]
        %v678 = vld [vmem:[%s198 + $0xcf0] sm:$0xff]
        %v679 = vld [vmem:[%s198 + $0xcf8] sm:$0xff]
        %v680 = vld [vmem:[%s198 + $0xd00] sm:$0xff]
        %v681 = vld [vmem:[%s198 + $0xd08] sm:$0xff]
        %v682 = vld [vmem:[%s198 + $0xd10] sm:$0xff]
        %v683 = vld [vmem:[%s198 + $0xd18] sm:$0xff]
        %v684 = vld [vmem:[%s198 + $0xd20] sm:$0xff]
        %v685 = vld [vmem:[%s198 + $0xd28] sm:$0xff]
        %v686 = vld [vmem:[%s198 + $0xd30] sm:$0xff]
        %v687 = vld [vmem:[%s198 + $0xd38] sm:$0xff]
        %v688 = vld [vmem:[%s198 + $0xd40] sm:$0xff]
        %v689 = vld [vmem:[%s198 + $0xd48] sm:$0xff]
        %v690 = vld [vmem:[%s198 + $0xd50] sm:$0xff]
        %v691 = vld [vmem:[%s198 + $0xd58] sm:$0xff]
        %v692 = vld [vmem:[%s198 + $0xd60] sm:$0xff]
        %v693 = vld [vmem:[%s198 + $0xd68] sm:$0xff]
        %v694 = vld [vmem:[%s198 + $0xd70] sm:$0xff]
        %v695 = vld [vmem:[%s198 + $0xd78] sm:$0xff]
        %v696 = vld [vmem:[%s198 + $0xd80] sm:$0xff]
        %v697 = vld [vmem:[%s198 + $0xd88] sm:$0xff]
        %v698 = vld [vmem:[%s198 + $0xd90] sm:$0xff]
        %v699 = vld [vmem:[%s198 + $0xd98] sm:$0xff]
        %v700 = vld [vmem:[%s198 + $0xda0] sm:$0xff]
        %v701 = vld [vmem:[%s198 + $0xda8] sm:$0xff]
        %v702 = vld [vmem:[%s198 + $0xdb0] sm:$0xff]
        %v703 = vld [vmem:[%s198 + $0xdb8] sm:$0xff]
        %v704 = vld [vmem:[%s198 + $0xdc0] sm:$0xff]
        %v705 = vld [vmem:[%s198 + $0xdc8] sm:$0xff]
        %v706 = vld [vmem:[%s198 + $0xdd0] sm:$0xff]
        %v707 = vld [vmem:[%s198 + $0xdd8] sm:$0xff]
        %v708 = vld [vmem:[%s198 + $0xde0] sm:$0xff]
        %v709 = vld [vmem:[%s198 + $0xde8] sm:$0xff]
        %v710 = vld [vmem:[%s198 + $0xdf0] sm:$0xff]
        %v711 = vld [vmem:[%s198 + $0xdf8] sm:$0xff]
        %v712 = vld [vmem:[%s198 + $0xe00] sm:$0xff]
        %v713 = vld [vmem:[%s198 + $0xe08] sm:$0xff]
        %v714 = vld [vmem:[%s198 + $0xe10] sm:$0xff]
        %v715 = vld [vmem:[%s198 + $0xe18] sm:$0xff]
        %v716 = vld [vmem:[%s198 + $0xe20] sm:$0xff]
        %v717 = vld [vmem:[%s198 + $0xe28] sm:$0xff]
        %v718 = vld [vmem:[%s198 + $0xe30] sm:$0xff]
        %v719 = vld [vmem:[%s198 + $0xe38] sm:$0xff]
        %v720 = vld [vmem:[%s198 + $0xe40] sm:$0xff]
        %v721 = vld [vmem:[%s198 + $0xe48] sm:$0xff]
        %v722 = vld [vmem:[%s198 + $0xe50] sm:$0xff]
        %v723 = vld [vmem:[%s198 + $0xe58] sm:$0xff]
        %v724 = vld [vmem:[%s198 + $0xe60] sm:$0xff]
        %v725 = vld [vmem:[%s198 + $0xe68] sm:$0xff]
        %v726 = vld [vmem:[%s198 + $0xe70] sm:$0xff]
        %v727 = vld [vmem:[%s198 + $0xe78] sm:$0xff]
        %v728 = vld [vmem:[%s198 + $0xe80] sm:$0xff]
        %v729 = vld [vmem:[%s198 + $0xe88] sm:$0xff]
        %v730 = vld [vmem:[%s198 + $0xe90] sm:$0xff]
        %v731 = vld [vmem:[%s198 + $0xe98] sm:$0xff]
        %v732 = vld [vmem:[%s198 + $0xea0] sm:$0xff]
        %v733 = vld [vmem:[%s198 + $0xea8] sm:$0xff]
        %v734 = vld [vmem:[%s198 + $0xeb0] sm:$0xff]
        %v735 = vld [vmem:[%s198 + $0xeb8] sm:$0xff]
        %v736 = vld [vmem:[%s198 + $0xec0] sm:$0xff]
        %v737 = vld [vmem:[%s198 + $0xec8] sm:$0xff]
        %v738 = vld [vmem:[%s198 + $0xed0] sm:$0xff]
        %v739 = vld [vmem:[%s198 + $0xed8] sm:$0xff]
        %v740 = vld [vmem:[%s198 + $0xee0] sm:$0xff]
        %v741 = vld [vmem:[%s198 + $0xee8] sm:$0xff]
        %v742 = vld [vmem:[%s198 + $0xef0] sm:$0xff]
        %v743 = vld [vmem:[%s198 + $0xef8] sm:$0xff]
        %v744 = vld [vmem:[%s198 + $0xf00] sm:$0xff]
        %v745 = vld [vmem:[%s198 + $0xf08] sm:$0xff]
        %v746 = vld [vmem:[%s198 + $0xf10] sm:$0xff]
        %v747 = vld [vmem:[%s198 + $0xf18] sm:$0xff]
        %v748 = vld [vmem:[%s198 + $0xf20] sm:$0xff]
        %v749 = vld [vmem:[%s198 + $0xf28] sm:$0xff]
        %v750 = vld [vmem:[%s198 + $0xf30] sm:$0xff]
        %v751 = vld [vmem:[%s198 + $0xf38] sm:$0xff]
        %v752 = vld [vmem:[%s198 + $0xf40] sm:$0xff]
        %v753 = vld [vmem:[%s198 + $0xf48] sm:$0xff]
        %v754 = vld [vmem:[%s198 + $0xf50] sm:$0xff]
        %v755 = vld [vmem:[%s198 + $0xf58] sm:$0xff]
        %v756 = vld [vmem:[%s198 + $0xf60] sm:$0xff]
        %v757 = vld [vmem:[%s198 + $0xf68] sm:$0xff]
        %v758 = vld [vmem:[%s198 + $0xf70] sm:$0xff]
        %v759 = vld [vmem:[%s198 + $0xf78] sm:$0xff]
        %v760 = vld [vmem:[%s198 + $0xf80] sm:$0xff]
        %v761 = vld [vmem:[%s198 + $0xf88] sm:$0xff]
        %v762 = vld [vmem:[%s198 + $0xf90] sm:$0xff]
        %v763 = vld [vmem:[%s198 + $0xf98] sm:$0xff]
        %v764 = vld [vmem:[%s198 + $0xfa0] sm:$0xff]
        %v765 = vld [vmem:[%s198 + $0xfa8] sm:$0xff]
        %v766 = vld [vmem:[%s198 + $0xfb0] sm:$0xff]
        %v767 = vld [vmem:[%s198 + $0xfb8] sm:$0xff]
        %v768 = vld [vmem:[%s198 + $0xfc0] sm:$0xff]
        %v769 = vld [vmem:[%s198 + $0xfc8] sm:$0xff]
        %v770 = vld [vmem:[%s198 + $0xfd0] sm:$0xff]
        %v771 = vld [vmem:[%s198 + $0xfd8] sm:$0xff]
        %v772 = vld [vmem:[%s198 + $0xfe0] sm:$0xff]
        %v773 = vld [vmem:[%s198 + $0xfe8] sm:$0xff]
        %v774 = vld [vmem:[%s198 + $0xff0] sm:$0xff]
        %v775 = vld [vmem:[%s198 + $0xff8] sm:$0xff]
        %v776 = vld [vmem:[%s198 + $0x1000] sm:$0xff]
        %v777 = vld [vmem:[%s198 + $0x1008] sm:$0xff]
        %v778 = vld [vmem:[%s198 + $0x1010] sm:$0xff]
        %v779 = vld [vmem:[%s198 + $0x1018] sm:$0xff]
        %v780 = vld [vmem:[%s198 + $0x1020] sm:$0xff]
        %v781 = vld [vmem:[%s198 + $0x1028] sm:$0xff]
        %v782 = vld [vmem:[%s198 + $0x1030] sm:$0xff]
        %v783 = vld [vmem:[%s198 + $0x1038] sm:$0xff]
        %v784 = vld [vmem:[%s198 + $0x1040] sm:$0xff]
        %v785 = vld [vmem:[%s198 + $0x1048] sm:$0xff]
        %v786 = vld [vmem:[%s198 + $0x1050] sm:$0xff]
        %v787 = vld [vmem:[%s198 + $0x1058] sm:$0xff]
        %v788 = vld [vmem:[%s198 + $0x1060] sm:$0xff]
        %v789 = vld [vmem:[%s198 + $0x1068] sm:$0xff]
        %v790 = vld [vmem:[%s198 + $0x1070] sm:$0xff]
        %v791 = vld [vmem:[%s198 + $0x1078] sm:$0xff]
        %v792 = vld [vmem:[%s198 + $0x1080] sm:$0xff]
        %v793 = vld [vmem:[%s198 + $0x1088] sm:$0xff]
        %v794 = vld [vmem:[%s198 + $0x1090] sm:$0xff]
        %v795 = vld [vmem:[%s198 + $0x1098] sm:$0xff]
        %v796 = vld [vmem:[%s198 + $0x10a0] sm:$0xff]
        %v797 = vld [vmem:[%s198 + $0x10a8] sm:$0xff]
        %v798 = vld [vmem:[%s198 + $0x10b0] sm:$0xff]
        %v799 = vld [vmem:[%s198 + $0x10b8] sm:$0xff]
        %v800 = vld [vmem:[%s198 + $0x10c0] sm:$0xff]
        %v801 = vld [vmem:[%s198 + $0x10c8] sm:$0xff]
        %v802 = vld [vmem:[%s198 + $0x10d0] sm:$0xff]
        %v803 = vld [vmem:[%s198 + $0x10d8] sm:$0xff]
        %v804 = vld [vmem:[%s198 + $0x10e0] sm:$0xff]
        %v805 = vld [vmem:[%s198 + $0x10e8] sm:$0xff]
        %v806 = vld [vmem:[%s198 + $0x10f0] sm:$0xff]
        %v807 = vld [vmem:[%s198 + $0x10f8] sm:$0xff]
        %v808 = vld [vmem:[%s198 + $0x1100] sm:$0xff]
        %v809 = vld [vmem:[%s198 + $0x1108] sm:$0xff]
        %v810 = vld [vmem:[%s198 + $0x1110] sm:$0xff]
        %v811 = vld [vmem:[%s198 + $0x1118] sm:$0xff]
        %v812 = vld [vmem:[%s198 + $0x1120] sm:$0xff]
        %v813 = vld [vmem:[%s198 + $0x1128] sm:$0xff]
        %v814 = vld [vmem:[%s198 + $0x1130] sm:$0xff]
        %v815 = vld [vmem:[%s198 + $0x1138] sm:$0xff]
        %v816 = vld [vmem:[%s198 + $0x1140] sm:$0xff]
        %v817 = vld [vmem:[%s198 + $0x1148] sm:$0xff]
        %v818 = vld [vmem:[%s198 + $0x1150] sm:$0xff]
        %v819 = vld [vmem:[%s198 + $0x1158] sm:$0xff]
        %v820 = vld [vmem:[%s198 + $0x1160] sm:$0xff]
        %v821 = vld [vmem:[%s198 + $0x1168] sm:$0xff]
        %v822 = vld [vmem:[%s198 + $0x1170] sm:$0xff]
        %v823 = vld [vmem:[%s198 + $0x1178] sm:$0xff]
        %v824 = vld [vmem:[%s198 + $0x1180] sm:$0xff]
        %v825 = vld [vmem:[%s198 + $0x1188] sm:$0xff]
        %v826 = vld [vmem:[%s198 + $0x1190] sm:$0xff]
        %v827 = vld [vmem:[%s198 + $0x1198] sm:$0xff]
        %v828 = vld [vmem:[%s198 + $0x11a0] sm:$0xff]
        %v829 = vld [vmem:[%s198 + $0x11a8] sm:$0xff]
        %v830 = vld [vmem:[%s198 + $0x11b0] sm:$0xff]
        %v831 = vld [vmem:[%s198 + $0x11b8] sm:$0xff]
        %v832 = vld [vmem:[%s198 + $0x11c0] sm:$0xff]
        %v833 = vld [vmem:[%s198 + $0x11c8] sm:$0xff]
        %v834 = vld [vmem:[%s198 + $0x11d0] sm:$0xff]
        %v835 = vld [vmem:[%s198 + $0x11d8] sm:$0xff]
        %v836 = vld [vmem:[%s198 + $0x11e0] sm:$0xff]
        %v837 = vld [vmem:[%s198 + $0x11e8] sm:$0xff]
        %v838 = vld [vmem:[%s198 + $0x11f0] sm:$0xff]
        %v839 = vld [vmem:[%s198 + $0x11f8] sm:$0xff]
        %v840 = vld [vmem:[%s198 + $0x1200] sm:$0xff]
        %v841 = vld [vmem:[%s198 + $0x1208] sm:$0xff]
        %v842 = vld [vmem:[%s198 + $0x1210] sm:$0xff]
        %v843 = vld [vmem:[%s198 + $0x1218] sm:$0xff]
        %v844 = vld [vmem:[%s198 + $0x1220] sm:$0xff]
        %v845 = vld [vmem:[%s198 + $0x1228] sm:$0xff]
        %v846 = vld [vmem:[%s198 + $0x1230] sm:$0xff]
        %v847 = vld [vmem:[%s198 + $0x1238] sm:$0xff]
        %v848 = vld [vmem:[%s198 + $0x1240] sm:$0xff]
        %v849 = vld [vmem:[%s198 + $0x1248] sm:$0xff]
        %v850 = vld [vmem:[%s198 + $0x1250] sm:$0xff]
        %v851 = vld [vmem:[%s198 + $0x1258] sm:$0xff]
        %v852 = vld [vmem:[%s198 + $0x1260] sm:$0xff]
        %v853 = vld [vmem:[%s198 + $0x1268] sm:$0xff]
        %v854 = vld [vmem:[%s198 + $0x1270] sm:$0xff]
        %v855 = vld [vmem:[%s198 + $0x1278] sm:$0xff]
        %v856 = vld [vmem:[%s198 + $0x1280] sm:$0xff]
        %v857 = vld [vmem:[%s198 + $0x1288] sm:$0xff]
        %v858 = vld [vmem:[%s198 + $0x1290] sm:$0xff]
        %v859 = vld [vmem:[%s198 + $0x1298] sm:$0xff]
        %v860 = vld [vmem:[%s198 + $0x12a0] sm:$0xff]
        %v861 = vld [vmem:[%s198 + $0x12a8] sm:$0xff]
        %v862 = vld [vmem:[%s198 + $0x12b0] sm:$0xff]
        %v863 = vld [vmem:[%s198 + $0x12b8] sm:$0xff]
        %v864 = vld [vmem:[%s198 + $0x12c0] sm:$0xff]
        %v865 = vld [vmem:[%s198 + $0x12c8] sm:$0xff]
        %v866 = vld [vmem:[%s198 + $0x12d0] sm:$0xff]
        %v867 = vld [vmem:[%s198 + $0x12d8] sm:$0xff]
        %v868 = vld [vmem:[%s198 + $0x12e0] sm:$0xff]
        %v869 = vld [vmem:[%s198 + $0x12e8] sm:$0xff]
        %v870 = vld [vmem:[%s198 + $0x12f0] sm:$0xff]
        %v871 = vld [vmem:[%s198 + $0x12f8] sm:$0xff]
        %v872 = vld [vmem:[%s198 + $0x1300] sm:$0xff]
        %v873 = vld [vmem:[%s198 + $0x1308] sm:$0xff]
        %v874 = vld [vmem:[%s198 + $0x1310] sm:$0xff]
        %v875 = vld [vmem:[%s198 + $0x1318] sm:$0xff]
        %v876 = vld [vmem:[%s198 + $0x1320] sm:$0xff]
        %v877 = vld [vmem:[%s198 + $0x1328] sm:$0xff]
        %v878 = vld [vmem:[%s198 + $0x1330] sm:$0xff]
        %v879 = vld [vmem:[%s198 + $0x1338] sm:$0xff]
        %v880 = vld [vmem:[%s198 + $0x1340] sm:$0xff]
        %v881 = vld [vmem:[%s198 + $0x1348] sm:$0xff]
        %v882 = vld [vmem:[%s198 + $0x1350] sm:$0xff]
        %v883 = vld [vmem:[%s198 + $0x1358] sm:$0xff]
        %v884 = vld [vmem:[%s198 + $0x1360] sm:$0xff]
        %v885 = vld [vmem:[%s198 + $0x1368] sm:$0xff]
        %v886 = vld [vmem:[%s198 + $0x1370] sm:$0xff]
        %v887 = vld [vmem:[%s198 + $0x1378] sm:$0xff]
        %v888 = vld [vmem:[%s198 + $0x1380] sm:$0xff]
        %v889 = vld [vmem:[%s198 + $0x1388] sm:$0xff]
        %v890 = vld [vmem:[%s198 + $0x1390] sm:$0xff]
        %v891 = vld [vmem:[%s198 + $0x1398] sm:$0xff]
        %v892 = vld [vmem:[%s198 + $0x13a0] sm:$0xff]
        %v893 = vld [vmem:[%s198 + $0x13a8] sm:$0xff]
        %v894 = vld [vmem:[%s198 + $0x13b0] sm:$0xff]
        %v895 = vld [vmem:[%s198 + $0x13b8] sm:$0xff]
        %v896 = vld [vmem:[%s198 + $0x13c0] sm:$0xff]
        %v897 = vld [vmem:[%s198 + $0x13c8] sm:$0xff]
        %v898 = vld [vmem:[%s198 + $0x13d0] sm:$0xff]
        %v899 = vld [vmem:[%s198 + $0x13d8] sm:$0xff]
        %v900 = vld [vmem:[%s198 + $0x13e0] sm:$0xff]
        %v901 = vld [vmem:[%s198 + $0x13e8] sm:$0xff]
        %v902 = vld [vmem:[%s198 + $0x13f0] sm:$0xff]
        %v903 = vld [vmem:[%s198 + $0x13f8] sm:$0xff]
        %v904 = vld [vmem:[%s198 + $0x1400] sm:$0xff]
        %v905 = vld [vmem:[%s198 + $0x1408] sm:$0xff]
        %v906 = vld [vmem:[%s198 + $0x1410] sm:$0xff]
        %v907 = vld [vmem:[%s198 + $0x1418] sm:$0xff]
        %v908 = vld [vmem:[%s198 + $0x1420] sm:$0xff]
        %v909 = vld [vmem:[%s198 + $0x1428] sm:$0xff]
        %v910 = vld [vmem:[%s198 + $0x1430] sm:$0xff]
        %v911 = vld [vmem:[%s198 + $0x1438] sm:$0xff]
        %v912 = vld [vmem:[%s198 + $0x1440] sm:$0xff]
        %v913 = vld [vmem:[%s198 + $0x1448] sm:$0xff]
        %v914 = vld [vmem:[%s198 + $0x1450] sm:$0xff]
        %v915 = vld [vmem:[%s198 + $0x1458] sm:$0xff]
        %v916 = vld [vmem:[%s198 + $0x1460] sm:$0xff]
        %v917 = vld [vmem:[%s198 + $0x1468] sm:$0xff]
        %v918 = vld [vmem:[%s198 + $0x1470] sm:$0xff]
        %v919 = vld [vmem:[%s198 + $0x1478] sm:$0xff]
        %v920 = vld [vmem:[%s198 + $0x1480] sm:$0xff]
        %v921 = vld [vmem:[%s198 + $0x1488] sm:$0xff]
        %v922 = vld [vmem:[%s198 + $0x1490] sm:$0xff]
        %v923 = vld [vmem:[%s198 + $0x1498] sm:$0xff]
        %v924 = vld [vmem:[%s198 + $0x14a0] sm:$0xff]
        %v925 = vld [vmem:[%s198 + $0x14a8] sm:$0xff]
        %v926 = vld [vmem:[%s198 + $0x14b0] sm:$0xff]
        %v927 = vld [vmem:[%s198 + $0x14b8] sm:$0xff]
        %v928 = vld [vmem:[%s198 + $0x14c0] sm:$0xff]
        %v929 = vld [vmem:[%s198 + $0x14c8] sm:$0xff]
        %v930 = vld [vmem:[%s198 + $0x14d0] sm:$0xff]
        %v931 = vld [vmem:[%s198 + $0x14d8] sm:$0xff]
        %v932 = vld [vmem:[%s198 + $0x14e0] sm:$0xff]
        %v933 = vld [vmem:[%s198 + $0x14e8] sm:$0xff]
        %v934 = vld [vmem:[%s198 + $0x14f0] sm:$0xff]
        %v935 = vld [vmem:[%s198 + $0x14f8] sm:$0xff]
        %v936 = vld [vmem:[%s198 + $0x1500] sm:$0xff]
        %v937 = vld [vmem:[%s198 + $0x1508] sm:$0xff]
        %v938 = vld [vmem:[%s198 + $0x1510] sm:$0xff]
        %v939 = vld [vmem:[%s198 + $0x1518] sm:$0xff]
        %v940 = vld [vmem:[%s198 + $0x1520] sm:$0xff]
        %v941 = vld [vmem:[%s198 + $0x1528] sm:$0xff]
        %v942 = vld [vmem:[%s198 + $0x1530] sm:$0xff]
        %v943 = vld [vmem:[%s198 + $0x1538] sm:$0xff]
        %v944 = vld [vmem:[%s198 + $0x1540] sm:$0xff]
        %v945 = vld [vmem:[%s198 + $0x1548] sm:$0xff]
        %v946 = vld [vmem:[%s198 + $0x1550] sm:$0xff]
        %v947 = vld [vmem:[%s198 + $0x1558] sm:$0xff]
        %v948 = vld [vmem:[%s198 + $0x1560] sm:$0xff]
        %v949 = vld [vmem:[%s198 + $0x1568] sm:$0xff]
        %v950 = vld [vmem:[%s198 + $0x1570] sm:$0xff]
        %v951 = vld [vmem:[%s198 + $0x1578] sm:$0xff]
        %v952 = vld [vmem:[%s198 + $0x1580] sm:$0xff]
        %v953 = vld [vmem:[%s198 + $0x1588] sm:$0xff]
        %v954 = vld [vmem:[%s198 + $0x1590] sm:$0xff]
        %v955 = vld [vmem:[%s198 + $0x1598] sm:$0xff]
        %v956 = vld [vmem:[%s198 + $0x15a0] sm:$0xff]
        %v957 = vld [vmem:[%s198 + $0x15a8] sm:$0xff]
        %v958 = vld [vmem:[%s198 + $0x15b0] sm:$0xff]
        %v959 = vld [vmem:[%s198 + $0x15b8] sm:$0xff]
        %v960 = vld [vmem:[%s198 + $0x15c0] sm:$0xff]
        %v961 = vld [vmem:[%s198 + $0x15c8] sm:$0xff]
        %v962 = vld [vmem:[%s198 + $0x15d0] sm:$0xff]
        %v963 = vld [vmem:[%s198 + $0x15d8] sm:$0xff]
        %v964 = vld [vmem:[%s198 + $0x15e0] sm:$0xff]
        %v965 = vld [vmem:[%s198 + $0x15e8] sm:$0xff]
        %v966 = vld [vmem:[%s198 + $0x15f0] sm:$0xff]
        %v967 = vld [vmem:[%s198 + $0x15f8] sm:$0xff]
        %v968 = vld [vmem:[%s198 + $0x1600] sm:$0xff]
        %v969 = vld [vmem:[%s198 + $0x1608] sm:$0xff]
        %v970 = vld [vmem:[%s198 + $0x1610] sm:$0xff]
        %v971 = vld [vmem:[%s198 + $0x1618] sm:$0xff]
        %v972 = vld [vmem:[%s198 + $0x1620] sm:$0xff]
        %v973 = vld [vmem:[%s198 + $0x1628] sm:$0xff]
        %v974 = vld [vmem:[%s198 + $0x1630] sm:$0xff]
        %v975 = vld [vmem:[%s198 + $0x1638] sm:$0xff]
        %v976 = vld [vmem:[%s198 + $0x1640] sm:$0xff]
        %v977 = vld [vmem:[%s198 + $0x1648] sm:$0xff]
        %v978 = vld [vmem:[%s198 + $0x1650] sm:$0xff]
        %v979 = vld [vmem:[%s198 + $0x1658] sm:$0xff]
        %v980 = vld [vmem:[%s198 + $0x1660] sm:$0xff]
        %v981 = vld [vmem:[%s198 + $0x1668] sm:$0xff]
        %v982 = vld [vmem:[%s198 + $0x1670] sm:$0xff]
        %v983 = vld [vmem:[%s198 + $0x1678] sm:$0xff]
        %v984 = vld [vmem:[%s198 + $0x1680] sm:$0xff]
        %v985 = vld [vmem:[%s198 + $0x1688] sm:$0xff]
        %v986 = vld [vmem:[%s198 + $0x1690] sm:$0xff]
        %v987 = vld [vmem:[%s198 + $0x1698] sm:$0xff]
        %v988 = vld [vmem:[%s198 + $0x16a0] sm:$0xff]
        %v989 = vld [vmem:[%s198 + $0x16a8] sm:$0xff]
        %v990 = vld [vmem:[%s198 + $0x16b0] sm:$0xff]
        %v991 = vld [vmem:[%s198 + $0x16b8] sm:$0xff]
        %v992 = vld [vmem:[%s198 + $0x16c0] sm:$0xff]
        %v993 = vld [vmem:[%s198 + $0x16c8] sm:$0xff]
        %v994 = vld [vmem:[%s198 + $0x16d0] sm:$0xff]
        %v995 = vld [vmem:[%s198 + $0x16d8] sm:$0xff]
        %v996 = vld [vmem:[%s198 + $0x16e0] sm:$0xff]
        %v997 = vld [vmem:[%s198 + $0x16e8] sm:$0xff]
        %v998 = vld [vmem:[%s198 + $0x16f0] sm:$0xff]
        %v999 = vld [vmem:[%s198 + $0x16f8] sm:$0xff]
        %v1000 = vld [vmem:[%s198 + $0x1700] sm:$0xff]
        %v1001 = vld [vmem:[%s198 + $0x1708] sm:$0xff]
        %v1002 = vld [vmem:[%s198 + $0x1710] sm:$0xff]
        %v1003 = vld [vmem:[%s198 + $0x1718] sm:$0xff]
        %v1004 = vld [vmem:[%s198 + $0x1720] sm:$0xff]
        %v1005 = vld [vmem:[%s198 + $0x1728] sm:$0xff]
        %v1006 = vld [vmem:[%s198 + $0x1730] sm:$0xff]
        %v1007 = vld [vmem:[%s198 + $0x1738] sm:$0xff]
        %v1008 = vld [vmem:[%s198 + $0x1740] sm:$0xff]
        %v1009 = vld [vmem:[%s198 + $0x1748] sm:$0xff]
        %v1010 = vld [vmem:[%s198 + $0x1750] sm:$0xff]
        %v1011 = vld [vmem:[%s198 + $0x1758] sm:$0xff]
        %v1012 = vld [vmem:[%s198 + $0x1760] sm:$0xff]
        %v1013 = vld [vmem:[%s198 + $0x1768] sm:$0xff]
        %v1014 = vld [vmem:[%s198 + $0x1770] sm:$0xff]
        %v1015 = vld [vmem:[%s198 + $0x1778] sm:$0xff]
        %v1016 = vld [vmem:[%s198 + $0x1780] sm:$0xff]
        %v1017 = vld [vmem:[%s198 + $0x1788] sm:$0xff]
        %v1018 = vld [vmem:[%s198 + $0x1790] sm:$0xff]
        %v1019 = vld [vmem:[%s198 + $0x1798] sm:$0xff]
        %v1020 = vld [vmem:[%s198 + $0x17a0] sm:$0xff]
        %v1021 = vld [vmem:[%s198 + $0x17a8] sm:$0xff]
        %v1022 = vld [vmem:[%s198 + $0x17b0] sm:$0xff]
        %v1023 = vld [vmem:[%s198 + $0x17b8] sm:$0xff]
        %v1024 = vld [vmem:[%s198 + $0x17c0] sm:$0xff]
        %v1025 = vld [vmem:[%s198 + $0x17c8] sm:$0xff]
        %v1026 = vld [vmem:[%s198 + $0x17d0] sm:$0xff]
        %v1027 = vld [vmem:[%s198 + $0x17d8] sm:$0xff]
        %v1028 = vld [vmem:[%s198 + $0x17e0] sm:$0xff]
        %v1029 = vld [vmem:[%s198 + $0x17e8] sm:$0xff]
        %v1030 = vld [vmem:[%s198 + $0x17f0] sm:$0xff]
        %v1031 = vld [vmem:[%s198 + $0x17f8] sm:$0xff]
        %v1032 = vld [vmem:[%s198 + $0x1800] sm:$0xff]
        %v1033 = vld [vmem:[%s198 + $0x1808] sm:$0xff]
        %v1034 = vld [vmem:[%s198 + $0x1810] sm:$0xff]
        %v1035 = vld [vmem:[%s198 + $0x1818] sm:$0xff]
        %v1036 = vld [vmem:[%s198 + $0x1820] sm:$0xff]
        %v1037 = vld [vmem:[%s198 + $0x1828] sm:$0xff]
        %v1038 = vld [vmem:[%s198 + $0x1830] sm:$0xff]
        %v1039 = vld [vmem:[%s198 + $0x1838] sm:$0xff]
        %v1040 = vld [vmem:[%s198 + $0x1840] sm:$0xff]
        %v1041 = vld [vmem:[%s198 + $0x1848] sm:$0xff]
        %v1042 = vld [vmem:[%s198 + $0x1850] sm:$0xff]
        %v1043 = vld [vmem:[%s198 + $0x1858] sm:$0xff]
        %v1044 = vld [vmem:[%s198 + $0x1860] sm:$0xff]
        %v1045 = vld [vmem:[%s198 + $0x1868] sm:$0xff]
        %v1046 = vld [vmem:[%s198 + $0x1870] sm:$0xff]
        %v1047 = vld [vmem:[%s198 + $0x1878] sm:$0xff]
        %v1048 = vld [vmem:[%s198 + $0x1880] sm:$0xff]
        %v1049 = vld [vmem:[%s198 + $0x1888] sm:$0xff]
        %v1050 = vld [vmem:[%s198 + $0x1890] sm:$0xff]
        %v1051 = vld [vmem:[%s198 + $0x1898] sm:$0xff]
        %v1052 = vld [vmem:[%s198 + $0x18a0] sm:$0xff]
        %v1053 = vld [vmem:[%s198 + $0x18a8] sm:$0xff]
        %v1054 = vld [vmem:[%s198 + $0x18b0] sm:$0xff]
        %v1055 = vld [vmem:[%s198 + $0x18b8] sm:$0xff]
        %v1056 = vld [vmem:[%s198 + $0x18c0] sm:$0xff]
        %v1057 = vld [vmem:[%s198 + $0x18c8] sm:$0xff]
        %v1058 = vld [vmem:[%s198 + $0x18d0] sm:$0xff]
        %v1059 = vld [vmem:[%s198 + $0x18d8] sm:$0xff]
        %v1060 = vld [vmem:[%s198 + $0x18e0] sm:$0xff]
        %v1061 = vld [vmem:[%s198 + $0x18e8] sm:$0xff]
        %v1062 = vld [vmem:[%s198 + $0x18f0] sm:$0xff]
        %v1063 = vld [vmem:[%s198 + $0x18f8] sm:$0xff]
        %v1064 = vld [vmem:[%s198 + $0x1900] sm:$0xff]
        %v1065 = vld [vmem:[%s198 + $0x1908] sm:$0xff]
        %v1066 = vld [vmem:[%s198 + $0x1910] sm:$0xff]
        %v1067 = vld [vmem:[%s198 + $0x1918] sm:$0xff]
        %v1068 = vld [vmem:[%s198 + $0x1920] sm:$0xff]
        %v1069 = vld [vmem:[%s198 + $0x1928] sm:$0xff]
        %v1070 = vld [vmem:[%s198 + $0x1930] sm:$0xff]
        %v1071 = vld [vmem:[%s198 + $0x1938] sm:$0xff]
        %v1072 = vld [vmem:[%s198 + $0x1940] sm:$0xff]
        %v1073 = vld [vmem:[%s198 + $0x1948] sm:$0xff]
        %v1074 = vld [vmem:[%s198 + $0x1950] sm:$0xff]
        %v1075 = vld [vmem:[%s198 + $0x1958] sm:$0xff]
        %v1076 = vld [vmem:[%s198 + $0x1960] sm:$0xff]
        %v1077 = vld [vmem:[%s198 + $0x1968] sm:$0xff]
        %v1078 = vld [vmem:[%s198 + $0x1970] sm:$0xff]
        %v1079 = vld [vmem:[%s198 + $0x1978] sm:$0xff]
        %v1080 = vld [vmem:[%s198 + $0x1980] sm:$0xff]
        %v1081 = vld [vmem:[%s198 + $0x1988] sm:$0xff]
        %v1082 = vld [vmem:[%s198 + $0x1990] sm:$0xff]
        %v1083 = vld [vmem:[%s198 + $0x1998] sm:$0xff]
        %v1084 = vld [vmem:[%s198 + $0x19a0] sm:$0xff]
        %v1085 = vld [vmem:[%s198 + $0x19a8] sm:$0xff]
        %v1086 = vld [vmem:[%s198 + $0x19b0] sm:$0xff]
        %v1087 = vld [vmem:[%s198 + $0x19b8] sm:$0xff]
        %v1088 = vld [vmem:[%s198 + $0x19c0] sm:$0xff]
        %v1089 = vld [vmem:[%s198 + $0x19c8] sm:$0xff]
        %v1090 = vld [vmem:[%s198 + $0x19d0] sm:$0xff]
        %v1091 = vld [vmem:[%s198 + $0x19d8] sm:$0xff]
        %v1092 = vld [vmem:[%s198 + $0x19e0] sm:$0xff]
        %v1093 = vld [vmem:[%s198 + $0x19e8] sm:$0xff]
        %v1094 = vld [vmem:[%s198 + $0x19f0] sm:$0xff]
        %v1095 = vld [vmem:[%s198 + $0x19f8] sm:$0xff]
        %v1096 = vld [vmem:[%s198 + $0x1a00] sm:$0xff]
        %v1097 = vld [vmem:[%s198 + $0x1a08] sm:$0xff]
        %v1098 = vld [vmem:[%s198 + $0x1a10] sm:$0xff]
        %v1099 = vld [vmem:[%s198 + $0x1a18] sm:$0xff]
        %v1100 = vld [vmem:[%s198 + $0x1a20] sm:$0xff]
        %v1101 = vld [vmem:[%s198 + $0x1a28] sm:$0xff]
        %v1102 = vld [vmem:[%s198 + $0x1a30] sm:$0xff]
        %v1103 = vld [vmem:[%s198 + $0x1a38] sm:$0xff]
        %v1104 = vld [vmem:[%s198 + $0x1a40] sm:$0xff]
        %v1105 = vld [vmem:[%s198 + $0x1a48] sm:$0xff]
        %v1106 = vld [vmem:[%s198 + $0x1a50] sm:$0xff]
        %v1107 = vld [vmem:[%s198 + $0x1a58] sm:$0xff]
        %v1108 = vld [vmem:[%s198 + $0x1a60] sm:$0xff]
        %v1109 = vld [vmem:[%s198 + $0x1a68] sm:$0xff]
        %v1110 = vld [vmem:[%s198 + $0x1a70] sm:$0xff]
        %v1111 = vld [vmem:[%s198 + $0x1a78] sm:$0xff]
        %v1112 = vld [vmem:[%s198 + $0x1a80] sm:$0xff]
        %v1113 = vld [vmem:[%s198 + $0x1a88] sm:$0xff]
        %v1114 = vld [vmem:[%s198 + $0x1a90] sm:$0xff]
        %v1115 = vld [vmem:[%s198 + $0x1a98] sm:$0xff]
        %v1116 = vld [vmem:[%s198 + $0x1aa0] sm:$0xff]
        %v1117 = vld [vmem:[%s198 + $0x1aa8] sm:$0xff]
        %v1118 = vld [vmem:[%s198 + $0x1ab0] sm:$0xff]
        %v1119 = vld [vmem:[%s198 + $0x1ab8] sm:$0xff]
        %v1120 = vld [vmem:[%s198 + $0x1ac0] sm:$0xff]
        %v1121 = vld [vmem:[%s198 + $0x1ac8] sm:$0xff]
        %v1122 = vld [vmem:[%s198 + $0x1ad0] sm:$0xff]
        %v1123 = vld [vmem:[%s198 + $0x1ad8] sm:$0xff]
        %v1124 = vld [vmem:[%s198 + $0x1ae0] sm:$0xff]
        %v1125 = vld [vmem:[%s198 + $0x1ae8] sm:$0xff]
        %v1126 = vld [vmem:[%s198 + $0x1af0] sm:$0xff]
        %v1127 = vld [vmem:[%s198 + $0x1af8] sm:$0xff]
        %v1128 = vld [vmem:[%s198 + $0x1b00] sm:$0xff]
        %v1129 = vld [vmem:[%s198 + $0x1b08] sm:$0xff]
        %v1130 = vld [vmem:[%s198 + $0x1b10] sm:$0xff]
        %v1131 = vld [vmem:[%s198 + $0x1b18] sm:$0xff]
        %v1132 = vld [vmem:[%s198 + $0x1b20] sm:$0xff]
        %v1133 = vld [vmem:[%s198 + $0x1b28] sm:$0xff]
        %v1134 = vld [vmem:[%s198 + $0x1b30] sm:$0xff]
        %v1135 = vld [vmem:[%s198 + $0x1b38] sm:$0xff]
        %v1136 = vld [vmem:[%s198 + $0x1b40] sm:$0xff]
        %v1137 = vld [vmem:[%s198 + $0x1b48] sm:$0xff]
        %v1138 = vld [vmem:[%s198 + $0x1b50] sm:$0xff]
        %v1139 = vld [vmem:[%s198 + $0x1b58] sm:$0xff]
        %v1140 = vld [vmem:[%s198 + $0x1b60] sm:$0xff]
        %v1141 = vld [vmem:[%s198 + $0x1b68] sm:$0xff]
        %v1142 = vld [vmem:[%s198 + $0x1b70] sm:$0xff]
        %v1143 = vld [vmem:[%s198 + $0x1b78] sm:$0xff]
        %v1144 = vld [vmem:[%s198 + $0x1b80] sm:$0xff]
        %v1145 = vld [vmem:[%s198 + $0x1b88] sm:$0xff]
        %v1146 = vld [vmem:[%s198 + $0x1b90] sm:$0xff]
        %v1147 = vld [vmem:[%s198 + $0x1b98] sm:$0xff]
        %v1148 = vld [vmem:[%s198 + $0x1ba0] sm:$0xff]
        %v1149 = vld [vmem:[%s198 + $0x1ba8] sm:$0xff]
        %v1150 = vld [vmem:[%s198 + $0x1bb0] sm:$0xff]
        %v1151 = vld [vmem:[%s198 + $0x1bb8] sm:$0xff]
        %v1152 = vld [vmem:[%s198 + $0x1bc0] sm:$0xff]
        %v1153 = vld [vmem:[%s198 + $0x1bc8] sm:$0xff]
        %v1154 = vld [vmem:[%s198 + $0x1bd0] sm:$0xff]
        %v1155 = vld [vmem:[%s198 + $0x1bd8] sm:$0xff]
        %v1156 = vld [vmem:[%s198 + $0x1be0] sm:$0xff]
        %v1157 = vld [vmem:[%s198 + $0x1be8] sm:$0xff]
        %v1158 = vld [vmem:[%s198 + $0x1bf0] sm:$0xff]
        %v1159 = vld [vmem:[%s198 + $0x1bf8] sm:$0xff]
        %v1160 = vld [vmem:[%s198 + $0x1c00] sm:$0xff]
        %v1161 = vld [vmem:[%s198 + $0x1c08] sm:$0xff]
        %v1162 = vld [vmem:[%s198 + $0x1c10] sm:$0xff]
        %v1163 = vld [vmem:[%s198 + $0x1c18] sm:$0xff]
        %v1164 = vld [vmem:[%s198 + $0x1c20] sm:$0xff]
        %v1165 = vld [vmem:[%s198 + $0x1c28] sm:$0xff]
        %v1166 = vld [vmem:[%s198 + $0x1c30] sm:$0xff]
        %v1167 = vld [vmem:[%s198 + $0x1c38] sm:$0xff]
        %v1168 = vld [vmem:[%s198 + $0x1c40] sm:$0xff]
        %v1169 = vld [vmem:[%s198 + $0x1c48] sm:$0xff]
        %v1170 = vld [vmem:[%s198 + $0x1c50] sm:$0xff]
        %v1171 = vld [vmem:[%s198 + $0x1c58] sm:$0xff]
        %v1172 = vld [vmem:[%s198 + $0x1c60] sm:$0xff]
        %v1173 = vld [vmem:[%s198 + $0x1c68] sm:$0xff]
        %v1174 = vld [vmem:[%s198 + $0x1c70] sm:$0xff]
        %v1175 = vld [vmem:[%s198 + $0x1c78] sm:$0xff]
        %v1176 = vld [vmem:[%s198 + $0x1c80] sm:$0xff]
        %v1177 = vld [vmem:[%s198 + $0x1c88] sm:$0xff]
        %v1178 = vld [vmem:[%s198 + $0x1c90] sm:$0xff]
        %v1179 = vld [vmem:[%s198 + $0x1c98] sm:$0xff]
        %v1180 = vld [vmem:[%s198 + $0x1ca0] sm:$0xff]
        %v1181 = vld [vmem:[%s198 + $0x1ca8] sm:$0xff]
        %v1182 = vld [vmem:[%s198 + $0x1cb0] sm:$0xff]
        %v1183 = vld [vmem:[%s198 + $0x1cb8] sm:$0xff]
        %v1184 = vld [vmem:[%s198 + $0x1cc0] sm:$0xff]
        %v1185 = vld [vmem:[%s198 + $0x1cc8] sm:$0xff]
        %v1186 = vld [vmem:[%s198 + $0x1cd0] sm:$0xff]
        %v1187 = vld [vmem:[%s198 + $0x1cd8] sm:$0xff]
        %v1188 = vld [vmem:[%s198 + $0x1ce0] sm:$0xff]
        %v1189 = vld [vmem:[%s198 + $0x1ce8] sm:$0xff]
        %v1190 = vld [vmem:[%s198 + $0x1cf0] sm:$0xff]
        %v1191 = vld [vmem:[%s198 + $0x1cf8] sm:$0xff]
        %v1192 = vld [vmem:[%s198 + $0x1d00] sm:$0xff]
        %v1193 = vld [vmem:[%s198 + $0x1d08] sm:$0xff]
        %v1194 = vld [vmem:[%s198 + $0x1d10] sm:$0xff]
        %v1195 = vld [vmem:[%s198 + $0x1d18] sm:$0xff]
        %v1196 = vld [vmem:[%s198 + $0x1d20] sm:$0xff]
        %v1197 = vld [vmem:[%s198 + $0x1d28] sm:$0xff]
        %v1198 = vld [vmem:[%s198 + $0x1d30] sm:$0xff]
        %v1199 = vld [vmem:[%s198 + $0x1d38] sm:$0xff]
        %v1200 = vld [vmem:[%s198 + $0x1d40] sm:$0xff]
        %v1201 = vld [vmem:[%s198 + $0x1d48] sm:$0xff]
        %v1202 = vld [vmem:[%s198 + $0x1d50] sm:$0xff]
        %v1203 = vld [vmem:[%s198 + $0x1d58] sm:$0xff]
        %v1204 = vld [vmem:[%s198 + $0x1d60] sm:$0xff]
        %v1205 = vld [vmem:[%s198 + $0x1d68] sm:$0xff]
        %v1206 = vld [vmem:[%s198 + $0x1d70] sm:$0xff]
        %v1207 = vld [vmem:[%s198 + $0x1d78] sm:$0xff]
        %v1208 = vld [vmem:[%s198 + $0x1d80] sm:$0xff]
        %v1209 = vld [vmem:[%s198 + $0x1d88] sm:$0xff]
        %v1210 = vld [vmem:[%s198 + $0x1d90] sm:$0xff]
        %v1211 = vld [vmem:[%s198 + $0x1d98] sm:$0xff]
        %v1212 = vld [vmem:[%s198 + $0x1da0] sm:$0xff]
        %v1213 = vld [vmem:[%s198 + $0x1da8] sm:$0xff]
        %v1214 = vld [vmem:[%s198 + $0x1db0] sm:$0xff]
        %v1215 = vld [vmem:[%s198 + $0x1db8] sm:$0xff]
        %v1216 = vld [vmem:[%s198 + $0x1dc0] sm:$0xff]
        %v1217 = vld [vmem:[%s198 + $0x1dc8] sm:$0xff]
        %v1218 = vld [vmem:[%s198 + $0x1dd0] sm:$0xff]
        %v1219 = vld [vmem:[%s198 + $0x1dd8] sm:$0xff]
        %v1220 = vld [vmem:[%s198 + $0x1de0] sm:$0xff]
        %v1221 = vld [vmem:[%s198 + $0x1de8] sm:$0xff]
        %v1222 = vld [vmem:[%s198 + $0x1df0] sm:$0xff]
        %v1223 = vld [vmem:[%s198 + $0x1df8] sm:$0xff]
        %v1224 = vld [vmem:[%s198 + $0x1e00] sm:$0xff]
        %v1225 = vld [vmem:[%s198 + $0x1e08] sm:$0xff]
        %v1226 = vld [vmem:[%s198 + $0x1e10] sm:$0xff]
        %v1227 = vld [vmem:[%s198 + $0x1e18] sm:$0xff]
        %v1228 = vld [vmem:[%s198 + $0x1e20] sm:$0xff]
        %v1229 = vld [vmem:[%s198 + $0x1e28] sm:$0xff]
        %v1230 = vld [vmem:[%s198 + $0x1e30] sm:$0xff]
        %v1231 = vld [vmem:[%s198 + $0x1e38] sm:$0xff]
        %v1232 = vld [vmem:[%s198 + $0x1e40] sm:$0xff]
        %v1233 = vld [vmem:[%s198 + $0x1e48] sm:$0xff]
        %v1234 = vld [vmem:[%s198 + $0x1e50] sm:$0xff]
        %v1235 = vld [vmem:[%s198 + $0x1e58] sm:$0xff]
        %v1236 = vld [vmem:[%s198 + $0x1e60] sm:$0xff]
        %v1237 = vld [vmem:[%s198 + $0x1e68] sm:$0xff]
        %v1238 = vld [vmem:[%s198 + $0x1e70] sm:$0xff]
        %v1239 = vld [vmem:[%s198 + $0x1e78] sm:$0xff]
        %v1240 = vld [vmem:[%s198 + $0x1e80] sm:$0xff]
        %v1241 = vld [vmem:[%s198 + $0x1e88] sm:$0xff]
        %v1242 = vld [vmem:[%s198 + $0x1e90] sm:$0xff]
        %v1243 = vld [vmem:[%s198 + $0x1e98] sm:$0xff]
        %v1244 = vld [vmem:[%s198 + $0x1ea0] sm:$0xff]
        %v1245 = vld [vmem:[%s198 + $0x1ea8] sm:$0xff]
        %v1246 = vld [vmem:[%s198 + $0x1eb0] sm:$0xff]
        %v1247 = vld [vmem:[%s198 + $0x1eb8] sm:$0xff]
        %v1248 = vld [vmem:[%s198 + $0x1ec0] sm:$0xff]
        %v1249 = vld [vmem:[%s198 + $0x1ec8] sm:$0xff]
        %v1250 = vld [vmem:[%s198 + $0x1ed0] sm:$0xff]
        %v1251 = vld [vmem:[%s198 + $0x1ed8] sm:$0xff]
        %v1252 = vld [vmem:[%s198 + $0x1ee0] sm:$0xff]
        %v1253 = vld [vmem:[%s198 + $0x1ee8] sm:$0xff]
        %v1254 = vld [vmem:[%s198 + $0x1ef0] sm:$0xff]
        %v1255 = vld [vmem:[%s198 + $0x1ef8] sm:$0xff]
        %v1256 = vld [vmem:[%s198 + $0x1f00] sm:$0xff]
        %v1257 = vld [vmem:[%s198 + $0x1f08] sm:$0xff]
        %v1258 = vld [vmem:[%s198 + $0x1f10] sm:$0xff]
        %v1259 = vld [vmem:[%s198 + $0x1f18] sm:$0xff]
        %v1260 = vld [vmem:[%s198 + $0x1f20] sm:$0xff]
        %v1261 = vld [vmem:[%s198 + $0x1f28] sm:$0xff]
        %v1262 = vld [vmem:[%s198 + $0x1f30] sm:$0xff]
        %v1263 = vld [vmem:[%s198 + $0x1f38] sm:$0xff]
        %v1264 = vld [vmem:[%s198 + $0x1f40] sm:$0xff]
        %v1265 = vld [vmem:[%s198 + $0x1f48] sm:$0xff]
        %v1266 = vld [vmem:[%s198 + $0x1f50] sm:$0xff]
        %v1267 = vld [vmem:[%s198 + $0x1f58] sm:$0xff]
        %v1268 = vld [vmem:[%s198 + $0x1f60] sm:$0xff]
        %v1269 = vld [vmem:[%s198 + $0x1f68] sm:$0xff]
        %v1270 = vld [vmem:[%s198 + $0x1f70] sm:$0xff]
        %v1271 = vld [vmem:[%s198 + $0x1f78] sm:$0xff]
        %v1272 = vld [vmem:[%s198 + $0x1f80] sm:$0xff]
        %v1273 = vld [vmem:[%s198 + $0x1f88] sm:$0xff]
        %v1274 = vld [vmem:[%s198 + $0x1f90] sm:$0xff]
        %v1275 = vld [vmem:[%s198 + $0x1f98] sm:$0xff]
        %v1276 = vld [vmem:[%s198 + $0x1fa0] sm:$0xff]
        %v1277 = vld [vmem:[%s198 + $0x1fa8] sm:$0xff]
        %v1278 = vld [vmem:[%s198 + $0x1fb0] sm:$0xff]
        %v1279 = vld [vmem:[%s198 + $0x1fb8] sm:$0xff]
        %v1280 = vld [vmem:[%s198 + $0x1fc0] sm:$0xff]
        %v1281 = vld [vmem:[%s198 + $0x1fc8] sm:$0xff]
        %v1282 = vld [vmem:[%s198 + $0x1fd0] sm:$0xff]
        %v1283 = vld [vmem:[%s198 + $0x1fd8] sm:$0xff]
        %v1284 = vld [vmem:[%s198 + $0x1fe0] sm:$0xff]
        %v1285 = vld [vmem:[%s198 + $0x1fe8] sm:$0xff]
        %v1286 = vld [vmem:[%s198 + $0x1ff0] sm:$0xff]
        %v1287 = vld [vmem:[%s198 + $0x1ff8] sm:$0xff]
        %v1304 = vcombine.high %v248, %v248
        %v1306 = vunpack.c.l.s4 1983009808
        %v1307 = vunpack.c.0.s8 %v1306
        %v1308 = vlaneseq
        %v1309 = vshrl.u32 %v1308, 7
        %v1310 = vsub.s32 %v1307, %v1309
        %v1311 = vrot.slane %v248, %v1310
        %v1313 = vunpack.c.l.s4 1983009808
        %v1314 = vunpack.c.0.s8 %v1313
        %v1315 = vlaneseq
        %v1316 = vshrl.u32 %v1315, 7
        %v1317 = vsub.s32 %v1314, %v1316
        %v1318 = vrot.slane %v1304, %v1317
        %v1319 = vcombine.high %v1311, %v1311
        %v1320 = vcombine.high %v1318, %v1318
        %v1321 = vcombine.high %v249, %v249
        %v1323 = vunpack.c.l.s4 1983009808
        %v1324 = vunpack.c.0.s8 %v1323
        %v1325 = vlaneseq
        %v1326 = vshrl.u32 %v1325, 7
        %v1327 = vsub.s32 %v1324, %v1326
        %v1328 = vrot.slane %v249, %v1327
        %v1330 = vunpack.c.l.s4 1983009808
        %v1331 = vunpack.c.0.s8 %v1330
        %v1332 = vlaneseq
        %v1333 = vshrl.u32 %v1332, 7
        %v1334 = vsub.s32 %v1331, %v1333
        %v1335 = vrot.slane %v1321, %v1334
        %v1336 = vcombine.high %v1328, %v1328
        %v1337 = vcombine.high %v1335, %v1335
        %v1338 = vcombine.high %v250, %v250
        %v1340 = vunpack.c.l.s4 1983009808
        %v1341 = vunpack.c.0.s8 %v1340
        %v1342 = vlaneseq
        %v1343 = vshrl.u32 %v1342, 7
        %v1344 = vsub.s32 %v1341, %v1343
        %v1345 = vrot.slane %v250, %v1344
        %v1347 = vunpack.c.l.s4 1983009808
        %v1348 = vunpack.c.0.s8 %v1347
        %v1349 = vlaneseq
        %v1350 = vshrl.u32 %v1349, 7
        %v1351 = vsub.s32 %v1348, %v1350
        %v1352 = vrot.slane %v1338, %v1351
        %v1353 = vcombine.high %v1345, %v1345
        %v1354 = vcombine.high %v1352, %v1352
        %v1355 = vcombine.high %v251, %v251
        %v1357 = vunpack.c.l.s4 1983009808
        %v1358 = vunpack.c.0.s8 %v1357
        %v1359 = vlaneseq
        %v1360 = vshrl.u32 %v1359, 7
        %v1361 = vsub.s32 %v1358, %v1360
        %v1362 = vrot.slane %v251, %v1361
        %v1364 = vunpack.c.l.s4 1983009808
        %v1365 = vunpack.c.0.s8 %v1364
        %v1366 = vlaneseq
        %v1367 = vshrl.u32 %v1366, 7
        %v1368 = vsub.s32 %v1365, %v1367
        %v1369 = vrot.slane %v1355, %v1368
        %v1370 = vcombine.high %v1362, %v1362
        %v1371 = vcombine.high %v1369, %v1369
        %v1372 = vcombine.high %v252, %v252
        %v1374 = vunpack.c.l.s4 1983009808
        %v1375 = vunpack.c.0.s8 %v1374
        %v1376 = vlaneseq
        %v1377 = vshrl.u32 %v1376, 7
        %v1378 = vsub.s32 %v1375, %v1377
        %v1379 = vrot.slane %v252, %v1378
        %v1381 = vunpack.c.l.s4 1983009808
        %v1382 = vunpack.c.0.s8 %v1381
        %v1383 = vlaneseq
        %v1384 = vshrl.u32 %v1383, 7
        %v1385 = vsub.s32 %v1382, %v1384
        %v1386 = vrot.slane %v1372, %v1385
        %v1387 = vcombine.high %v1379, %v1379
        %v1388 = vcombine.high %v1386, %v1386
        %v1389 = vcombine.high %v253, %v253
        %v1391 = vunpack.c.l.s4 1983009808
        %v1392 = vunpack.c.0.s8 %v1391
        %v1393 = vlaneseq
        %v1394 = vshrl.u32 %v1393, 7
        %v1395 = vsub.s32 %v1392, %v1394
        %v1396 = vrot.slane %v253, %v1395
        %v1398 = vunpack.c.l.s4 1983009808
        %v1399 = vunpack.c.0.s8 %v1398
        %v1400 = vlaneseq
        %v1401 = vshrl.u32 %v1400, 7
        %v1402 = vsub.s32 %v1399, %v1401
        %v1403 = vrot.slane %v1389, %v1402
        %v1404 = vcombine.high %v1396, %v1396
        %v1405 = vcombine.high %v1403, %v1403
        %v1406 = vcombine.high %v254, %v254
        %v1408 = vunpack.c.l.s4 1983009808
        %v1409 = vunpack.c.0.s8 %v1408
        %v1410 = vlaneseq
        %v1411 = vshrl.u32 %v1410, 7
        %v1412 = vsub.s32 %v1409, %v1411
        %v1413 = vrot.slane %v254, %v1412
        %v1415 = vunpack.c.l.s4 1983009808
        %v1416 = vunpack.c.0.s8 %v1415
        %v1417 = vlaneseq
        %v1418 = vshrl.u32 %v1417, 7
        %v1419 = vsub.s32 %v1416, %v1418
        %v1420 = vrot.slane %v1406, %v1419
        %v1421 = vcombine.high %v1413, %v1413
        %v1422 = vcombine.high %v1420, %v1420
        %v1423 = vcombine.high %v255, %v255
        %v1425 = vunpack.c.l.s4 1983009808
        %v1426 = vunpack.c.0.s8 %v1425
        %v1427 = vlaneseq
        %v1428 = vshrl.u32 %v1427, 7
        %v1429 = vsub.s32 %v1426, %v1428
        %v1430 = vrot.slane %v255, %v1429
        %v1432 = vunpack.c.l.s4 1983009808
        %v1433 = vunpack.c.0.s8 %v1432
        %v1434 = vlaneseq
        %v1435 = vshrl.u32 %v1434, 7
        %v1436 = vsub.s32 %v1433, %v1435
        %v1437 = vrot.slane %v1423, %v1436
        %v1438 = vcombine.high %v1430, %v1430
        %v1439 = vcombine.high %v1437, %v1437
        %v1440 = vcombine.high %v256, %v256
        %v1442 = vunpack.c.l.s4 1983009808
        %v1443 = vunpack.c.0.s8 %v1442
        %v1444 = vlaneseq
        %v1445 = vshrl.u32 %v1444, 7
        %v1446 = vsub.s32 %v1443, %v1445
        %v1447 = vrot.slane %v256, %v1446
        %v1449 = vunpack.c.l.s4 1983009808
        %v1450 = vunpack.c.0.s8 %v1449
        %v1451 = vlaneseq
        %v1452 = vshrl.u32 %v1451, 7
        %v1453 = vsub.s32 %v1450, %v1452
        %v1454 = vrot.slane %v1440, %v1453
        %v1455 = vcombine.high %v1447, %v1447
        %v1456 = vcombine.high %v1454, %v1454
        %v1457 = vcombine.high %v257, %v257
        %v1459 = vunpack.c.l.s4 1983009808
        %v1460 = vunpack.c.0.s8 %v1459
        %v1461 = vlaneseq
        %v1462 = vshrl.u32 %v1461, 7
        %v1463 = vsub.s32 %v1460, %v1462
        %v1464 = vrot.slane %v257, %v1463
        %v1466 = vunpack.c.l.s4 1983009808
        %v1467 = vunpack.c.0.s8 %v1466
        %v1468 = vlaneseq
        %v1469 = vshrl.u32 %v1468, 7
        %v1470 = vsub.s32 %v1467, %v1469
        %v1471 = vrot.slane %v1457, %v1470
        %v1472 = vcombine.high %v1464, %v1464
        %v1473 = vcombine.high %v1471, %v1471
        %v1474 = vcombine.high %v258, %v258
        %v1476 = vunpack.c.l.s4 1983009808
        %v1477 = vunpack.c.0.s8 %v1476
        %v1478 = vlaneseq
        %v1479 = vshrl.u32 %v1478, 7
        %v1480 = vsub.s32 %v1477, %v1479
        %v1481 = vrot.slane %v258, %v1480
        %v1483 = vunpack.c.l.s4 1983009808
        %v1484 = vunpack.c.0.s8 %v1483
        %v1485 = vlaneseq
        %v1486 = vshrl.u32 %v1485, 7
        %v1487 = vsub.s32 %v1484, %v1486
        %v1488 = vrot.slane %v1474, %v1487
        %v1489 = vcombine.high %v1481, %v1481
        %v1490 = vcombine.high %v1488, %v1488
        %v1491 = vcombine.high %v259, %v259
        %v1493 = vunpack.c.l.s4 1983009808
        %v1494 = vunpack.c.0.s8 %v1493
        %v1495 = vlaneseq
        %v1496 = vshrl.u32 %v1495, 7
        %v1497 = vsub.s32 %v1494, %v1496
        %v1498 = vrot.slane %v259, %v1497
        %v1500 = vunpack.c.l.s4 1983009808
        %v1501 = vunpack.c.0.s8 %v1500
        %v1502 = vlaneseq
        %v1503 = vshrl.u32 %v1502, 7
        %v1504 = vsub.s32 %v1501, %v1503
        %v1505 = vrot.slane %v1491, %v1504
        %v1506 = vcombine.high %v1498, %v1498
        %v1507 = vcombine.high %v1505, %v1505
        %v1508 = vcombine.high %v260, %v260
        %v1510 = vunpack.c.l.s4 1983009808
        %v1511 = vunpack.c.0.s8 %v1510
        %v1512 = vlaneseq
        %v1513 = vshrl.u32 %v1512, 7
        %v1514 = vsub.s32 %v1511, %v1513
        %v1515 = vrot.slane %v260, %v1514
        %v1517 = vunpack.c.l.s4 1983009808
        %v1518 = vunpack.c.0.s8 %v1517
        %v1519 = vlaneseq
        %v1520 = vshrl.u32 %v1519, 7
        %v1521 = vsub.s32 %v1518, %v1520
        %v1522 = vrot.slane %v1508, %v1521
        %v1523 = vcombine.high %v1515, %v1515
        %v1524 = vcombine.high %v1522, %v1522
        %v1525 = vcombine.high %v261, %v261
        %v1527 = vunpack.c.l.s4 1983009808
        %v1528 = vunpack.c.0.s8 %v1527
        %v1529 = vlaneseq
        %v1530 = vshrl.u32 %v1529, 7
        %v1531 = vsub.s32 %v1528, %v1530
        %v1532 = vrot.slane %v261, %v1531
        %v1534 = vunpack.c.l.s4 1983009808
        %v1535 = vunpack.c.0.s8 %v1534
        %v1536 = vlaneseq
        %v1537 = vshrl.u32 %v1536, 7
        %v1538 = vsub.s32 %v1535, %v1537
        %v1539 = vrot.slane %v1525, %v1538
        %v1540 = vcombine.high %v1532, %v1532
        %v1541 = vcombine.high %v1539, %v1539
        %v1542 = vcombine.high %v262, %v262
        %v1544 = vunpack.c.l.s4 1983009808
        %v1545 = vunpack.c.0.s8 %v1544
        %v1546 = vlaneseq
        %v1547 = vshrl.u32 %v1546, 7
        %v1548 = vsub.s32 %v1545, %v1547
        %v1549 = vrot.slane %v262, %v1548
        %v1551 = vunpack.c.l.s4 1983009808
        %v1552 = vunpack.c.0.s8 %v1551
        %v1553 = vlaneseq
        %v1554 = vshrl.u32 %v1553, 7
        %v1555 = vsub.s32 %v1552, %v1554
        %v1556 = vrot.slane %v1542, %v1555
        %v1557 = vcombine.high %v1549, %v1549
        %v1558 = vcombine.high %v1556, %v1556
        %v1559 = vcombine.high %v263, %v263
        %v1561 = vunpack.c.l.s4 1983009808
        %v1562 = vunpack.c.0.s8 %v1561
        %v1563 = vlaneseq
        %v1564 = vshrl.u32 %v1563, 7
        %v1565 = vsub.s32 %v1562, %v1564
        %v1566 = vrot.slane %v263, %v1565
        %v1568 = vunpack.c.l.s4 1983009808
        %v1569 = vunpack.c.0.s8 %v1568
        %v1570 = vlaneseq
        %v1571 = vshrl.u32 %v1570, 7
        %v1572 = vsub.s32 %v1569, %v1571
        %v1573 = vrot.slane %v1559, %v1572
        %v1574 = vcombine.high %v1566, %v1566
        %v1575 = vcombine.high %v1573, %v1573
        %1640 = vmatprep.subr.mxu0 0.0
        %1641 = vmatpush1.msra.mxu0 %v279
        %1642 = vmatprep.subr.mxu0 0.0
        %1643 = vmatpush1.msra.mxu0 %v278
        %1644 = vmatprep.subr.mxu0 0.0
        %1645 = vmatpush1.msra.mxu0 %v277
        %1646 = vmatprep.subr.mxu0 0.0
        %1647 = vmatpush1.msra.mxu0 %v276
        %1648 = vmatprep.subr.mxu0 0.0
        %1649 = vmatpush1.msra.mxu0 %v275
        %1650 = vmatprep.subr.mxu0 0.0
        %1651 = vmatpush1.msra.mxu0 %v274
        %1652 = vmatprep.subr.mxu0 0.0
        %1653 = vmatpush1.msra.mxu0 %v273
        %1654 = vmatprep.subr.mxu0 0.0
        %1655 = vmatpush1.msra.mxu0 %v272
        %1656 = vmatprep.subr.mxu0 0.0
        %1657 = vmatpush1.msra.mxu0 %v271
        %1658 = vmatprep.subr.mxu0 0.0
        %1659 = vmatpush1.msra.mxu0 %v270
        %1660 = vmatprep.subr.mxu0 0.0
        %1661 = vmatpush1.msra.mxu0 %v269
        %1662 = vmatprep.subr.mxu0 0.0
        %1663 = vmatpush1.msra.mxu0 %v268
        %1664 = vmatprep.subr.mxu0 0.0
        %1665 = vmatpush1.msra.mxu0 %v267
        %1666 = vmatprep.subr.mxu0 0.0
        %1667 = vmatpush1.msra.mxu0 %v266
        %1668 = vmatprep.subr.mxu0 0.0
        %1669 = vmatpush1.msra.mxu0 %v265
        %1670 = vmatprep.subr.mxu0 0.0
        %1671 = vmatpush1.msra.mxu0 %v264
        %1672 = vmatprep.subr.mxu0 0.0
        %1673 = vmatpush2.msra.mxu0 %v295
        %1674 = vmatprep.subr.mxu0 0.0
        %1675 = vmatpush2.msra.mxu0 %v294
        %1676 = vmatprep.subr.mxu0 0.0
        %1677 = vmatpush2.msra.mxu0 %v293
        %1678 = vmatprep.subr.mxu0 0.0
        %1679 = vmatpush2.msra.mxu0 %v292
        %1680 = vmatprep.subr.mxu0 0.0
        %1681 = vmatpush2.msra.mxu0 %v291
        %1682 = vmatprep.subr.mxu0 0.0
        %1683 = vmatpush2.msra.mxu0 %v290
        %1684 = vmatprep.subr.mxu0 0.0
        %1685 = vmatpush2.msra.mxu0 %v289
        %1686 = vmatprep.subr.mxu0 0.0
        %1687 = vmatpush2.msra.mxu0 %v288
        %1688 = vmatprep.subr.mxu0 0.0
        %1689 = vmatpush2.msra.mxu0 %v287
        %1690 = vmatprep.subr.mxu0 0.0
        %1691 = vmatpush2.msra.mxu0 %v286
        %1692 = vmatprep.subr.mxu0 0.0
        %1693 = vmatpush2.msra.mxu0 %v285
        %1694 = vmatprep.subr.mxu0 0.0
        %1695 = vmatpush2.msra.mxu0 %v284
        %1696 = vmatprep.subr.mxu0 0.0
        %1697 = vmatpush2.msra.mxu0 %v283
        %1698 = vmatprep.subr.mxu0 0.0
        %1699 = vmatpush2.msra.mxu0 %v282
        %1700 = vmatprep.subr.mxu0 0.0
        %1701 = vmatpush2.msra.mxu0 %v281
        %1702 = vmatprep.subr.mxu0 0.0
        %1703 = vmatpush2.msra.mxu0 %v280
        %1704 = vmatprep.mubr.f32.mxu0 %v1319
        %1705 = vmatmul.mubr.f32.gmra.mxu0 %v1311
        %v1706 = vpop.f32.mrf.mxu0
        %v1707 = vadd.f32 0.0, %v1706
        %v1708 = vpop.f32.mrf.mxu0
        %1709 = vdwg.mxu0
        %1710 = vmatprep.subr.mxu0 0.0
        %1711 = vmatpush1.msra.mxu0 %v311
        %1712 = vmatprep.subr.mxu0 0.0
        %1713 = vmatpush1.msra.mxu0 %v310
        %1714 = vmatprep.subr.mxu0 0.0
        %1715 = vmatpush1.msra.mxu0 %v309
        %1716 = vmatprep.subr.mxu0 0.0
        %1717 = vmatpush1.msra.mxu0 %v308
        %1718 = vmatprep.subr.mxu0 0.0
        %1719 = vmatpush1.msra.mxu0 %v307
        %1720 = vmatprep.subr.mxu0 0.0
        %1721 = vmatpush1.msra.mxu0 %v306
        %1722 = vmatprep.subr.mxu0 0.0
        %1723 = vmatpush1.msra.mxu0 %v305
        %1724 = vmatprep.subr.mxu0 0.0
        %1725 = vmatpush1.msra.mxu0 %v304
        %1726 = vmatprep.subr.mxu0 0.0
        %1727 = vmatpush1.msra.mxu0 %v303
        %1728 = vmatprep.subr.mxu0 0.0
        %1729 = vmatpush1.msra.mxu0 %v302
        %1730 = vmatprep.subr.mxu0 0.0
        %1731 = vmatpush1.msra.mxu0 %v301
        %1732 = vmatprep.subr.mxu0 0.0
        %1733 = vmatpush1.msra.mxu0 %v300
        %1734 = vmatprep.subr.mxu0 0.0
        %1735 = vmatpush1.msra.mxu0 %v299
        %1736 = vmatprep.subr.mxu0 0.0
        %1737 = vmatpush1.msra.mxu0 %v298
        %1738 = vmatprep.subr.mxu0 0.0
        %1739 = vmatpush1.msra.mxu0 %v297
        %1740 = vmatprep.subr.mxu0 0.0
        %1741 = vmatpush1.msra.mxu0 %v296
        %1742 = vmatprep.subr.mxu0 0.0
        %1743 = vmatpush2.msra.mxu0 %v327
        %1744 = vmatprep.subr.mxu0 0.0
        %1745 = vmatpush2.msra.mxu0 %v326
        %1746 = vmatprep.subr.mxu0 0.0
        %1747 = vmatpush2.msra.mxu0 %v325
        %1748 = vmatprep.subr.mxu0 0.0
        %1749 = vmatpush2.msra.mxu0 %v324
        %1750 = vmatprep.subr.mxu0 0.0
        %1751 = vmatpush2.msra.mxu0 %v323
        %1752 = vmatprep.subr.mxu0 0.0
        %1753 = vmatpush2.msra.mxu0 %v322
        %1754 = vmatprep.subr.mxu0 0.0
        %1755 = vmatpush2.msra.mxu0 %v321
        %1756 = vmatprep.subr.mxu0 0.0
        %1757 = vmatpush2.msra.mxu0 %v320
        %1758 = vmatprep.subr.mxu0 0.0
        %1759 = vmatpush2.msra.mxu0 %v319
        %1760 = vmatprep.subr.mxu0 0.0
        %1761 = vmatpush2.msra.mxu0 %v318
        %1762 = vmatprep.subr.mxu0 0.0
        %1763 = vmatpush2.msra.mxu0 %v317
        %1764 = vmatprep.subr.mxu0 0.0
        %1765 = vmatpush2.msra.mxu0 %v316
        %1766 = vmatprep.subr.mxu0 0.0
        %1767 = vmatpush2.msra.mxu0 %v315
        %1768 = vmatprep.subr.mxu0 0.0
        %1769 = vmatpush2.msra.mxu0 %v314
        %1770 = vmatprep.subr.mxu0 0.0
        %1771 = vmatpush2.msra.mxu0 %v313
        %1772 = vmatprep.subr.mxu0 0.0
        %1773 = vmatpush2.msra.mxu0 %v312
        %1774 = vmatprep.mubr.f32.mxu0 %v1320
        %1775 = vmatmul.mubr.f32.gmra.mxu0 %v1318
        %v1776 = vpop.f32.mrf.mxu0
        %v1777 = vadd.f32 %v1707, %v1776
        %v1778 = vpop.f32.mrf.mxu0
        %1779 = vdwg.mxu0
        %1780 = vmatprep.subr.mxu0 0.0
        %1781 = vmatpush1.msra.mxu0 %v343
        %1782 = vmatprep.subr.mxu0 0.0
        %1783 = vmatpush1.msra.mxu0 %v342
        %1784 = vmatprep.subr.mxu0 0.0
        %1785 = vmatpush1.msra.mxu0 %v341
        %1786 = vmatprep.subr.mxu0 0.0
        %1787 = vmatpush1.msra.mxu0 %v340
        %1788 = vmatprep.subr.mxu0 0.0
        %1789 = vmatpush1.msra.mxu0 %v339
        %1790 = vmatprep.subr.mxu0 0.0
        %1791 = vmatpush1.msra.mxu0 %v338
        %1792 = vmatprep.subr.mxu0 0.0
        %1793 = vmatpush1.msra.mxu0 %v337
        %1794 = vmatprep.subr.mxu0 0.0
        %1795 = vmatpush1.msra.mxu0 %v336
        %1796 = vmatprep.subr.mxu0 0.0
        %1797 = vmatpush1.msra.mxu0 %v335
        %1798 = vmatprep.subr.mxu0 0.0
        %1799 = vmatpush1.msra.mxu0 %v334
        %1800 = vmatprep.subr.mxu0 0.0
        %1801 = vmatpush1.msra.mxu0 %v333
        %1802 = vmatprep.subr.mxu0 0.0
        %1803 = vmatpush1.msra.mxu0 %v332
        %1804 = vmatprep.subr.mxu0 0.0
        %1805 = vmatpush1.msra.mxu0 %v331
        %1806 = vmatprep.subr.mxu0 0.0
        %1807 = vmatpush1.msra.mxu0 %v330
        %1808 = vmatprep.subr.mxu0 0.0
        %1809 = vmatpush1.msra.mxu0 %v329
        %1810 = vmatprep.subr.mxu0 0.0
        %1811 = vmatpush1.msra.mxu0 %v328
        %1812 = vmatprep.subr.mxu0 0.0
        %1813 = vmatpush2.msra.mxu0 %v359
        %1814 = vmatprep.subr.mxu0 0.0
        %1815 = vmatpush2.msra.mxu0 %v358
        %1816 = vmatprep.subr.mxu0 0.0
        %1817 = vmatpush2.msra.mxu0 %v357
        %1818 = vmatprep.subr.mxu0 0.0
        %1819 = vmatpush2.msra.mxu0 %v356
        %1820 = vmatprep.subr.mxu0 0.0
        %1821 = vmatpush2.msra.mxu0 %v355
        %1822 = vmatprep.subr.mxu0 0.0
        %1823 = vmatpush2.msra.mxu0 %v354
        %1824 = vmatprep.subr.mxu0 0.0
        %1825 = vmatpush2.msra.mxu0 %v353
        %1826 = vmatprep.subr.mxu0 0.0
        %1827 = vmatpush2.msra.mxu0 %v352
        %1828 = vmatprep.subr.mxu0 0.0
        %1829 = vmatpush2.msra.mxu0 %v351
        %1830 = vmatprep.subr.mxu0 0.0
        %1831 = vmatpush2.msra.mxu0 %v350
        %1832 = vmatprep.subr.mxu0 0.0
        %1833 = vmatpush2.msra.mxu0 %v349
        %1834 = vmatprep.subr.mxu0 0.0
        %1835 = vmatpush2.msra.mxu0 %v348
        %1836 = vmatprep.subr.mxu0 0.0
        %1837 = vmatpush2.msra.mxu0 %v347
        %1838 = vmatprep.subr.mxu0 0.0
        %1839 = vmatpush2.msra.mxu0 %v346
        %1840 = vmatprep.subr.mxu0 0.0
        %1841 = vmatpush2.msra.mxu0 %v345
        %1842 = vmatprep.subr.mxu0 0.0
        %1843 = vmatpush2.msra.mxu0 %v344
        %1844 = vmatprep.mubr.f32.mxu0 %v1336
        %1845 = vmatmul.mubr.f32.gmra.mxu0 %v1328
        %v1846 = vpop.f32.mrf.mxu0
        %v1847 = vadd.f32 %v1777, %v1846
        %v1848 = vpop.f32.mrf.mxu0
        %1849 = vdwg.mxu0
        %1850 = vmatprep.subr.mxu0 0.0
        %1851 = vmatpush1.msra.mxu0 %v375
        %1852 = vmatprep.subr.mxu0 0.0
        %1853 = vmatpush1.msra.mxu0 %v374
        %1854 = vmatprep.subr.mxu0 0.0
        %1855 = vmatpush1.msra.mxu0 %v373
        %1856 = vmatprep.subr.mxu0 0.0
        %1857 = vmatpush1.msra.mxu0 %v372
        %1858 = vmatprep.subr.mxu0 0.0
        %1859 = vmatpush1.msra.mxu0 %v371
        %1860 = vmatprep.subr.mxu0 0.0
        %1861 = vmatpush1.msra.mxu0 %v370
        %1862 = vmatprep.subr.mxu0 0.0
        %1863 = vmatpush1.msra.mxu0 %v369
        %1864 = vmatprep.subr.mxu0 0.0
        %1865 = vmatpush1.msra.mxu0 %v368
        %1866 = vmatprep.subr.mxu0 0.0
        %1867 = vmatpush1.msra.mxu0 %v367
        %1868 = vmatprep.subr.mxu0 0.0
        %1869 = vmatpush1.msra.mxu0 %v366
        %1870 = vmatprep.subr.mxu0 0.0
        %1871 = vmatpush1.msra.mxu0 %v365
        %1872 = vmatprep.subr.mxu0 0.0
        %1873 = vmatpush1.msra.mxu0 %v364
        %1874 = vmatprep.subr.mxu0 0.0
        %1875 = vmatpush1.msra.mxu0 %v363
        %1876 = vmatprep.subr.mxu0 0.0
        %1877 = vmatpush1.msra.mxu0 %v362
        %1878 = vmatprep.subr.mxu0 0.0
        %1879 = vmatpush1.msra.mxu0 %v361
        %1880 = vmatprep.subr.mxu0 0.0
        %1881 = vmatpush1.msra.mxu0 %v360
        %1882 = vmatprep.subr.mxu0 0.0
        %1883 = vmatpush2.msra.mxu0 %v391
        %1884 = vmatprep.subr.mxu0 0.0
        %1885 = vmatpush2.msra.mxu0 %v390
        %1886 = vmatprep.subr.mxu0 0.0
        %1887 = vmatpush2.msra.mxu0 %v389
        %1888 = vmatprep.subr.mxu0 0.0
        %1889 = vmatpush2.msra.mxu0 %v388
        %1890 = vmatprep.subr.mxu0 0.0
        %1891 = vmatpush2.msra.mxu0 %v387
        %1892 = vmatprep.subr.mxu0 0.0
        %1893 = vmatpush2.msra.mxu0 %v386
        %1894 = vmatprep.subr.mxu0 0.0
        %1895 = vmatpush2.msra.mxu0 %v385
        %1896 = vmatprep.subr.mxu0 0.0
        %1897 = vmatpush2.msra.mxu0 %v384
        %1898 = vmatprep.subr.mxu0 0.0
        %1899 = vmatpush2.msra.mxu0 %v383
        %1900 = vmatprep.subr.mxu0 0.0
        %1901 = vmatpush2.msra.mxu0 %v382
        %1902 = vmatprep.subr.mxu0 0.0
        %1903 = vmatpush2.msra.mxu0 %v381
        %1904 = vmatprep.subr.mxu0 0.0
        %1905 = vmatpush2.msra.mxu0 %v380
        %1906 = vmatprep.subr.mxu0 0.0
        %1907 = vmatpush2.msra.mxu0 %v379
        %1908 = vmatprep.subr.mxu0 0.0
        %1909 = vmatpush2.msra.mxu0 %v378
        %1910 = vmatprep.subr.mxu0 0.0
        %1911 = vmatpush2.msra.mxu0 %v377
        %1912 = vmatprep.subr.mxu0 0.0
        %1913 = vmatpush2.msra.mxu0 %v376
        %1914 = vmatprep.mubr.f32.mxu0 %v1337
        %1915 = vmatmul.mubr.f32.gmra.mxu0 %v1335
        %v1916 = vpop.f32.mrf.mxu0
        %v1917 = vadd.f32 %v1847, %v1916
        %v1918 = vpop.f32.mrf.mxu0
        %1919 = vdwg.mxu0
        %1920 = vmatprep.subr.mxu0 0.0
        %1921 = vmatpush1.msra.mxu0 %v407
        %1922 = vmatprep.subr.mxu0 0.0
        %1923 = vmatpush1.msra.mxu0 %v406
        %1924 = vmatprep.subr.mxu0 0.0
        %1925 = vmatpush1.msra.mxu0 %v405
        %1926 = vmatprep.subr.mxu0 0.0
        %1927 = vmatpush1.msra.mxu0 %v404
        %1928 = vmatprep.subr.mxu0 0.0
        %1929 = vmatpush1.msra.mxu0 %v403
        %1930 = vmatprep.subr.mxu0 0.0
        %1931 = vmatpush1.msra.mxu0 %v402
        %1932 = vmatprep.subr.mxu0 0.0
        %1933 = vmatpush1.msra.mxu0 %v401
        %1934 = vmatprep.subr.mxu0 0.0
        %1935 = vmatpush1.msra.mxu0 %v400
        %1936 = vmatprep.subr.mxu0 0.0
        %1937 = vmatpush1.msra.mxu0 %v399
        %1938 = vmatprep.subr.mxu0 0.0
        %1939 = vmatpush1.msra.mxu0 %v398
        %1940 = vmatprep.subr.mxu0 0.0
        %1941 = vmatpush1.msra.mxu0 %v397
        %1942 = vmatprep.subr.mxu0 0.0
        %1943 = vmatpush1.msra.mxu0 %v396
        %1944 = vmatprep.subr.mxu0 0.0
        %1945 = vmatpush1.msra.mxu0 %v395
        %1946 = vmatprep.subr.mxu0 0.0
        %1947 = vmatpush1.msra.mxu0 %v394
        %1948 = vmatprep.subr.mxu0 0.0
        %1949 = vmatpush1.msra.mxu0 %v393
        %1950 = vmatprep.subr.mxu0 0.0
        %1951 = vmatpush1.msra.mxu0 %v392
        %1952 = vmatprep.subr.mxu0 0.0
        %1953 = vmatpush2.msra.mxu0 %v423
        %1954 = vmatprep.subr.mxu0 0.0
        %1955 = vmatpush2.msra.mxu0 %v422
        %1956 = vmatprep.subr.mxu0 0.0
        %1957 = vmatpush2.msra.mxu0 %v421
        %1958 = vmatprep.subr.mxu0 0.0
        %1959 = vmatpush2.msra.mxu0 %v420
        %1960 = vmatprep.subr.mxu0 0.0
        %1961 = vmatpush2.msra.mxu0 %v419
        %1962 = vmatprep.subr.mxu0 0.0
        %1963 = vmatpush2.msra.mxu0 %v418
        %1964 = vmatprep.subr.mxu0 0.0
        %1965 = vmatpush2.msra.mxu0 %v417
        %1966 = vmatprep.subr.mxu0 0.0
        %1967 = vmatpush2.msra.mxu0 %v416
        %1968 = vmatprep.subr.mxu0 0.0
        %1969 = vmatpush2.msra.mxu0 %v415
        %1970 = vmatprep.subr.mxu0 0.0
        %1971 = vmatpush2.msra.mxu0 %v414
        %1972 = vmatprep.subr.mxu0 0.0
        %1973 = vmatpush2.msra.mxu0 %v413
        %1974 = vmatprep.subr.mxu0 0.0
        %1975 = vmatpush2.msra.mxu0 %v412
        %1976 = vmatprep.subr.mxu0 0.0
        %1977 = vmatpush2.msra.mxu0 %v411
        %1978 = vmatprep.subr.mxu0 0.0
        %1979 = vmatpush2.msra.mxu0 %v410
        %1980 = vmatprep.subr.mxu0 0.0
        %1981 = vmatpush2.msra.mxu0 %v409
        %1982 = vmatprep.subr.mxu0 0.0
        %1983 = vmatpush2.msra.mxu0 %v408
        %1984 = vmatprep.mubr.f32.mxu0 %v1353
        %1985 = vmatmul.mubr.f32.gmra.mxu0 %v1345
        %v1986 = vpop.f32.mrf.mxu0
        %v1987 = vadd.f32 %v1917, %v1986
        %v1988 = vpop.f32.mrf.mxu0
        %1989 = vdwg.mxu0
        %1990 = vmatprep.subr.mxu0 0.0
        %1991 = vmatpush1.msra.mxu0 %v439
        %1992 = vmatprep.subr.mxu0 0.0
        %1993 = vmatpush1.msra.mxu0 %v438
        %1994 = vmatprep.subr.mxu0 0.0
        %1995 = vmatpush1.msra.mxu0 %v437
        %1996 = vmatprep.subr.mxu0 0.0
        %1997 = vmatpush1.msra.mxu0 %v436
        %1998 = vmatprep.subr.mxu0 0.0
        %1999 = vmatpush1.msra.mxu0 %v435
        %2000 = vmatprep.subr.mxu0 0.0
        %2001 = vmatpush1.msra.mxu0 %v434
        %2002 = vmatprep.subr.mxu0 0.0
        %2003 = vmatpush1.msra.mxu0 %v433
        %2004 = vmatprep.subr.mxu0 0.0
        %2005 = vmatpush1.msra.mxu0 %v432
        %2006 = vmatprep.subr.mxu0 0.0
        %2007 = vmatpush1.msra.mxu0 %v431
        %2008 = vmatprep.subr.mxu0 0.0
        %2009 = vmatpush1.msra.mxu0 %v430
        %2010 = vmatprep.subr.mxu0 0.0
        %2011 = vmatpush1.msra.mxu0 %v429
        %2012 = vmatprep.subr.mxu0 0.0
        %2013 = vmatpush1.msra.mxu0 %v428
        %2014 = vmatprep.subr.mxu0 0.0
        %2015 = vmatpush1.msra.mxu0 %v427
        %2016 = vmatprep.subr.mxu0 0.0
        %2017 = vmatpush1.msra.mxu0 %v426
        %2018 = vmatprep.subr.mxu0 0.0
        %2019 = vmatpush1.msra.mxu0 %v425
        %2020 = vmatprep.subr.mxu0 0.0
        %2021 = vmatpush1.msra.mxu0 %v424
        %2022 = vmatprep.subr.mxu0 0.0
        %2023 = vmatpush2.msra.mxu0 %v455
        %2024 = vmatprep.subr.mxu0 0.0
        %2025 = vmatpush2.msra.mxu0 %v454
        %2026 = vmatprep.subr.mxu0 0.0
        %2027 = vmatpush2.msra.mxu0 %v453
        %2028 = vmatprep.subr.mxu0 0.0
        %2029 = vmatpush2.msra.mxu0 %v452
        %2030 = vmatprep.subr.mxu0 0.0
        %2031 = vmatpush2.msra.mxu0 %v451
        %2032 = vmatprep.subr.mxu0 0.0
        %2033 = vmatpush2.msra.mxu0 %v450
        %2034 = vmatprep.subr.mxu0 0.0
        %2035 = vmatpush2.msra.mxu0 %v449
        %2036 = vmatprep.subr.mxu0 0.0
        %2037 = vmatpush2.msra.mxu0 %v448
        %2038 = vmatprep.subr.mxu0 0.0
        %2039 = vmatpush2.msra.mxu0 %v447
        %2040 = vmatprep.subr.mxu0 0.0
        %2041 = vmatpush2.msra.mxu0 %v446
        %2042 = vmatprep.subr.mxu0 0.0
        %2043 = vmatpush2.msra.mxu0 %v445
        %2044 = vmatprep.subr.mxu0 0.0
        %2045 = vmatpush2.msra.mxu0 %v444
        %2046 = vmatprep.subr.mxu0 0.0
        %2047 = vmatpush2.msra.mxu0 %v443
        %2048 = vmatprep.subr.mxu0 0.0
        %2049 = vmatpush2.msra.mxu0 %v442
        %2050 = vmatprep.subr.mxu0 0.0
        %2051 = vmatpush2.msra.mxu0 %v441
        %2052 = vmatprep.subr.mxu0 0.0
        %2053 = vmatpush2.msra.mxu0 %v440
        %2054 = vmatprep.mubr.f32.mxu0 %v1354
        %2055 = vmatmul.mubr.f32.gmra.mxu0 %v1352
        %v2056 = vpop.f32.mrf.mxu0
        %v2057 = vadd.f32 %v1987, %v2056
        %v2058 = vpop.f32.mrf.mxu0
        %2059 = vdwg.mxu0
        %2060 = vmatprep.subr.mxu0 0.0
        %2061 = vmatpush1.msra.mxu0 %v471
        %2062 = vmatprep.subr.mxu0 0.0
        %2063 = vmatpush1.msra.mxu0 %v470
        %2064 = vmatprep.subr.mxu0 0.0
        %2065 = vmatpush1.msra.mxu0 %v469
        %2066 = vmatprep.subr.mxu0 0.0
        %2067 = vmatpush1.msra.mxu0 %v468
        %2068 = vmatprep.subr.mxu0 0.0
        %2069 = vmatpush1.msra.mxu0 %v467
        %2070 = vmatprep.subr.mxu0 0.0
        %2071 = vmatpush1.msra.mxu0 %v466
        %2072 = vmatprep.subr.mxu0 0.0
        %2073 = vmatpush1.msra.mxu0 %v465
        %2074 = vmatprep.subr.mxu0 0.0
        %2075 = vmatpush1.msra.mxu0 %v464
        %2076 = vmatprep.subr.mxu0 0.0
        %2077 = vmatpush1.msra.mxu0 %v463
        %2078 = vmatprep.subr.mxu0 0.0
        %2079 = vmatpush1.msra.mxu0 %v462
        %2080 = vmatprep.subr.mxu0 0.0
        %2081 = vmatpush1.msra.mxu0 %v461
        %2082 = vmatprep.subr.mxu0 0.0
        %2083 = vmatpush1.msra.mxu0 %v460
        %2084 = vmatprep.subr.mxu0 0.0
        %2085 = vmatpush1.msra.mxu0 %v459
        %2086 = vmatprep.subr.mxu0 0.0
        %2087 = vmatpush1.msra.mxu0 %v458
        %2088 = vmatprep.subr.mxu0 0.0
        %2089 = vmatpush1.msra.mxu0 %v457
        %2090 = vmatprep.subr.mxu0 0.0
        %2091 = vmatpush1.msra.mxu0 %v456
        %2092 = vmatprep.subr.mxu0 0.0
        %2093 = vmatpush2.msra.mxu0 %v487
        %2094 = vmatprep.subr.mxu0 0.0
        %2095 = vmatpush2.msra.mxu0 %v486
        %2096 = vmatprep.subr.mxu0 0.0
        %2097 = vmatpush2.msra.mxu0 %v485
        %2098 = vmatprep.subr.mxu0 0.0
        %2099 = vmatpush2.msra.mxu0 %v484
        %2100 = vmatprep.subr.mxu0 0.0
        %2101 = vmatpush2.msra.mxu0 %v483
        %2102 = vmatprep.subr.mxu0 0.0
        %2103 = vmatpush2.msra.mxu0 %v482
        %2104 = vmatprep.subr.mxu0 0.0
        %2105 = vmatpush2.msra.mxu0 %v481
        %2106 = vmatprep.subr.mxu0 0.0
        %2107 = vmatpush2.msra.mxu0 %v480
        %2108 = vmatprep.subr.mxu0 0.0
        %2109 = vmatpush2.msra.mxu0 %v479
        %2110 = vmatprep.subr.mxu0 0.0
        %2111 = vmatpush2.msra.mxu0 %v478
        %2112 = vmatprep.subr.mxu0 0.0
        %2113 = vmatpush2.msra.mxu0 %v477
        %2114 = vmatprep.subr.mxu0 0.0
        %2115 = vmatpush2.msra.mxu0 %v476
        %2116 = vmatprep.subr.mxu0 0.0
        %2117 = vmatpush2.msra.mxu0 %v475
        %2118 = vmatprep.subr.mxu0 0.0
        %2119 = vmatpush2.msra.mxu0 %v474
        %2120 = vmatprep.subr.mxu0 0.0
        %2121 = vmatpush2.msra.mxu0 %v473
        %2122 = vmatprep.subr.mxu0 0.0
        %2123 = vmatpush2.msra.mxu0 %v472
        %2124 = vmatprep.mubr.f32.mxu0 %v1370
        %2125 = vmatmul.mubr.f32.gmra.mxu0 %v1362
        %v2126 = vpop.f32.mrf.mxu0
        %v2127 = vadd.f32 %v2057, %v2126
        %v2128 = vpop.f32.mrf.mxu0
        %2129 = vdwg.mxu0
        %2130 = vmatprep.subr.mxu0 0.0
        %2131 = vmatpush1.msra.mxu0 %v503
        %2132 = vmatprep.subr.mxu0 0.0
        %2133 = vmatpush1.msra.mxu0 %v502
        %2134 = vmatprep.subr.mxu0 0.0
        %2135 = vmatpush1.msra.mxu0 %v501
        %2136 = vmatprep.subr.mxu0 0.0
        %2137 = vmatpush1.msra.mxu0 %v500
        %2138 = vmatprep.subr.mxu0 0.0
        %2139 = vmatpush1.msra.mxu0 %v499
        %2140 = vmatprep.subr.mxu0 0.0
        %2141 = vmatpush1.msra.mxu0 %v498
        %2142 = vmatprep.subr.mxu0 0.0
        %2143 = vmatpush1.msra.mxu0 %v497
        %2144 = vmatprep.subr.mxu0 0.0
        %2145 = vmatpush1.msra.mxu0 %v496
        %2146 = vmatprep.subr.mxu0 0.0
        %2147 = vmatpush1.msra.mxu0 %v495
        %2148 = vmatprep.subr.mxu0 0.0
        %2149 = vmatpush1.msra.mxu0 %v494
        %2150 = vmatprep.subr.mxu0 0.0
        %2151 = vmatpush1.msra.mxu0 %v493
        %2152 = vmatprep.subr.mxu0 0.0
        %2153 = vmatpush1.msra.mxu0 %v492
        %2154 = vmatprep.subr.mxu0 0.0
        %2155 = vmatpush1.msra.mxu0 %v491
        %2156 = vmatprep.subr.mxu0 0.0
        %2157 = vmatpush1.msra.mxu0 %v490
        %2158 = vmatprep.subr.mxu0 0.0
        %2159 = vmatpush1.msra.mxu0 %v489
        %2160 = vmatprep.subr.mxu0 0.0
        %2161 = vmatpush1.msra.mxu0 %v488
        %2162 = vmatprep.subr.mxu0 0.0
        %2163 = vmatpush2.msra.mxu0 %v519
        %2164 = vmatprep.subr.mxu0 0.0
        %2165 = vmatpush2.msra.mxu0 %v518
        %2166 = vmatprep.subr.mxu0 0.0
        %2167 = vmatpush2.msra.mxu0 %v517
        %2168 = vmatprep.subr.mxu0 0.0
        %2169 = vmatpush2.msra.mxu0 %v516
        %2170 = vmatprep.subr.mxu0 0.0
        %2171 = vmatpush2.msra.mxu0 %v515
        %2172 = vmatprep.subr.mxu0 0.0
        %2173 = vmatpush2.msra.mxu0 %v514
        %2174 = vmatprep.subr.mxu0 0.0
        %2175 = vmatpush2.msra.mxu0 %v513
        %2176 = vmatprep.subr.mxu0 0.0
        %2177 = vmatpush2.msra.mxu0 %v512
        %2178 = vmatprep.subr.mxu0 0.0
        %2179 = vmatpush2.msra.mxu0 %v511
        %2180 = vmatprep.subr.mxu0 0.0
        %2181 = vmatpush2.msra.mxu0 %v510
        %2182 = vmatprep.subr.mxu0 0.0
        %2183 = vmatpush2.msra.mxu0 %v509
        %2184 = vmatprep.subr.mxu0 0.0
        %2185 = vmatpush2.msra.mxu0 %v508
        %2186 = vmatprep.subr.mxu0 0.0
        %2187 = vmatpush2.msra.mxu0 %v507
        %2188 = vmatprep.subr.mxu0 0.0
        %2189 = vmatpush2.msra.mxu0 %v506
        %2190 = vmatprep.subr.mxu0 0.0
        %2191 = vmatpush2.msra.mxu0 %v505
        %2192 = vmatprep.subr.mxu0 0.0
        %2193 = vmatpush2.msra.mxu0 %v504
        %2194 = vmatprep.mubr.f32.mxu0 %v1371
        %2195 = vmatmul.mubr.f32.gmra.mxu0 %v1369
        %v2196 = vpop.f32.mrf.mxu0
        %v2197 = vadd.f32 %v2127, %v2196
        %v2198 = vpop.f32.mrf.mxu0
        %2199 = vdwg.mxu0
        %2200 = vmatprep.subr.mxu0 0.0
        %2201 = vmatpush1.msra.mxu0 %v535
        %2202 = vmatprep.subr.mxu0 0.0
        %2203 = vmatpush1.msra.mxu0 %v534
        %2204 = vmatprep.subr.mxu0 0.0
        %2205 = vmatpush1.msra.mxu0 %v533
        %2206 = vmatprep.subr.mxu0 0.0
        %2207 = vmatpush1.msra.mxu0 %v532
        %2208 = vmatprep.subr.mxu0 0.0
        %2209 = vmatpush1.msra.mxu0 %v531
        %2210 = vmatprep.subr.mxu0 0.0
        %2211 = vmatpush1.msra.mxu0 %v530
        %2212 = vmatprep.subr.mxu0 0.0
        %2213 = vmatpush1.msra.mxu0 %v529
        %2214 = vmatprep.subr.mxu0 0.0
        %2215 = vmatpush1.msra.mxu0 %v528
        %2216 = vmatprep.subr.mxu0 0.0
        %2217 = vmatpush1.msra.mxu0 %v527
        %2218 = vmatprep.subr.mxu0 0.0
        %2219 = vmatpush1.msra.mxu0 %v526
        %2220 = vmatprep.subr.mxu0 0.0
        %2221 = vmatpush1.msra.mxu0 %v525
        %2222 = vmatprep.subr.mxu0 0.0
        %2223 = vmatpush1.msra.mxu0 %v524
        %2224 = vmatprep.subr.mxu0 0.0
        %2225 = vmatpush1.msra.mxu0 %v523
        %2226 = vmatprep.subr.mxu0 0.0
        %2227 = vmatpush1.msra.mxu0 %v522
        %2228 = vmatprep.subr.mxu0 0.0
        %2229 = vmatpush1.msra.mxu0 %v521
        %2230 = vmatprep.subr.mxu0 0.0
        %2231 = vmatpush1.msra.mxu0 %v520
        %2232 = vmatprep.subr.mxu0 0.0
        %2233 = vmatpush2.msra.mxu0 %v551
        %2234 = vmatprep.subr.mxu0 0.0
        %2235 = vmatpush2.msra.mxu0 %v550
        %2236 = vmatprep.subr.mxu0 0.0
        %2237 = vmatpush2.msra.mxu0 %v549
        %2238 = vmatprep.subr.mxu0 0.0
        %2239 = vmatpush2.msra.mxu0 %v548
        %2240 = vmatprep.subr.mxu0 0.0
        %2241 = vmatpush2.msra.mxu0 %v547
        %2242 = vmatprep.subr.mxu0 0.0
        %2243 = vmatpush2.msra.mxu0 %v546
        %2244 = vmatprep.subr.mxu0 0.0
        %2245 = vmatpush2.msra.mxu0 %v545
        %2246 = vmatprep.subr.mxu0 0.0
        %2247 = vmatpush2.msra.mxu0 %v544
        %2248 = vmatprep.subr.mxu0 0.0
        %2249 = vmatpush2.msra.mxu0 %v543
        %2250 = vmatprep.subr.mxu0 0.0
        %2251 = vmatpush2.msra.mxu0 %v542
        %2252 = vmatprep.subr.mxu0 0.0
        %2253 = vmatpush2.msra.mxu0 %v541
        %2254 = vmatprep.subr.mxu0 0.0
        %2255 = vmatpush2.msra.mxu0 %v540
        %2256 = vmatprep.subr.mxu0 0.0
        %2257 = vmatpush2.msra.mxu0 %v539
        %2258 = vmatprep.subr.mxu0 0.0
        %2259 = vmatpush2.msra.mxu0 %v538
        %2260 = vmatprep.subr.mxu0 0.0
        %2261 = vmatpush2.msra.mxu0 %v537
        %2262 = vmatprep.subr.mxu0 0.0
        %2263 = vmatpush2.msra.mxu0 %v536
        %2264 = vmatprep.mubr.f32.mxu0 %v1387
        %2265 = vmatmul.mubr.f32.gmra.mxu0 %v1379
        %v2266 = vpop.f32.mrf.mxu0
        %v2267 = vadd.f32 %v2197, %v2266
        %v2268 = vpop.f32.mrf.mxu0
        %2269 = vdwg.mxu0
        %2270 = vmatprep.subr.mxu0 0.0
        %2271 = vmatpush1.msra.mxu0 %v567
        %2272 = vmatprep.subr.mxu0 0.0
        %2273 = vmatpush1.msra.mxu0 %v566
        %2274 = vmatprep.subr.mxu0 0.0
        %2275 = vmatpush1.msra.mxu0 %v565
        %2276 = vmatprep.subr.mxu0 0.0
        %2277 = vmatpush1.msra.mxu0 %v564
        %2278 = vmatprep.subr.mxu0 0.0
        %2279 = vmatpush1.msra.mxu0 %v563
        %2280 = vmatprep.subr.mxu0 0.0
        %2281 = vmatpush1.msra.mxu0 %v562
        %2282 = vmatprep.subr.mxu0 0.0
        %2283 = vmatpush1.msra.mxu0 %v561
        %2284 = vmatprep.subr.mxu0 0.0
        %2285 = vmatpush1.msra.mxu0 %v560
        %2286 = vmatprep.subr.mxu0 0.0
        %2287 = vmatpush1.msra.mxu0 %v559
        %2288 = vmatprep.subr.mxu0 0.0
        %2289 = vmatpush1.msra.mxu0 %v558
        %2290 = vmatprep.subr.mxu0 0.0
        %2291 = vmatpush1.msra.mxu0 %v557
        %2292 = vmatprep.subr.mxu0 0.0
        %2293 = vmatpush1.msra.mxu0 %v556
        %2294 = vmatprep.subr.mxu0 0.0
        %2295 = vmatpush1.msra.mxu0 %v555
        %2296 = vmatprep.subr.mxu0 0.0
        %2297 = vmatpush1.msra.mxu0 %v554
        %2298 = vmatprep.subr.mxu0 0.0
        %2299 = vmatpush1.msra.mxu0 %v553
        %2300 = vmatprep.subr.mxu0 0.0
        %2301 = vmatpush1.msra.mxu0 %v552
        %2302 = vmatprep.subr.mxu0 0.0
        %2303 = vmatpush2.msra.mxu0 %v583
        %2304 = vmatprep.subr.mxu0 0.0
        %2305 = vmatpush2.msra.mxu0 %v582
        %2306 = vmatprep.subr.mxu0 0.0
        %2307 = vmatpush2.msra.mxu0 %v581
        %2308 = vmatprep.subr.mxu0 0.0
        %2309 = vmatpush2.msra.mxu0 %v580
        %2310 = vmatprep.subr.mxu0 0.0
        %2311 = vmatpush2.msra.mxu0 %v579
        %2312 = vmatprep.subr.mxu0 0.0
        %2313 = vmatpush2.msra.mxu0 %v578
        %2314 = vmatprep.subr.mxu0 0.0
        %2315 = vmatpush2.msra.mxu0 %v577
        %2316 = vmatprep.subr.mxu0 0.0
        %2317 = vmatpush2.msra.mxu0 %v576
        %2318 = vmatprep.subr.mxu0 0.0
        %2319 = vmatpush2.msra.mxu0 %v575
        %2320 = vmatprep.subr.mxu0 0.0
        %2321 = vmatpush2.msra.mxu0 %v574
        %2322 = vmatprep.subr.mxu0 0.0
        %2323 = vmatpush2.msra.mxu0 %v573
        %2324 = vmatprep.subr.mxu0 0.0
        %2325 = vmatpush2.msra.mxu0 %v572
        %2326 = vmatprep.subr.mxu0 0.0
        %2327 = vmatpush2.msra.mxu0 %v571
        %2328 = vmatprep.subr.mxu0 0.0
        %2329 = vmatpush2.msra.mxu0 %v570
        %2330 = vmatprep.subr.mxu0 0.0
        %2331 = vmatpush2.msra.mxu0 %v569
        %2332 = vmatprep.subr.mxu0 0.0
        %2333 = vmatpush2.msra.mxu0 %v568
        %2334 = vmatprep.mubr.f32.mxu0 %v1388
        %2335 = vmatmul.mubr.f32.gmra.mxu0 %v1386
        %v2336 = vpop.f32.mrf.mxu0
        %v2337 = vadd.f32 %v2267, %v2336
        %v2338 = vpop.f32.mrf.mxu0
        %2339 = vdwg.mxu0
        %2340 = vmatprep.subr.mxu0 0.0
        %2341 = vmatpush1.msra.mxu0 %v599
        %2342 = vmatprep.subr.mxu0 0.0
        %2343 = vmatpush1.msra.mxu0 %v598
        %2344 = vmatprep.subr.mxu0 0.0
        %2345 = vmatpush1.msra.mxu0 %v597
        %2346 = vmatprep.subr.mxu0 0.0
        %2347 = vmatpush1.msra.mxu0 %v596
        %2348 = vmatprep.subr.mxu0 0.0
        %2349 = vmatpush1.msra.mxu0 %v595
        %2350 = vmatprep.subr.mxu0 0.0
        %2351 = vmatpush1.msra.mxu0 %v594
        %2352 = vmatprep.subr.mxu0 0.0
        %2353 = vmatpush1.msra.mxu0 %v593
        %2354 = vmatprep.subr.mxu0 0.0
        %2355 = vmatpush1.msra.mxu0 %v592
        %2356 = vmatprep.subr.mxu0 0.0
        %2357 = vmatpush1.msra.mxu0 %v591
        %2358 = vmatprep.subr.mxu0 0.0
        %2359 = vmatpush1.msra.mxu0 %v590
        %2360 = vmatprep.subr.mxu0 0.0
        %2361 = vmatpush1.msra.mxu0 %v589
        %2362 = vmatprep.subr.mxu0 0.0
        %2363 = vmatpush1.msra.mxu0 %v588
        %2364 = vmatprep.subr.mxu0 0.0
        %2365 = vmatpush1.msra.mxu0 %v587
        %2366 = vmatprep.subr.mxu0 0.0
        %2367 = vmatpush1.msra.mxu0 %v586
        %2368 = vmatprep.subr.mxu0 0.0
        %2369 = vmatpush1.msra.mxu0 %v585
        %2370 = vmatprep.subr.mxu0 0.0
        %2371 = vmatpush1.msra.mxu0 %v584
        %2372 = vmatprep.subr.mxu0 0.0
        %2373 = vmatpush2.msra.mxu0 %v615
        %2374 = vmatprep.subr.mxu0 0.0
        %2375 = vmatpush2.msra.mxu0 %v614
        %2376 = vmatprep.subr.mxu0 0.0
        %2377 = vmatpush2.msra.mxu0 %v613
        %2378 = vmatprep.subr.mxu0 0.0
        %2379 = vmatpush2.msra.mxu0 %v612
        %2380 = vmatprep.subr.mxu0 0.0
        %2381 = vmatpush2.msra.mxu0 %v611
        %2382 = vmatprep.subr.mxu0 0.0
        %2383 = vmatpush2.msra.mxu0 %v610
        %2384 = vmatprep.subr.mxu0 0.0
        %2385 = vmatpush2.msra.mxu0 %v609
        %2386 = vmatprep.subr.mxu0 0.0
        %2387 = vmatpush2.msra.mxu0 %v608
        %2388 = vmatprep.subr.mxu0 0.0
        %2389 = vmatpush2.msra.mxu0 %v607
        %2390 = vmatprep.subr.mxu0 0.0
        %2391 = vmatpush2.msra.mxu0 %v606
        %2392 = vmatprep.subr.mxu0 0.0
        %2393 = vmatpush2.msra.mxu0 %v605
        %2394 = vmatprep.subr.mxu0 0.0
        %2395 = vmatpush2.msra.mxu0 %v604
        %2396 = vmatprep.subr.mxu0 0.0
        %2397 = vmatpush2.msra.mxu0 %v603
        %2398 = vmatprep.subr.mxu0 0.0
        %2399 = vmatpush2.msra.mxu0 %v602
        %2400 = vmatprep.subr.mxu0 0.0
        %2401 = vmatpush2.msra.mxu0 %v601
        %2402 = vmatprep.subr.mxu0 0.0
        %2403 = vmatpush2.msra.mxu0 %v600
        %2404 = vmatprep.mubr.f32.mxu0 %v1404
        %2405 = vmatmul.mubr.f32.gmra.mxu0 %v1396
        %v2406 = vpop.f32.mrf.mxu0
        %v2407 = vadd.f32 %v2337, %v2406
        %v2408 = vpop.f32.mrf.mxu0
        %2409 = vdwg.mxu0
        %2410 = vmatprep.subr.mxu0 0.0
        %2411 = vmatpush1.msra.mxu0 %v631
        %2412 = vmatprep.subr.mxu0 0.0
        %2413 = vmatpush1.msra.mxu0 %v630
        %2414 = vmatprep.subr.mxu0 0.0
        %2415 = vmatpush1.msra.mxu0 %v629
        %2416 = vmatprep.subr.mxu0 0.0
        %2417 = vmatpush1.msra.mxu0 %v628
        %2418 = vmatprep.subr.mxu0 0.0
        %2419 = vmatpush1.msra.mxu0 %v627
        %2420 = vmatprep.subr.mxu0 0.0
        %2421 = vmatpush1.msra.mxu0 %v626
        %2422 = vmatprep.subr.mxu0 0.0
        %2423 = vmatpush1.msra.mxu0 %v625
        %2424 = vmatprep.subr.mxu0 0.0
        %2425 = vmatpush1.msra.mxu0 %v624
        %2426 = vmatprep.subr.mxu0 0.0
        %2427 = vmatpush1.msra.mxu0 %v623
        %2428 = vmatprep.subr.mxu0 0.0
        %2429 = vmatpush1.msra.mxu0 %v622
        %2430 = vmatprep.subr.mxu0 0.0
        %2431 = vmatpush1.msra.mxu0 %v621
        %2432 = vmatprep.subr.mxu0 0.0
        %2433 = vmatpush1.msra.mxu0 %v620
        %2434 = vmatprep.subr.mxu0 0.0
        %2435 = vmatpush1.msra.mxu0 %v619
        %2436 = vmatprep.subr.mxu0 0.0
        %2437 = vmatpush1.msra.mxu0 %v618
        %2438 = vmatprep.subr.mxu0 0.0
        %2439 = vmatpush1.msra.mxu0 %v617
        %2440 = vmatprep.subr.mxu0 0.0
        %2441 = vmatpush1.msra.mxu0 %v616
        %2442 = vmatprep.subr.mxu0 0.0
        %2443 = vmatpush2.msra.mxu0 %v647
        %2444 = vmatprep.subr.mxu0 0.0
        %2445 = vmatpush2.msra.mxu0 %v646
        %2446 = vmatprep.subr.mxu0 0.0
        %2447 = vmatpush2.msra.mxu0 %v645
        %2448 = vmatprep.subr.mxu0 0.0
        %2449 = vmatpush2.msra.mxu0 %v644
        %2450 = vmatprep.subr.mxu0 0.0
        %2451 = vmatpush2.msra.mxu0 %v643
        %2452 = vmatprep.subr.mxu0 0.0
        %2453 = vmatpush2.msra.mxu0 %v642
        %2454 = vmatprep.subr.mxu0 0.0
        %2455 = vmatpush2.msra.mxu0 %v641
        %2456 = vmatprep.subr.mxu0 0.0
        %2457 = vmatpush2.msra.mxu0 %v640
        %2458 = vmatprep.subr.mxu0 0.0
        %2459 = vmatpush2.msra.mxu0 %v639
        %2460 = vmatprep.subr.mxu0 0.0
        %2461 = vmatpush2.msra.mxu0 %v638
        %2462 = vmatprep.subr.mxu0 0.0
        %2463 = vmatpush2.msra.mxu0 %v637
        %2464 = vmatprep.subr.mxu0 0.0
        %2465 = vmatpush2.msra.mxu0 %v636
        %2466 = vmatprep.subr.mxu0 0.0
        %2467 = vmatpush2.msra.mxu0 %v635
        %2468 = vmatprep.subr.mxu0 0.0
        %2469 = vmatpush2.msra.mxu0 %v634
        %2470 = vmatprep.subr.mxu0 0.0
        %2471 = vmatpush2.msra.mxu0 %v633
        %2472 = vmatprep.subr.mxu0 0.0
        %2473 = vmatpush2.msra.mxu0 %v632
        %2474 = vmatprep.mubr.f32.mxu0 %v1405
        %2475 = vmatmul.mubr.f32.gmra.mxu0 %v1403
        %v2476 = vpop.f32.mrf.mxu0
        %v2477 = vadd.f32 %v2407, %v2476
        %v2478 = vpop.f32.mrf.mxu0
        %2479 = vdwg.mxu0
        %2480 = vmatprep.subr.mxu0 0.0
        %2481 = vmatpush1.msra.mxu0 %v663
        %2482 = vmatprep.subr.mxu0 0.0
        %2483 = vmatpush1.msra.mxu0 %v662
        %2484 = vmatprep.subr.mxu0 0.0
        %2485 = vmatpush1.msra.mxu0 %v661
        %2486 = vmatprep.subr.mxu0 0.0
        %2487 = vmatpush1.msra.mxu0 %v660
        %2488 = vmatprep.subr.mxu0 0.0
        %2489 = vmatpush1.msra.mxu0 %v659
        %2490 = vmatprep.subr.mxu0 0.0
        %2491 = vmatpush1.msra.mxu0 %v658
        %2492 = vmatprep.subr.mxu0 0.0
        %2493 = vmatpush1.msra.mxu0 %v657
        %2494 = vmatprep.subr.mxu0 0.0
        %2495 = vmatpush1.msra.mxu0 %v656
        %2496 = vmatprep.subr.mxu0 0.0
        %2497 = vmatpush1.msra.mxu0 %v655
        %2498 = vmatprep.subr.mxu0 0.0
        %2499 = vmatpush1.msra.mxu0 %v654
        %2500 = vmatprep.subr.mxu0 0.0
        %2501 = vmatpush1.msra.mxu0 %v653
        %2502 = vmatprep.subr.mxu0 0.0
        %2503 = vmatpush1.msra.mxu0 %v652
        %2504 = vmatprep.subr.mxu0 0.0
        %2505 = vmatpush1.msra.mxu0 %v651
        %2506 = vmatprep.subr.mxu0 0.0
        %2507 = vmatpush1.msra.mxu0 %v650
        %2508 = vmatprep.subr.mxu0 0.0
        %2509 = vmatpush1.msra.mxu0 %v649
        %2510 = vmatprep.subr.mxu0 0.0
        %2511 = vmatpush1.msra.mxu0 %v648
        %2512 = vmatprep.subr.mxu0 0.0
        %2513 = vmatpush2.msra.mxu0 %v679
        %2514 = vmatprep.subr.mxu0 0.0
        %2515 = vmatpush2.msra.mxu0 %v678
        %2516 = vmatprep.subr.mxu0 0.0
        %2517 = vmatpush2.msra.mxu0 %v677
        %2518 = vmatprep.subr.mxu0 0.0
        %2519 = vmatpush2.msra.mxu0 %v676
        %2520 = vmatprep.subr.mxu0 0.0
        %2521 = vmatpush2.msra.mxu0 %v675
        %2522 = vmatprep.subr.mxu0 0.0
        %2523 = vmatpush2.msra.mxu0 %v674
        %2524 = vmatprep.subr.mxu0 0.0
        %2525 = vmatpush2.msra.mxu0 %v673
        %2526 = vmatprep.subr.mxu0 0.0
        %2527 = vmatpush2.msra.mxu0 %v672
        %2528 = vmatprep.subr.mxu0 0.0
        %2529 = vmatpush2.msra.mxu0 %v671
        %2530 = vmatprep.subr.mxu0 0.0
        %2531 = vmatpush2.msra.mxu0 %v670
        %2532 = vmatprep.subr.mxu0 0.0
        %2533 = vmatpush2.msra.mxu0 %v669
        %2534 = vmatprep.subr.mxu0 0.0
        %2535 = vmatpush2.msra.mxu0 %v668
        %2536 = vmatprep.subr.mxu0 0.0
        %2537 = vmatpush2.msra.mxu0 %v667
        %2538 = vmatprep.subr.mxu0 0.0
        %2539 = vmatpush2.msra.mxu0 %v666
        %2540 = vmatprep.subr.mxu0 0.0
        %2541 = vmatpush2.msra.mxu0 %v665
        %2542 = vmatprep.subr.mxu0 0.0
        %2543 = vmatpush2.msra.mxu0 %v664
        %2544 = vmatprep.mubr.f32.mxu0 %v1421
        %2545 = vmatmul.mubr.f32.gmra.mxu0 %v1413
        %v2546 = vpop.f32.mrf.mxu0
        %v2547 = vadd.f32 %v2477, %v2546
        %v2548 = vpop.f32.mrf.mxu0
        %2549 = vdwg.mxu0
        %2550 = vmatprep.subr.mxu0 0.0
        %2551 = vmatpush1.msra.mxu0 %v695
        %2552 = vmatprep.subr.mxu0 0.0
        %2553 = vmatpush1.msra.mxu0 %v694
        %2554 = vmatprep.subr.mxu0 0.0
        %2555 = vmatpush1.msra.mxu0 %v693
        %2556 = vmatprep.subr.mxu0 0.0
        %2557 = vmatpush1.msra.mxu0 %v692
        %2558 = vmatprep.subr.mxu0 0.0
        %2559 = vmatpush1.msra.mxu0 %v691
        %2560 = vmatprep.subr.mxu0 0.0
        %2561 = vmatpush1.msra.mxu0 %v690
        %2562 = vmatprep.subr.mxu0 0.0
        %2563 = vmatpush1.msra.mxu0 %v689
        %2564 = vmatprep.subr.mxu0 0.0
        %2565 = vmatpush1.msra.mxu0 %v688
        %2566 = vmatprep.subr.mxu0 0.0
        %2567 = vmatpush1.msra.mxu0 %v687
        %2568 = vmatprep.subr.mxu0 0.0
        %2569 = vmatpush1.msra.mxu0 %v686
        %2570 = vmatprep.subr.mxu0 0.0
        %2571 = vmatpush1.msra.mxu0 %v685
        %2572 = vmatprep.subr.mxu0 0.0
        %2573 = vmatpush1.msra.mxu0 %v684
        %2574 = vmatprep.subr.mxu0 0.0
        %2575 = vmatpush1.msra.mxu0 %v683
        %2576 = vmatprep.subr.mxu0 0.0
        %2577 = vmatpush1.msra.mxu0 %v682
        %2578 = vmatprep.subr.mxu0 0.0
        %2579 = vmatpush1.msra.mxu0 %v681
        %2580 = vmatprep.subr.mxu0 0.0
        %2581 = vmatpush1.msra.mxu0 %v680
        %2582 = vmatprep.subr.mxu0 0.0
        %2583 = vmatpush2.msra.mxu0 %v711
        %2584 = vmatprep.subr.mxu0 0.0
        %2585 = vmatpush2.msra.mxu0 %v710
        %2586 = vmatprep.subr.mxu0 0.0
        %2587 = vmatpush2.msra.mxu0 %v709
        %2588 = vmatprep.subr.mxu0 0.0
        %2589 = vmatpush2.msra.mxu0 %v708
        %2590 = vmatprep.subr.mxu0 0.0
        %2591 = vmatpush2.msra.mxu0 %v707
        %2592 = vmatprep.subr.mxu0 0.0
        %2593 = vmatpush2.msra.mxu0 %v706
        %2594 = vmatprep.subr.mxu0 0.0
        %2595 = vmatpush2.msra.mxu0 %v705
        %2596 = vmatprep.subr.mxu0 0.0
        %2597 = vmatpush2.msra.mxu0 %v704
        %2598 = vmatprep.subr.mxu0 0.0
        %2599 = vmatpush2.msra.mxu0 %v703
        %2600 = vmatprep.subr.mxu0 0.0
        %2601 = vmatpush2.msra.mxu0 %v702
        %2602 = vmatprep.subr.mxu0 0.0
        %2603 = vmatpush2.msra.mxu0 %v701
        %2604 = vmatprep.subr.mxu0 0.0
        %2605 = vmatpush2.msra.mxu0 %v700
        %2606 = vmatprep.subr.mxu0 0.0
        %2607 = vmatpush2.msra.mxu0 %v699
        %2608 = vmatprep.subr.mxu0 0.0
        %2609 = vmatpush2.msra.mxu0 %v698
        %2610 = vmatprep.subr.mxu0 0.0
        %2611 = vmatpush2.msra.mxu0 %v697
        %2612 = vmatprep.subr.mxu0 0.0
        %2613 = vmatpush2.msra.mxu0 %v696
        %2614 = vmatprep.mubr.f32.mxu0 %v1422
        %2615 = vmatmul.mubr.f32.gmra.mxu0 %v1420
        %v2616 = vpop.f32.mrf.mxu0
        %v2617 = vadd.f32 %v2547, %v2616
        %v2618 = vpop.f32.mrf.mxu0
        %2619 = vdwg.mxu0
        %2620 = vmatprep.subr.mxu0 0.0
        %2621 = vmatpush1.msra.mxu0 %v727
        %2622 = vmatprep.subr.mxu0 0.0
        %2623 = vmatpush1.msra.mxu0 %v726
        %2624 = vmatprep.subr.mxu0 0.0
        %2625 = vmatpush1.msra.mxu0 %v725
        %2626 = vmatprep.subr.mxu0 0.0
        %2627 = vmatpush1.msra.mxu0 %v724
        %2628 = vmatprep.subr.mxu0 0.0
        %2629 = vmatpush1.msra.mxu0 %v723
        %2630 = vmatprep.subr.mxu0 0.0
        %2631 = vmatpush1.msra.mxu0 %v722
        %2632 = vmatprep.subr.mxu0 0.0
        %2633 = vmatpush1.msra.mxu0 %v721
        %2634 = vmatprep.subr.mxu0 0.0
        %2635 = vmatpush1.msra.mxu0 %v720
        %2636 = vmatprep.subr.mxu0 0.0
        %2637 = vmatpush1.msra.mxu0 %v719
        %2638 = vmatprep.subr.mxu0 0.0
        %2639 = vmatpush1.msra.mxu0 %v718
        %2640 = vmatprep.subr.mxu0 0.0
        %2641 = vmatpush1.msra.mxu0 %v717
        %2642 = vmatprep.subr.mxu0 0.0
        %2643 = vmatpush1.msra.mxu0 %v716
        %2644 = vmatprep.subr.mxu0 0.0
        %2645 = vmatpush1.msra.mxu0 %v715
        %2646 = vmatprep.subr.mxu0 0.0
        %2647 = vmatpush1.msra.mxu0 %v714
        %2648 = vmatprep.subr.mxu0 0.0
        %2649 = vmatpush1.msra.mxu0 %v713
        %2650 = vmatprep.subr.mxu0 0.0
        %2651 = vmatpush1.msra.mxu0 %v712
        %2652 = vmatprep.subr.mxu0 0.0
        %2653 = vmatpush2.msra.mxu0 %v743
        %2654 = vmatprep.subr.mxu0 0.0
        %2655 = vmatpush2.msra.mxu0 %v742
        %2656 = vmatprep.subr.mxu0 0.0
        %2657 = vmatpush2.msra.mxu0 %v741
        %2658 = vmatprep.subr.mxu0 0.0
        %2659 = vmatpush2.msra.mxu0 %v740
        %2660 = vmatprep.subr.mxu0 0.0
        %2661 = vmatpush2.msra.mxu0 %v739
        %2662 = vmatprep.subr.mxu0 0.0
        %2663 = vmatpush2.msra.mxu0 %v738
        %2664 = vmatprep.subr.mxu0 0.0
        %2665 = vmatpush2.msra.mxu0 %v737
        %2666 = vmatprep.subr.mxu0 0.0
        %2667 = vmatpush2.msra.mxu0 %v736
        %2668 = vmatprep.subr.mxu0 0.0
        %2669 = vmatpush2.msra.mxu0 %v735
        %2670 = vmatprep.subr.mxu0 0.0
        %2671 = vmatpush2.msra.mxu0 %v734
        %2672 = vmatprep.subr.mxu0 0.0
        %2673 = vmatpush2.msra.mxu0 %v733
        %2674 = vmatprep.subr.mxu0 0.0
        %2675 = vmatpush2.msra.mxu0 %v732
        %2676 = vmatprep.subr.mxu0 0.0
        %2677 = vmatpush2.msra.mxu0 %v731
        %2678 = vmatprep.subr.mxu0 0.0
        %2679 = vmatpush2.msra.mxu0 %v730
        %2680 = vmatprep.subr.mxu0 0.0
        %2681 = vmatpush2.msra.mxu0 %v729
        %2682 = vmatprep.subr.mxu0 0.0
        %2683 = vmatpush2.msra.mxu0 %v728
        %2684 = vmatprep.mubr.f32.mxu0 %v1438
        %2685 = vmatmul.mubr.f32.gmra.mxu0 %v1430
        %v2686 = vpop.f32.mrf.mxu0
        %v2687 = vadd.f32 %v2617, %v2686
        %v2688 = vpop.f32.mrf.mxu0
        %2689 = vdwg.mxu0
        %2690 = vmatprep.subr.mxu0 0.0
        %2691 = vmatpush1.msra.mxu0 %v759
        %2692 = vmatprep.subr.mxu0 0.0
        %2693 = vmatpush1.msra.mxu0 %v758
        %2694 = vmatprep.subr.mxu0 0.0
        %2695 = vmatpush1.msra.mxu0 %v757
        %2696 = vmatprep.subr.mxu0 0.0
        %2697 = vmatpush1.msra.mxu0 %v756
        %2698 = vmatprep.subr.mxu0 0.0
        %2699 = vmatpush1.msra.mxu0 %v755
        %2700 = vmatprep.subr.mxu0 0.0
        %2701 = vmatpush1.msra.mxu0 %v754
        %2702 = vmatprep.subr.mxu0 0.0
        %2703 = vmatpush1.msra.mxu0 %v753
        %2704 = vmatprep.subr.mxu0 0.0
        %2705 = vmatpush1.msra.mxu0 %v752
        %2706 = vmatprep.subr.mxu0 0.0
        %2707 = vmatpush1.msra.mxu0 %v751
        %2708 = vmatprep.subr.mxu0 0.0
        %2709 = vmatpush1.msra.mxu0 %v750
        %2710 = vmatprep.subr.mxu0 0.0
        %2711 = vmatpush1.msra.mxu0 %v749
        %2712 = vmatprep.subr.mxu0 0.0
        %2713 = vmatpush1.msra.mxu0 %v748
        %2714 = vmatprep.subr.mxu0 0.0
        %2715 = vmatpush1.msra.mxu0 %v747
        %2716 = vmatprep.subr.mxu0 0.0
        %2717 = vmatpush1.msra.mxu0 %v746
        %2718 = vmatprep.subr.mxu0 0.0
        %2719 = vmatpush1.msra.mxu0 %v745
        %2720 = vmatprep.subr.mxu0 0.0
        %2721 = vmatpush1.msra.mxu0 %v744
        %2722 = vmatprep.subr.mxu0 0.0
        %2723 = vmatpush2.msra.mxu0 %v775
        %2724 = vmatprep.subr.mxu0 0.0
        %2725 = vmatpush2.msra.mxu0 %v774
        %2726 = vmatprep.subr.mxu0 0.0
        %2727 = vmatpush2.msra.mxu0 %v773
        %2728 = vmatprep.subr.mxu0 0.0
        %2729 = vmatpush2.msra.mxu0 %v772
        %2730 = vmatprep.subr.mxu0 0.0
        %2731 = vmatpush2.msra.mxu0 %v771
        %2732 = vmatprep.subr.mxu0 0.0
        %2733 = vmatpush2.msra.mxu0 %v770
        %2734 = vmatprep.subr.mxu0 0.0
        %2735 = vmatpush2.msra.mxu0 %v769
        %2736 = vmatprep.subr.mxu0 0.0
        %2737 = vmatpush2.msra.mxu0 %v768
        %2738 = vmatprep.subr.mxu0 0.0
        %2739 = vmatpush2.msra.mxu0 %v767
        %2740 = vmatprep.subr.mxu0 0.0
        %2741 = vmatpush2.msra.mxu0 %v766
        %2742 = vmatprep.subr.mxu0 0.0
        %2743 = vmatpush2.msra.mxu0 %v765
        %2744 = vmatprep.subr.mxu0 0.0
        %2745 = vmatpush2.msra.mxu0 %v764
        %2746 = vmatprep.subr.mxu0 0.0
        %2747 = vmatpush2.msra.mxu0 %v763
        %2748 = vmatprep.subr.mxu0 0.0
        %2749 = vmatpush2.msra.mxu0 %v762
        %2750 = vmatprep.subr.mxu0 0.0
        %2751 = vmatpush2.msra.mxu0 %v761
        %2752 = vmatprep.subr.mxu0 0.0
        %2753 = vmatpush2.msra.mxu0 %v760
        %2754 = vmatprep.mubr.f32.mxu0 %v1439
        %2755 = vmatmul.mubr.f32.gmra.mxu0 %v1437
        %v2756 = vpop.f32.mrf.mxu0
        %v2757 = vadd.f32 %v2687, %v2756
        %v2758 = vpop.f32.mrf.mxu0
        %2759 = vdwg.mxu0
        %2760 = vmatprep.subr.mxu0 0.0
        %2761 = vmatpush1.msra.mxu0 %v791
        %2762 = vmatprep.subr.mxu0 0.0
        %2763 = vmatpush1.msra.mxu0 %v790
        %2764 = vmatprep.subr.mxu0 0.0
        %2765 = vmatpush1.msra.mxu0 %v789
        %2766 = vmatprep.subr.mxu0 0.0
        %2767 = vmatpush1.msra.mxu0 %v788
        %2768 = vmatprep.subr.mxu0 0.0
        %2769 = vmatpush1.msra.mxu0 %v787
        %2770 = vmatprep.subr.mxu0 0.0
        %2771 = vmatpush1.msra.mxu0 %v786
        %2772 = vmatprep.subr.mxu0 0.0
        %2773 = vmatpush1.msra.mxu0 %v785
        %2774 = vmatprep.subr.mxu0 0.0
        %2775 = vmatpush1.msra.mxu0 %v784
        %2776 = vmatprep.subr.mxu0 0.0
        %2777 = vmatpush1.msra.mxu0 %v783
        %2778 = vmatprep.subr.mxu0 0.0
        %2779 = vmatpush1.msra.mxu0 %v782
        %2780 = vmatprep.subr.mxu0 0.0
        %2781 = vmatpush1.msra.mxu0 %v781
        %2782 = vmatprep.subr.mxu0 0.0
        %2783 = vmatpush1.msra.mxu0 %v780
        %2784 = vmatprep.subr.mxu0 0.0
        %2785 = vmatpush1.msra.mxu0 %v779
        %2786 = vmatprep.subr.mxu0 0.0
        %2787 = vmatpush1.msra.mxu0 %v778
        %2788 = vmatprep.subr.mxu0 0.0
        %2789 = vmatpush1.msra.mxu0 %v777
        %2790 = vmatprep.subr.mxu0 0.0
        %2791 = vmatpush1.msra.mxu0 %v776
        %2792 = vmatprep.subr.mxu0 0.0
        %2793 = vmatpush2.msra.mxu0 %v807
        %2794 = vmatprep.subr.mxu0 0.0
        %2795 = vmatpush2.msra.mxu0 %v806
        %2796 = vmatprep.subr.mxu0 0.0
        %2797 = vmatpush2.msra.mxu0 %v805
        %2798 = vmatprep.subr.mxu0 0.0
        %2799 = vmatpush2.msra.mxu0 %v804
        %2800 = vmatprep.subr.mxu0 0.0
        %2801 = vmatpush2.msra.mxu0 %v803
        %2802 = vmatprep.subr.mxu0 0.0
        %2803 = vmatpush2.msra.mxu0 %v802
        %2804 = vmatprep.subr.mxu0 0.0
        %2805 = vmatpush2.msra.mxu0 %v801
        %2806 = vmatprep.subr.mxu0 0.0
        %2807 = vmatpush2.msra.mxu0 %v800
        %2808 = vmatprep.subr.mxu0 0.0
        %2809 = vmatpush2.msra.mxu0 %v799
        %2810 = vmatprep.subr.mxu0 0.0
        %2811 = vmatpush2.msra.mxu0 %v798
        %2812 = vmatprep.subr.mxu0 0.0
        %2813 = vmatpush2.msra.mxu0 %v797
        %2814 = vmatprep.subr.mxu0 0.0
        %2815 = vmatpush2.msra.mxu0 %v796
        %2816 = vmatprep.subr.mxu0 0.0
        %2817 = vmatpush2.msra.mxu0 %v795
        %2818 = vmatprep.subr.mxu0 0.0
        %2819 = vmatpush2.msra.mxu0 %v794
        %2820 = vmatprep.subr.mxu0 0.0
        %2821 = vmatpush2.msra.mxu0 %v793
        %2822 = vmatprep.subr.mxu0 0.0
        %2823 = vmatpush2.msra.mxu0 %v792
        %2824 = vmatprep.mubr.f32.mxu0 %v1455
        %2825 = vmatmul.mubr.f32.gmra.mxu0 %v1447
        %v2826 = vpop.f32.mrf.mxu0
        %v2827 = vadd.f32 %v2757, %v2826
        %v2828 = vpop.f32.mrf.mxu0
        %2829 = vdwg.mxu0
        %2830 = vmatprep.subr.mxu0 0.0
        %2831 = vmatpush1.msra.mxu0 %v823
        %2832 = vmatprep.subr.mxu0 0.0
        %2833 = vmatpush1.msra.mxu0 %v822
        %2834 = vmatprep.subr.mxu0 0.0
        %2835 = vmatpush1.msra.mxu0 %v821
        %2836 = vmatprep.subr.mxu0 0.0
        %2837 = vmatpush1.msra.mxu0 %v820
        %2838 = vmatprep.subr.mxu0 0.0
        %2839 = vmatpush1.msra.mxu0 %v819
        %2840 = vmatprep.subr.mxu0 0.0
        %2841 = vmatpush1.msra.mxu0 %v818
        %2842 = vmatprep.subr.mxu0 0.0
        %2843 = vmatpush1.msra.mxu0 %v817
        %2844 = vmatprep.subr.mxu0 0.0
        %2845 = vmatpush1.msra.mxu0 %v816
        %2846 = vmatprep.subr.mxu0 0.0
        %2847 = vmatpush1.msra.mxu0 %v815
        %2848 = vmatprep.subr.mxu0 0.0
        %2849 = vmatpush1.msra.mxu0 %v814
        %2850 = vmatprep.subr.mxu0 0.0
        %2851 = vmatpush1.msra.mxu0 %v813
        %2852 = vmatprep.subr.mxu0 0.0
        %2853 = vmatpush1.msra.mxu0 %v812
        %2854 = vmatprep.subr.mxu0 0.0
        %2855 = vmatpush1.msra.mxu0 %v811
        %2856 = vmatprep.subr.mxu0 0.0
        %2857 = vmatpush1.msra.mxu0 %v810
        %2858 = vmatprep.subr.mxu0 0.0
        %2859 = vmatpush1.msra.mxu0 %v809
        %2860 = vmatprep.subr.mxu0 0.0
        %2861 = vmatpush1.msra.mxu0 %v808
        %2862 = vmatprep.subr.mxu0 0.0
        %2863 = vmatpush2.msra.mxu0 %v839
        %2864 = vmatprep.subr.mxu0 0.0
        %2865 = vmatpush2.msra.mxu0 %v838
        %2866 = vmatprep.subr.mxu0 0.0
        %2867 = vmatpush2.msra.mxu0 %v837
        %2868 = vmatprep.subr.mxu0 0.0
        %2869 = vmatpush2.msra.mxu0 %v836
        %2870 = vmatprep.subr.mxu0 0.0
        %2871 = vmatpush2.msra.mxu0 %v835
        %2872 = vmatprep.subr.mxu0 0.0
        %2873 = vmatpush2.msra.mxu0 %v834
        %2874 = vmatprep.subr.mxu0 0.0
        %2875 = vmatpush2.msra.mxu0 %v833
        %2876 = vmatprep.subr.mxu0 0.0
        %2877 = vmatpush2.msra.mxu0 %v832
        %2878 = vmatprep.subr.mxu0 0.0
        %2879 = vmatpush2.msra.mxu0 %v831
        %2880 = vmatprep.subr.mxu0 0.0
        %2881 = vmatpush2.msra.mxu0 %v830
        %2882 = vmatprep.subr.mxu0 0.0
        %2883 = vmatpush2.msra.mxu0 %v829
        %2884 = vmatprep.subr.mxu0 0.0
        %2885 = vmatpush2.msra.mxu0 %v828
        %2886 = vmatprep.subr.mxu0 0.0
        %2887 = vmatpush2.msra.mxu0 %v827
        %2888 = vmatprep.subr.mxu0 0.0
        %2889 = vmatpush2.msra.mxu0 %v826
        %2890 = vmatprep.subr.mxu0 0.0
        %2891 = vmatpush2.msra.mxu0 %v825
        %2892 = vmatprep.subr.mxu0 0.0
        %2893 = vmatpush2.msra.mxu0 %v824
        %2894 = vmatprep.mubr.f32.mxu0 %v1456
        %2895 = vmatmul.mubr.f32.gmra.mxu0 %v1454
        %v2896 = vpop.f32.mrf.mxu0
        %v2897 = vadd.f32 %v2827, %v2896
        %v2898 = vpop.f32.mrf.mxu0
        %2899 = vdwg.mxu0
        %2900 = vmatprep.subr.mxu0 0.0
        %2901 = vmatpush1.msra.mxu0 %v855
        %2902 = vmatprep.subr.mxu0 0.0
        %2903 = vmatpush1.msra.mxu0 %v854
        %2904 = vmatprep.subr.mxu0 0.0
        %2905 = vmatpush1.msra.mxu0 %v853
        %2906 = vmatprep.subr.mxu0 0.0
        %2907 = vmatpush1.msra.mxu0 %v852
        %2908 = vmatprep.subr.mxu0 0.0
        %2909 = vmatpush1.msra.mxu0 %v851
        %2910 = vmatprep.subr.mxu0 0.0
        %2911 = vmatpush1.msra.mxu0 %v850
        %2912 = vmatprep.subr.mxu0 0.0
        %2913 = vmatpush1.msra.mxu0 %v849
        %2914 = vmatprep.subr.mxu0 0.0
        %2915 = vmatpush1.msra.mxu0 %v848
        %2916 = vmatprep.subr.mxu0 0.0
        %2917 = vmatpush1.msra.mxu0 %v847
        %2918 = vmatprep.subr.mxu0 0.0
        %2919 = vmatpush1.msra.mxu0 %v846
        %2920 = vmatprep.subr.mxu0 0.0
        %2921 = vmatpush1.msra.mxu0 %v845
        %2922 = vmatprep.subr.mxu0 0.0
        %2923 = vmatpush1.msra.mxu0 %v844
        %2924 = vmatprep.subr.mxu0 0.0
        %2925 = vmatpush1.msra.mxu0 %v843
        %2926 = vmatprep.subr.mxu0 0.0
        %2927 = vmatpush1.msra.mxu0 %v842
        %2928 = vmatprep.subr.mxu0 0.0
        %2929 = vmatpush1.msra.mxu0 %v841
        %2930 = vmatprep.subr.mxu0 0.0
        %2931 = vmatpush1.msra.mxu0 %v840
        %2932 = vmatprep.subr.mxu0 0.0
        %2933 = vmatpush2.msra.mxu0 %v871
        %2934 = vmatprep.subr.mxu0 0.0
        %2935 = vmatpush2.msra.mxu0 %v870
        %2936 = vmatprep.subr.mxu0 0.0
        %2937 = vmatpush2.msra.mxu0 %v869
        %2938 = vmatprep.subr.mxu0 0.0
        %2939 = vmatpush2.msra.mxu0 %v868
        %2940 = vmatprep.subr.mxu0 0.0
        %2941 = vmatpush2.msra.mxu0 %v867
        %2942 = vmatprep.subr.mxu0 0.0
        %2943 = vmatpush2.msra.mxu0 %v866
        %2944 = vmatprep.subr.mxu0 0.0
        %2945 = vmatpush2.msra.mxu0 %v865
        %2946 = vmatprep.subr.mxu0 0.0
        %2947 = vmatpush2.msra.mxu0 %v864
        %2948 = vmatprep.subr.mxu0 0.0
        %2949 = vmatpush2.msra.mxu0 %v863
        %2950 = vmatprep.subr.mxu0 0.0
        %2951 = vmatpush2.msra.mxu0 %v862
        %2952 = vmatprep.subr.mxu0 0.0
        %2953 = vmatpush2.msra.mxu0 %v861
        %2954 = vmatprep.subr.mxu0 0.0
        %2955 = vmatpush2.msra.mxu0 %v860
        %2956 = vmatprep.subr.mxu0 0.0
        %2957 = vmatpush2.msra.mxu0 %v859
        %2958 = vmatprep.subr.mxu0 0.0
        %2959 = vmatpush2.msra.mxu0 %v858
        %2960 = vmatprep.subr.mxu0 0.0
        %2961 = vmatpush2.msra.mxu0 %v857
        %2962 = vmatprep.subr.mxu0 0.0
        %2963 = vmatpush2.msra.mxu0 %v856
        %2964 = vmatprep.mubr.f32.mxu0 %v1472
        %2965 = vmatmul.mubr.f32.gmra.mxu0 %v1464
        %v2966 = vpop.f32.mrf.mxu0
        %v2967 = vadd.f32 %v2897, %v2966
        %v2968 = vpop.f32.mrf.mxu0
        %2969 = vdwg.mxu0
        %2970 = vmatprep.subr.mxu0 0.0
        %2971 = vmatpush1.msra.mxu0 %v887
        %2972 = vmatprep.subr.mxu0 0.0
        %2973 = vmatpush1.msra.mxu0 %v886
        %2974 = vmatprep.subr.mxu0 0.0
        %2975 = vmatpush1.msra.mxu0 %v885
        %2976 = vmatprep.subr.mxu0 0.0
        %2977 = vmatpush1.msra.mxu0 %v884
        %2978 = vmatprep.subr.mxu0 0.0
        %2979 = vmatpush1.msra.mxu0 %v883
        %2980 = vmatprep.subr.mxu0 0.0
        %2981 = vmatpush1.msra.mxu0 %v882
        %2982 = vmatprep.subr.mxu0 0.0
        %2983 = vmatpush1.msra.mxu0 %v881
        %2984 = vmatprep.subr.mxu0 0.0
        %2985 = vmatpush1.msra.mxu0 %v880
        %2986 = vmatprep.subr.mxu0 0.0
        %2987 = vmatpush1.msra.mxu0 %v879
        %2988 = vmatprep.subr.mxu0 0.0
        %2989 = vmatpush1.msra.mxu0 %v878
        %2990 = vmatprep.subr.mxu0 0.0
        %2991 = vmatpush1.msra.mxu0 %v877
        %2992 = vmatprep.subr.mxu0 0.0
        %2993 = vmatpush1.msra.mxu0 %v876
        %2994 = vmatprep.subr.mxu0 0.0
        %2995 = vmatpush1.msra.mxu0 %v875
        %2996 = vmatprep.subr.mxu0 0.0
        %2997 = vmatpush1.msra.mxu0 %v874
        %2998 = vmatprep.subr.mxu0 0.0
        %2999 = vmatpush1.msra.mxu0 %v873
        %3000 = vmatprep.subr.mxu0 0.0
        %3001 = vmatpush1.msra.mxu0 %v872
        %3002 = vmatprep.subr.mxu0 0.0
        %3003 = vmatpush2.msra.mxu0 %v903
        %3004 = vmatprep.subr.mxu0 0.0
        %3005 = vmatpush2.msra.mxu0 %v902
        %3006 = vmatprep.subr.mxu0 0.0
        %3007 = vmatpush2.msra.mxu0 %v901
        %3008 = vmatprep.subr.mxu0 0.0
        %3009 = vmatpush2.msra.mxu0 %v900
        %3010 = vmatprep.subr.mxu0 0.0
        %3011 = vmatpush2.msra.mxu0 %v899
        %3012 = vmatprep.subr.mxu0 0.0
        %3013 = vmatpush2.msra.mxu0 %v898
        %3014 = vmatprep.subr.mxu0 0.0
        %3015 = vmatpush2.msra.mxu0 %v897
        %3016 = vmatprep.subr.mxu0 0.0
        %3017 = vmatpush2.msra.mxu0 %v896
        %3018 = vmatprep.subr.mxu0 0.0
        %3019 = vmatpush2.msra.mxu0 %v895
        %3020 = vmatprep.subr.mxu0 0.0
        %3021 = vmatpush2.msra.mxu0 %v894
        %3022 = vmatprep.subr.mxu0 0.0
        %3023 = vmatpush2.msra.mxu0 %v893
        %3024 = vmatprep.subr.mxu0 0.0
        %3025 = vmatpush2.msra.mxu0 %v892
        %3026 = vmatprep.subr.mxu0 0.0
        %3027 = vmatpush2.msra.mxu0 %v891
        %3028 = vmatprep.subr.mxu0 0.0
        %3029 = vmatpush2.msra.mxu0 %v890
        %3030 = vmatprep.subr.mxu0 0.0
        %3031 = vmatpush2.msra.mxu0 %v889
        %3032 = vmatprep.subr.mxu0 0.0
        %3033 = vmatpush2.msra.mxu0 %v888
        %3034 = vmatprep.mubr.f32.mxu0 %v1473
        %3035 = vmatmul.mubr.f32.gmra.mxu0 %v1471
        %v3036 = vpop.f32.mrf.mxu0
        %v3037 = vadd.f32 %v2967, %v3036
        %v3038 = vpop.f32.mrf.mxu0
        %3039 = vdwg.mxu0
        %3040 = vmatprep.subr.mxu0 0.0
        %3041 = vmatpush1.msra.mxu0 %v919
        %3042 = vmatprep.subr.mxu0 0.0
        %3043 = vmatpush1.msra.mxu0 %v918
        %3044 = vmatprep.subr.mxu0 0.0
        %3045 = vmatpush1.msra.mxu0 %v917
        %3046 = vmatprep.subr.mxu0 0.0
        %3047 = vmatpush1.msra.mxu0 %v916
        %3048 = vmatprep.subr.mxu0 0.0
        %3049 = vmatpush1.msra.mxu0 %v915
        %3050 = vmatprep.subr.mxu0 0.0
        %3051 = vmatpush1.msra.mxu0 %v914
        %3052 = vmatprep.subr.mxu0 0.0
        %3053 = vmatpush1.msra.mxu0 %v913
        %3054 = vmatprep.subr.mxu0 0.0
        %3055 = vmatpush1.msra.mxu0 %v912
        %3056 = vmatprep.subr.mxu0 0.0
        %3057 = vmatpush1.msra.mxu0 %v911
        %3058 = vmatprep.subr.mxu0 0.0
        %3059 = vmatpush1.msra.mxu0 %v910
        %3060 = vmatprep.subr.mxu0 0.0
        %3061 = vmatpush1.msra.mxu0 %v909
        %3062 = vmatprep.subr.mxu0 0.0
        %3063 = vmatpush1.msra.mxu0 %v908
        %3064 = vmatprep.subr.mxu0 0.0
        %3065 = vmatpush1.msra.mxu0 %v907
        %3066 = vmatprep.subr.mxu0 0.0
        %3067 = vmatpush1.msra.mxu0 %v906
        %3068 = vmatprep.subr.mxu0 0.0
        %3069 = vmatpush1.msra.mxu0 %v905
        %3070 = vmatprep.subr.mxu0 0.0
        %3071 = vmatpush1.msra.mxu0 %v904
        %3072 = vmatprep.subr.mxu0 0.0
        %3073 = vmatpush2.msra.mxu0 %v935
        %3074 = vmatprep.subr.mxu0 0.0
        %3075 = vmatpush2.msra.mxu0 %v934
        %3076 = vmatprep.subr.mxu0 0.0
        %3077 = vmatpush2.msra.mxu0 %v933
        %3078 = vmatprep.subr.mxu0 0.0
        %3079 = vmatpush2.msra.mxu0 %v932
        %3080 = vmatprep.subr.mxu0 0.0
        %3081 = vmatpush2.msra.mxu0 %v931
        %3082 = vmatprep.subr.mxu0 0.0
        %3083 = vmatpush2.msra.mxu0 %v930
        %3084 = vmatprep.subr.mxu0 0.0
        %3085 = vmatpush2.msra.mxu0 %v929
        %3086 = vmatprep.subr.mxu0 0.0
        %3087 = vmatpush2.msra.mxu0 %v928
        %3088 = vmatprep.subr.mxu0 0.0
        %3089 = vmatpush2.msra.mxu0 %v927
        %3090 = vmatprep.subr.mxu0 0.0
        %3091 = vmatpush2.msra.mxu0 %v926
        %3092 = vmatprep.subr.mxu0 0.0
        %3093 = vmatpush2.msra.mxu0 %v925
        %3094 = vmatprep.subr.mxu0 0.0
        %3095 = vmatpush2.msra.mxu0 %v924
        %3096 = vmatprep.subr.mxu0 0.0
        %3097 = vmatpush2.msra.mxu0 %v923
        %3098 = vmatprep.subr.mxu0 0.0
        %3099 = vmatpush2.msra.mxu0 %v922
        %3100 = vmatprep.subr.mxu0 0.0
        %3101 = vmatpush2.msra.mxu0 %v921
        %3102 = vmatprep.subr.mxu0 0.0
        %3103 = vmatpush2.msra.mxu0 %v920
        %3104 = vmatprep.mubr.f32.mxu0 %v1489
        %3105 = vmatmul.mubr.f32.gmra.mxu0 %v1481
        %v3106 = vpop.f32.mrf.mxu0
        %v3107 = vadd.f32 %v3037, %v3106
        %v3108 = vpop.f32.mrf.mxu0
        %3109 = vdwg.mxu0
        %3110 = vmatprep.subr.mxu0 0.0
        %3111 = vmatpush1.msra.mxu0 %v951
        %3112 = vmatprep.subr.mxu0 0.0
        %3113 = vmatpush1.msra.mxu0 %v950
        %3114 = vmatprep.subr.mxu0 0.0
        %3115 = vmatpush1.msra.mxu0 %v949
        %3116 = vmatprep.subr.mxu0 0.0
        %3117 = vmatpush1.msra.mxu0 %v948
        %3118 = vmatprep.subr.mxu0 0.0
        %3119 = vmatpush1.msra.mxu0 %v947
        %3120 = vmatprep.subr.mxu0 0.0
        %3121 = vmatpush1.msra.mxu0 %v946
        %3122 = vmatprep.subr.mxu0 0.0
        %3123 = vmatpush1.msra.mxu0 %v945
        %3124 = vmatprep.subr.mxu0 0.0
        %3125 = vmatpush1.msra.mxu0 %v944
        %3126 = vmatprep.subr.mxu0 0.0
        %3127 = vmatpush1.msra.mxu0 %v943
        %3128 = vmatprep.subr.mxu0 0.0
        %3129 = vmatpush1.msra.mxu0 %v942
        %3130 = vmatprep.subr.mxu0 0.0
        %3131 = vmatpush1.msra.mxu0 %v941
        %3132 = vmatprep.subr.mxu0 0.0
        %3133 = vmatpush1.msra.mxu0 %v940
        %3134 = vmatprep.subr.mxu0 0.0
        %3135 = vmatpush1.msra.mxu0 %v939
        %3136 = vmatprep.subr.mxu0 0.0
        %3137 = vmatpush1.msra.mxu0 %v938
        %3138 = vmatprep.subr.mxu0 0.0
        %3139 = vmatpush1.msra.mxu0 %v937
        %3140 = vmatprep.subr.mxu0 0.0
        %3141 = vmatpush1.msra.mxu0 %v936
        %3142 = vmatprep.subr.mxu0 0.0
        %3143 = vmatpush2.msra.mxu0 %v967
        %3144 = vmatprep.subr.mxu0 0.0
        %3145 = vmatpush2.msra.mxu0 %v966
        %3146 = vmatprep.subr.mxu0 0.0
        %3147 = vmatpush2.msra.mxu0 %v965
        %3148 = vmatprep.subr.mxu0 0.0
        %3149 = vmatpush2.msra.mxu0 %v964
        %3150 = vmatprep.subr.mxu0 0.0
        %3151 = vmatpush2.msra.mxu0 %v963
        %3152 = vmatprep.subr.mxu0 0.0
        %3153 = vmatpush2.msra.mxu0 %v962
        %3154 = vmatprep.subr.mxu0 0.0
        %3155 = vmatpush2.msra.mxu0 %v961
        %3156 = vmatprep.subr.mxu0 0.0
        %3157 = vmatpush2.msra.mxu0 %v960
        %3158 = vmatprep.subr.mxu0 0.0
        %3159 = vmatpush2.msra.mxu0 %v959
        %3160 = vmatprep.subr.mxu0 0.0
        %3161 = vmatpush2.msra.mxu0 %v958
        %3162 = vmatprep.subr.mxu0 0.0
        %3163 = vmatpush2.msra.mxu0 %v957
        %3164 = vmatprep.subr.mxu0 0.0
        %3165 = vmatpush2.msra.mxu0 %v956
        %3166 = vmatprep.subr.mxu0 0.0
        %3167 = vmatpush2.msra.mxu0 %v955
        %3168 = vmatprep.subr.mxu0 0.0
        %3169 = vmatpush2.msra.mxu0 %v954
        %3170 = vmatprep.subr.mxu0 0.0
        %3171 = vmatpush2.msra.mxu0 %v953
        %3172 = vmatprep.subr.mxu0 0.0
        %3173 = vmatpush2.msra.mxu0 %v952
        %3174 = vmatprep.mubr.f32.mxu0 %v1490
        %3175 = vmatmul.mubr.f32.gmra.mxu0 %v1488
        %v3176 = vpop.f32.mrf.mxu0
        %v3177 = vadd.f32 %v3107, %v3176
        %v3178 = vpop.f32.mrf.mxu0
        %3179 = vdwg.mxu0
        %3180 = vmatprep.subr.mxu0 0.0
        %3181 = vmatpush1.msra.mxu0 %v983
        %3182 = vmatprep.subr.mxu0 0.0
        %3183 = vmatpush1.msra.mxu0 %v982
        %3184 = vmatprep.subr.mxu0 0.0
        %3185 = vmatpush1.msra.mxu0 %v981
        %3186 = vmatprep.subr.mxu0 0.0
        %3187 = vmatpush1.msra.mxu0 %v980
        %3188 = vmatprep.subr.mxu0 0.0
        %3189 = vmatpush1.msra.mxu0 %v979
        %3190 = vmatprep.subr.mxu0 0.0
        %3191 = vmatpush1.msra.mxu0 %v978
        %3192 = vmatprep.subr.mxu0 0.0
        %3193 = vmatpush1.msra.mxu0 %v977
        %3194 = vmatprep.subr.mxu0 0.0
        %3195 = vmatpush1.msra.mxu0 %v976
        %3196 = vmatprep.subr.mxu0 0.0
        %3197 = vmatpush1.msra.mxu0 %v975
        %3198 = vmatprep.subr.mxu0 0.0
        %3199 = vmatpush1.msra.mxu0 %v974
        %3200 = vmatprep.subr.mxu0 0.0
        %3201 = vmatpush1.msra.mxu0 %v973
        %3202 = vmatprep.subr.mxu0 0.0
        %3203 = vmatpush1.msra.mxu0 %v972
        %3204 = vmatprep.subr.mxu0 0.0
        %3205 = vmatpush1.msra.mxu0 %v971
        %3206 = vmatprep.subr.mxu0 0.0
        %3207 = vmatpush1.msra.mxu0 %v970
        %3208 = vmatprep.subr.mxu0 0.0
        %3209 = vmatpush1.msra.mxu0 %v969
        %3210 = vmatprep.subr.mxu0 0.0
        %3211 = vmatpush1.msra.mxu0 %v968
        %3212 = vmatprep.subr.mxu0 0.0
        %3213 = vmatpush2.msra.mxu0 %v999
        %3214 = vmatprep.subr.mxu0 0.0
        %3215 = vmatpush2.msra.mxu0 %v998
        %3216 = vmatprep.subr.mxu0 0.0
        %3217 = vmatpush2.msra.mxu0 %v997
        %3218 = vmatprep.subr.mxu0 0.0
        %3219 = vmatpush2.msra.mxu0 %v996
        %3220 = vmatprep.subr.mxu0 0.0
        %3221 = vmatpush2.msra.mxu0 %v995
        %3222 = vmatprep.subr.mxu0 0.0
        %3223 = vmatpush2.msra.mxu0 %v994
        %3224 = vmatprep.subr.mxu0 0.0
        %3225 = vmatpush2.msra.mxu0 %v993
        %3226 = vmatprep.subr.mxu0 0.0
        %3227 = vmatpush2.msra.mxu0 %v992
        %3228 = vmatprep.subr.mxu0 0.0
        %3229 = vmatpush2.msra.mxu0 %v991
        %3230 = vmatprep.subr.mxu0 0.0
        %3231 = vmatpush2.msra.mxu0 %v990
        %3232 = vmatprep.subr.mxu0 0.0
        %3233 = vmatpush2.msra.mxu0 %v989
        %3234 = vmatprep.subr.mxu0 0.0
        %3235 = vmatpush2.msra.mxu0 %v988
        %3236 = vmatprep.subr.mxu0 0.0
        %3237 = vmatpush2.msra.mxu0 %v987
        %3238 = vmatprep.subr.mxu0 0.0
        %3239 = vmatpush2.msra.mxu0 %v986
        %3240 = vmatprep.subr.mxu0 0.0
        %3241 = vmatpush2.msra.mxu0 %v985
        %3242 = vmatprep.subr.mxu0 0.0
        %3243 = vmatpush2.msra.mxu0 %v984
        %3244 = vmatprep.mubr.f32.mxu0 %v1506
        %3245 = vmatmul.mubr.f32.gmra.mxu0 %v1498
        %v3246 = vpop.f32.mrf.mxu0
        %v3247 = vadd.f32 %v3177, %v3246
        %v3248 = vpop.f32.mrf.mxu0
        %3249 = vdwg.mxu0
        %3250 = vmatprep.subr.mxu0 0.0
        %3251 = vmatpush1.msra.mxu0 %v1015
        %3252 = vmatprep.subr.mxu0 0.0
        %3253 = vmatpush1.msra.mxu0 %v1014
        %3254 = vmatprep.subr.mxu0 0.0
        %3255 = vmatpush1.msra.mxu0 %v1013
        %3256 = vmatprep.subr.mxu0 0.0
        %3257 = vmatpush1.msra.mxu0 %v1012
        %3258 = vmatprep.subr.mxu0 0.0
        %3259 = vmatpush1.msra.mxu0 %v1011
        %3260 = vmatprep.subr.mxu0 0.0
        %3261 = vmatpush1.msra.mxu0 %v1010
        %3262 = vmatprep.subr.mxu0 0.0
        %3263 = vmatpush1.msra.mxu0 %v1009
        %3264 = vmatprep.subr.mxu0 0.0
        %3265 = vmatpush1.msra.mxu0 %v1008
        %3266 = vmatprep.subr.mxu0 0.0
        %3267 = vmatpush1.msra.mxu0 %v1007
        %3268 = vmatprep.subr.mxu0 0.0
        %3269 = vmatpush1.msra.mxu0 %v1006
        %3270 = vmatprep.subr.mxu0 0.0
        %3271 = vmatpush1.msra.mxu0 %v1005
        %3272 = vmatprep.subr.mxu0 0.0
        %3273 = vmatpush1.msra.mxu0 %v1004
        %3274 = vmatprep.subr.mxu0 0.0
        %3275 = vmatpush1.msra.mxu0 %v1003
        %3276 = vmatprep.subr.mxu0 0.0
        %3277 = vmatpush1.msra.mxu0 %v1002
        %3278 = vmatprep.subr.mxu0 0.0
        %3279 = vmatpush1.msra.mxu0 %v1001
        %3280 = vmatprep.subr.mxu0 0.0
        %3281 = vmatpush1.msra.mxu0 %v1000
        %3282 = vmatprep.subr.mxu0 0.0
        %3283 = vmatpush2.msra.mxu0 %v1031
        %3284 = vmatprep.subr.mxu0 0.0
        %3285 = vmatpush2.msra.mxu0 %v1030
        %3286 = vmatprep.subr.mxu0 0.0
        %3287 = vmatpush2.msra.mxu0 %v1029
        %3288 = vmatprep.subr.mxu0 0.0
        %3289 = vmatpush2.msra.mxu0 %v1028
        %3290 = vmatprep.subr.mxu0 0.0
        %3291 = vmatpush2.msra.mxu0 %v1027
        %3292 = vmatprep.subr.mxu0 0.0
        %3293 = vmatpush2.msra.mxu0 %v1026
        %3294 = vmatprep.subr.mxu0 0.0
        %3295 = vmatpush2.msra.mxu0 %v1025
        %3296 = vmatprep.subr.mxu0 0.0
        %3297 = vmatpush2.msra.mxu0 %v1024
        %3298 = vmatprep.subr.mxu0 0.0
        %3299 = vmatpush2.msra.mxu0 %v1023
        %3300 = vmatprep.subr.mxu0 0.0
        %3301 = vmatpush2.msra.mxu0 %v1022
        %3302 = vmatprep.subr.mxu0 0.0
        %3303 = vmatpush2.msra.mxu0 %v1021
        %3304 = vmatprep.subr.mxu0 0.0
        %3305 = vmatpush2.msra.mxu0 %v1020
        %3306 = vmatprep.subr.mxu0 0.0
        %3307 = vmatpush2.msra.mxu0 %v1019
        %3308 = vmatprep.subr.mxu0 0.0
        %3309 = vmatpush2.msra.mxu0 %v1018
        %3310 = vmatprep.subr.mxu0 0.0
        %3311 = vmatpush2.msra.mxu0 %v1017
        %3312 = vmatprep.subr.mxu0 0.0
        %3313 = vmatpush2.msra.mxu0 %v1016
        %3314 = vmatprep.mubr.f32.mxu0 %v1507
        %3315 = vmatmul.mubr.f32.gmra.mxu0 %v1505
        %v3316 = vpop.f32.mrf.mxu0
        %v3317 = vadd.f32 %v3247, %v3316
        %v3318 = vpop.f32.mrf.mxu0
        %3319 = vdwg.mxu0
        %3320 = vmatprep.subr.mxu0 0.0
        %3321 = vmatpush1.msra.mxu0 %v1047
        %3322 = vmatprep.subr.mxu0 0.0
        %3323 = vmatpush1.msra.mxu0 %v1046
        %3324 = vmatprep.subr.mxu0 0.0
        %3325 = vmatpush1.msra.mxu0 %v1045
        %3326 = vmatprep.subr.mxu0 0.0
        %3327 = vmatpush1.msra.mxu0 %v1044
        %3328 = vmatprep.subr.mxu0 0.0
        %3329 = vmatpush1.msra.mxu0 %v1043
        %3330 = vmatprep.subr.mxu0 0.0
        %3331 = vmatpush1.msra.mxu0 %v1042
        %3332 = vmatprep.subr.mxu0 0.0
        %3333 = vmatpush1.msra.mxu0 %v1041
        %3334 = vmatprep.subr.mxu0 0.0
        %3335 = vmatpush1.msra.mxu0 %v1040
        %3336 = vmatprep.subr.mxu0 0.0
        %3337 = vmatpush1.msra.mxu0 %v1039
        %3338 = vmatprep.subr.mxu0 0.0
        %3339 = vmatpush1.msra.mxu0 %v1038
        %3340 = vmatprep.subr.mxu0 0.0
        %3341 = vmatpush1.msra.mxu0 %v1037
        %3342 = vmatprep.subr.mxu0 0.0
        %3343 = vmatpush1.msra.mxu0 %v1036
        %3344 = vmatprep.subr.mxu0 0.0
        %3345 = vmatpush1.msra.mxu0 %v1035
        %3346 = vmatprep.subr.mxu0 0.0
        %3347 = vmatpush1.msra.mxu0 %v1034
        %3348 = vmatprep.subr.mxu0 0.0
        %3349 = vmatpush1.msra.mxu0 %v1033
        %3350 = vmatprep.subr.mxu0 0.0
        %3351 = vmatpush1.msra.mxu0 %v1032
        %3352 = vmatprep.subr.mxu0 0.0
        %3353 = vmatpush2.msra.mxu0 %v1063
        %3354 = vmatprep.subr.mxu0 0.0
        %3355 = vmatpush2.msra.mxu0 %v1062
        %3356 = vmatprep.subr.mxu0 0.0
        %3357 = vmatpush2.msra.mxu0 %v1061
        %3358 = vmatprep.subr.mxu0 0.0
        %3359 = vmatpush2.msra.mxu0 %v1060
        %3360 = vmatprep.subr.mxu0 0.0
        %3361 = vmatpush2.msra.mxu0 %v1059
        %3362 = vmatprep.subr.mxu0 0.0
        %3363 = vmatpush2.msra.mxu0 %v1058
        %3364 = vmatprep.subr.mxu0 0.0
        %3365 = vmatpush2.msra.mxu0 %v1057
        %3366 = vmatprep.subr.mxu0 0.0
        %3367 = vmatpush2.msra.mxu0 %v1056
        %3368 = vmatprep.subr.mxu0 0.0
        %3369 = vmatpush2.msra.mxu0 %v1055
        %3370 = vmatprep.subr.mxu0 0.0
        %3371 = vmatpush2.msra.mxu0 %v1054
        %3372 = vmatprep.subr.mxu0 0.0
        %3373 = vmatpush2.msra.mxu0 %v1053
        %3374 = vmatprep.subr.mxu0 0.0
        %3375 = vmatpush2.msra.mxu0 %v1052
        %3376 = vmatprep.subr.mxu0 0.0
        %3377 = vmatpush2.msra.mxu0 %v1051
        %3378 = vmatprep.subr.mxu0 0.0
        %3379 = vmatpush2.msra.mxu0 %v1050
        %3380 = vmatprep.subr.mxu0 0.0
        %3381 = vmatpush2.msra.mxu0 %v1049
        %3382 = vmatprep.subr.mxu0 0.0
        %3383 = vmatpush2.msra.mxu0 %v1048
        %3384 = vmatprep.mubr.f32.mxu0 %v1523
        %3385 = vmatmul.mubr.f32.gmra.mxu0 %v1515
        %v3386 = vpop.f32.mrf.mxu0
        %v3387 = vadd.f32 %v3317, %v3386
        %v3388 = vpop.f32.mrf.mxu0
        %3389 = vdwg.mxu0
        %3390 = vmatprep.subr.mxu0 0.0
        %3391 = vmatpush1.msra.mxu0 %v1079
        %3392 = vmatprep.subr.mxu0 0.0
        %3393 = vmatpush1.msra.mxu0 %v1078
        %3394 = vmatprep.subr.mxu0 0.0
        %3395 = vmatpush1.msra.mxu0 %v1077
        %3396 = vmatprep.subr.mxu0 0.0
        %3397 = vmatpush1.msra.mxu0 %v1076
        %3398 = vmatprep.subr.mxu0 0.0
        %3399 = vmatpush1.msra.mxu0 %v1075
        %3400 = vmatprep.subr.mxu0 0.0
        %3401 = vmatpush1.msra.mxu0 %v1074
        %3402 = vmatprep.subr.mxu0 0.0
        %3403 = vmatpush1.msra.mxu0 %v1073
        %3404 = vmatprep.subr.mxu0 0.0
        %3405 = vmatpush1.msra.mxu0 %v1072
        %3406 = vmatprep.subr.mxu0 0.0
        %3407 = vmatpush1.msra.mxu0 %v1071
        %3408 = vmatprep.subr.mxu0 0.0
        %3409 = vmatpush1.msra.mxu0 %v1070
        %3410 = vmatprep.subr.mxu0 0.0
        %3411 = vmatpush1.msra.mxu0 %v1069
        %3412 = vmatprep.subr.mxu0 0.0
        %3413 = vmatpush1.msra.mxu0 %v1068
        %3414 = vmatprep.subr.mxu0 0.0
        %3415 = vmatpush1.msra.mxu0 %v1067
        %3416 = vmatprep.subr.mxu0 0.0
        %3417 = vmatpush1.msra.mxu0 %v1066
        %3418 = vmatprep.subr.mxu0 0.0
        %3419 = vmatpush1.msra.mxu0 %v1065
        %3420 = vmatprep.subr.mxu0 0.0
        %3421 = vmatpush1.msra.mxu0 %v1064
        %3422 = vmatprep.subr.mxu0 0.0
        %3423 = vmatpush2.msra.mxu0 %v1095
        %3424 = vmatprep.subr.mxu0 0.0
        %3425 = vmatpush2.msra.mxu0 %v1094
        %3426 = vmatprep.subr.mxu0 0.0
        %3427 = vmatpush2.msra.mxu0 %v1093
        %3428 = vmatprep.subr.mxu0 0.0
        %3429 = vmatpush2.msra.mxu0 %v1092
        %3430 = vmatprep.subr.mxu0 0.0
        %3431 = vmatpush2.msra.mxu0 %v1091
        %3432 = vmatprep.subr.mxu0 0.0
        %3433 = vmatpush2.msra.mxu0 %v1090
        %3434 = vmatprep.subr.mxu0 0.0
        %3435 = vmatpush2.msra.mxu0 %v1089
        %3436 = vmatprep.subr.mxu0 0.0
        %3437 = vmatpush2.msra.mxu0 %v1088
        %3438 = vmatprep.subr.mxu0 0.0
        %3439 = vmatpush2.msra.mxu0 %v1087
        %3440 = vmatprep.subr.mxu0 0.0
        %3441 = vmatpush2.msra.mxu0 %v1086
        %3442 = vmatprep.subr.mxu0 0.0
        %3443 = vmatpush2.msra.mxu0 %v1085
        %3444 = vmatprep.subr.mxu0 0.0
        %3445 = vmatpush2.msra.mxu0 %v1084
        %3446 = vmatprep.subr.mxu0 0.0
        %3447 = vmatpush2.msra.mxu0 %v1083
        %3448 = vmatprep.subr.mxu0 0.0
        %3449 = vmatpush2.msra.mxu0 %v1082
        %3450 = vmatprep.subr.mxu0 0.0
        %3451 = vmatpush2.msra.mxu0 %v1081
        %3452 = vmatprep.subr.mxu0 0.0
        %3453 = vmatpush2.msra.mxu0 %v1080
        %3454 = vmatprep.mubr.f32.mxu0 %v1524
        %3455 = vmatmul.mubr.f32.gmra.mxu0 %v1522
        %v3456 = vpop.f32.mrf.mxu0
        %v3457 = vadd.f32 %v3387, %v3456
        %v3458 = vpop.f32.mrf.mxu0
        %3459 = vdwg.mxu0
        %3460 = vmatprep.subr.mxu0 0.0
        %3461 = vmatpush1.msra.mxu0 %v1111
        %3462 = vmatprep.subr.mxu0 0.0
        %3463 = vmatpush1.msra.mxu0 %v1110
        %3464 = vmatprep.subr.mxu0 0.0
        %3465 = vmatpush1.msra.mxu0 %v1109
        %3466 = vmatprep.subr.mxu0 0.0
        %3467 = vmatpush1.msra.mxu0 %v1108
        %3468 = vmatprep.subr.mxu0 0.0
        %3469 = vmatpush1.msra.mxu0 %v1107
        %3470 = vmatprep.subr.mxu0 0.0
        %3471 = vmatpush1.msra.mxu0 %v1106
        %3472 = vmatprep.subr.mxu0 0.0
        %3473 = vmatpush1.msra.mxu0 %v1105
        %3474 = vmatprep.subr.mxu0 0.0
        %3475 = vmatpush1.msra.mxu0 %v1104
        %3476 = vmatprep.subr.mxu0 0.0
        %3477 = vmatpush1.msra.mxu0 %v1103
        %3478 = vmatprep.subr.mxu0 0.0
        %3479 = vmatpush1.msra.mxu0 %v1102
        %3480 = vmatprep.subr.mxu0 0.0
        %3481 = vmatpush1.msra.mxu0 %v1101
        %3482 = vmatprep.subr.mxu0 0.0
        %3483 = vmatpush1.msra.mxu0 %v1100
        %3484 = vmatprep.subr.mxu0 0.0
        %3485 = vmatpush1.msra.mxu0 %v1099
        %3486 = vmatprep.subr.mxu0 0.0
        %3487 = vmatpush1.msra.mxu0 %v1098
        %3488 = vmatprep.subr.mxu0 0.0
        %3489 = vmatpush1.msra.mxu0 %v1097
        %3490 = vmatprep.subr.mxu0 0.0
        %3491 = vmatpush1.msra.mxu0 %v1096
        %3492 = vmatprep.subr.mxu0 0.0
        %3493 = vmatpush2.msra.mxu0 %v1127
        %3494 = vmatprep.subr.mxu0 0.0
        %3495 = vmatpush2.msra.mxu0 %v1126
        %3496 = vmatprep.subr.mxu0 0.0
        %3497 = vmatpush2.msra.mxu0 %v1125
        %3498 = vmatprep.subr.mxu0 0.0
        %3499 = vmatpush2.msra.mxu0 %v1124
        %3500 = vmatprep.subr.mxu0 0.0
        %3501 = vmatpush2.msra.mxu0 %v1123
        %3502 = vmatprep.subr.mxu0 0.0
        %3503 = vmatpush2.msra.mxu0 %v1122
        %3504 = vmatprep.subr.mxu0 0.0
        %3505 = vmatpush2.msra.mxu0 %v1121
        %3506 = vmatprep.subr.mxu0 0.0
        %3507 = vmatpush2.msra.mxu0 %v1120
        %3508 = vmatprep.subr.mxu0 0.0
        %3509 = vmatpush2.msra.mxu0 %v1119
        %3510 = vmatprep.subr.mxu0 0.0
        %3511 = vmatpush2.msra.mxu0 %v1118
        %3512 = vmatprep.subr.mxu0 0.0
        %3513 = vmatpush2.msra.mxu0 %v1117
        %3514 = vmatprep.subr.mxu0 0.0
        %3515 = vmatpush2.msra.mxu0 %v1116
        %3516 = vmatprep.subr.mxu0 0.0
        %3517 = vmatpush2.msra.mxu0 %v1115
        %3518 = vmatprep.subr.mxu0 0.0
        %3519 = vmatpush2.msra.mxu0 %v1114
        %3520 = vmatprep.subr.mxu0 0.0
        %3521 = vmatpush2.msra.mxu0 %v1113
        %3522 = vmatprep.subr.mxu0 0.0
        %3523 = vmatpush2.msra.mxu0 %v1112
        %3524 = vmatprep.mubr.f32.mxu0 %v1540
        %3525 = vmatmul.mubr.f32.gmra.mxu0 %v1532
        %v3526 = vpop.f32.mrf.mxu0
        %v3527 = vadd.f32 %v3457, %v3526
        %v3528 = vpop.f32.mrf.mxu0
        %3529 = vdwg.mxu0
        %3530 = vmatprep.subr.mxu0 0.0
        %3531 = vmatpush1.msra.mxu0 %v1143
        %3532 = vmatprep.subr.mxu0 0.0
        %3533 = vmatpush1.msra.mxu0 %v1142
        %3534 = vmatprep.subr.mxu0 0.0
        %3535 = vmatpush1.msra.mxu0 %v1141
        %3536 = vmatprep.subr.mxu0 0.0
        %3537 = vmatpush1.msra.mxu0 %v1140
        %3538 = vmatprep.subr.mxu0 0.0
        %3539 = vmatpush1.msra.mxu0 %v1139
        %3540 = vmatprep.subr.mxu0 0.0
        %3541 = vmatpush1.msra.mxu0 %v1138
        %3542 = vmatprep.subr.mxu0 0.0
        %3543 = vmatpush1.msra.mxu0 %v1137
        %3544 = vmatprep.subr.mxu0 0.0
        %3545 = vmatpush1.msra.mxu0 %v1136
        %3546 = vmatprep.subr.mxu0 0.0
        %3547 = vmatpush1.msra.mxu0 %v1135
        %3548 = vmatprep.subr.mxu0 0.0
        %3549 = vmatpush1.msra.mxu0 %v1134
        %3550 = vmatprep.subr.mxu0 0.0
        %3551 = vmatpush1.msra.mxu0 %v1133
        %3552 = vmatprep.subr.mxu0 0.0
        %3553 = vmatpush1.msra.mxu0 %v1132
        %3554 = vmatprep.subr.mxu0 0.0
        %3555 = vmatpush1.msra.mxu0 %v1131
        %3556 = vmatprep.subr.mxu0 0.0
        %3557 = vmatpush1.msra.mxu0 %v1130
        %3558 = vmatprep.subr.mxu0 0.0
        %3559 = vmatpush1.msra.mxu0 %v1129
        %3560 = vmatprep.subr.mxu0 0.0
        %3561 = vmatpush1.msra.mxu0 %v1128
        %3562 = vmatprep.subr.mxu0 0.0
        %3563 = vmatpush2.msra.mxu0 %v1159
        %3564 = vmatprep.subr.mxu0 0.0
        %3565 = vmatpush2.msra.mxu0 %v1158
        %3566 = vmatprep.subr.mxu0 0.0
        %3567 = vmatpush2.msra.mxu0 %v1157
        %3568 = vmatprep.subr.mxu0 0.0
        %3569 = vmatpush2.msra.mxu0 %v1156
        %3570 = vmatprep.subr.mxu0 0.0
        %3571 = vmatpush2.msra.mxu0 %v1155
        %3572 = vmatprep.subr.mxu0 0.0
        %3573 = vmatpush2.msra.mxu0 %v1154
        %3574 = vmatprep.subr.mxu0 0.0
        %3575 = vmatpush2.msra.mxu0 %v1153
        %3576 = vmatprep.subr.mxu0 0.0
        %3577 = vmatpush2.msra.mxu0 %v1152
        %3578 = vmatprep.subr.mxu0 0.0
        %3579 = vmatpush2.msra.mxu0 %v1151
        %3580 = vmatprep.subr.mxu0 0.0
        %3581 = vmatpush2.msra.mxu0 %v1150
        %3582 = vmatprep.subr.mxu0 0.0
        %3583 = vmatpush2.msra.mxu0 %v1149
        %3584 = vmatprep.subr.mxu0 0.0
        %3585 = vmatpush2.msra.mxu0 %v1148
        %3586 = vmatprep.subr.mxu0 0.0
        %3587 = vmatpush2.msra.mxu0 %v1147
        %3588 = vmatprep.subr.mxu0 0.0
        %3589 = vmatpush2.msra.mxu0 %v1146
        %3590 = vmatprep.subr.mxu0 0.0
        %3591 = vmatpush2.msra.mxu0 %v1145
        %3592 = vmatprep.subr.mxu0 0.0
        %3593 = vmatpush2.msra.mxu0 %v1144
        %3594 = vmatprep.mubr.f32.mxu0 %v1541
        %3595 = vmatmul.mubr.f32.gmra.mxu0 %v1539
        %v3596 = vpop.f32.mrf.mxu0
        %v3597 = vadd.f32 %v3527, %v3596
        %v3598 = vpop.f32.mrf.mxu0
        %3599 = vdwg.mxu0
        %3600 = vmatprep.subr.mxu0 0.0
        %3601 = vmatpush1.msra.mxu0 %v1175
        %3602 = vmatprep.subr.mxu0 0.0
        %3603 = vmatpush1.msra.mxu0 %v1174
        %3604 = vmatprep.subr.mxu0 0.0
        %3605 = vmatpush1.msra.mxu0 %v1173
        %3606 = vmatprep.subr.mxu0 0.0
        %3607 = vmatpush1.msra.mxu0 %v1172
        %3608 = vmatprep.subr.mxu0 0.0
        %3609 = vmatpush1.msra.mxu0 %v1171
        %3610 = vmatprep.subr.mxu0 0.0
        %3611 = vmatpush1.msra.mxu0 %v1170
        %3612 = vmatprep.subr.mxu0 0.0
        %3613 = vmatpush1.msra.mxu0 %v1169
        %3614 = vmatprep.subr.mxu0 0.0
        %3615 = vmatpush1.msra.mxu0 %v1168
        %3616 = vmatprep.subr.mxu0 0.0
        %3617 = vmatpush1.msra.mxu0 %v1167
        %3618 = vmatprep.subr.mxu0 0.0
        %3619 = vmatpush1.msra.mxu0 %v1166
        %3620 = vmatprep.subr.mxu0 0.0
        %3621 = vmatpush1.msra.mxu0 %v1165
        %3622 = vmatprep.subr.mxu0 0.0
        %3623 = vmatpush1.msra.mxu0 %v1164
        %3624 = vmatprep.subr.mxu0 0.0
        %3625 = vmatpush1.msra.mxu0 %v1163
        %3626 = vmatprep.subr.mxu0 0.0
        %3627 = vmatpush1.msra.mxu0 %v1162
        %3628 = vmatprep.subr.mxu0 0.0
        %3629 = vmatpush1.msra.mxu0 %v1161
        %3630 = vmatprep.subr.mxu0 0.0
        %3631 = vmatpush1.msra.mxu0 %v1160
        %3632 = vmatprep.subr.mxu0 0.0
        %3633 = vmatpush2.msra.mxu0 %v1191
        %3634 = vmatprep.subr.mxu0 0.0
        %3635 = vmatpush2.msra.mxu0 %v1190
        %3636 = vmatprep.subr.mxu0 0.0
        %3637 = vmatpush2.msra.mxu0 %v1189
        %3638 = vmatprep.subr.mxu0 0.0
        %3639 = vmatpush2.msra.mxu0 %v1188
        %3640 = vmatprep.subr.mxu0 0.0
        %3641 = vmatpush2.msra.mxu0 %v1187
        %3642 = vmatprep.subr.mxu0 0.0
        %3643 = vmatpush2.msra.mxu0 %v1186
        %3644 = vmatprep.subr.mxu0 0.0
        %3645 = vmatpush2.msra.mxu0 %v1185
        %3646 = vmatprep.subr.mxu0 0.0
        %3647 = vmatpush2.msra.mxu0 %v1184
        %3648 = vmatprep.subr.mxu0 0.0
        %3649 = vmatpush2.msra.mxu0 %v1183
        %3650 = vmatprep.subr.mxu0 0.0
        %3651 = vmatpush2.msra.mxu0 %v1182
        %3652 = vmatprep.subr.mxu0 0.0
        %3653 = vmatpush2.msra.mxu0 %v1181
        %3654 = vmatprep.subr.mxu0 0.0
        %3655 = vmatpush2.msra.mxu0 %v1180
        %3656 = vmatprep.subr.mxu0 0.0
        %3657 = vmatpush2.msra.mxu0 %v1179
        %3658 = vmatprep.subr.mxu0 0.0
        %3659 = vmatpush2.msra.mxu0 %v1178
        %3660 = vmatprep.subr.mxu0 0.0
        %3661 = vmatpush2.msra.mxu0 %v1177
        %3662 = vmatprep.subr.mxu0 0.0
        %3663 = vmatpush2.msra.mxu0 %v1176
        %3664 = vmatprep.mubr.f32.mxu0 %v1557
        %3665 = vmatmul.mubr.f32.gmra.mxu0 %v1549
        %v3666 = vpop.f32.mrf.mxu0
        %v3667 = vadd.f32 %v3597, %v3666
        %v3668 = vpop.f32.mrf.mxu0
        %3669 = vdwg.mxu0
        %3670 = vmatprep.subr.mxu0 0.0
        %3671 = vmatpush1.msra.mxu0 %v1207
        %3672 = vmatprep.subr.mxu0 0.0
        %3673 = vmatpush1.msra.mxu0 %v1206
        %3674 = vmatprep.subr.mxu0 0.0
        %3675 = vmatpush1.msra.mxu0 %v1205
        %3676 = vmatprep.subr.mxu0 0.0
        %3677 = vmatpush1.msra.mxu0 %v1204
        %3678 = vmatprep.subr.mxu0 0.0
        %3679 = vmatpush1.msra.mxu0 %v1203
        %3680 = vmatprep.subr.mxu0 0.0
        %3681 = vmatpush1.msra.mxu0 %v1202
        %3682 = vmatprep.subr.mxu0 0.0
        %3683 = vmatpush1.msra.mxu0 %v1201
        %3684 = vmatprep.subr.mxu0 0.0
        %3685 = vmatpush1.msra.mxu0 %v1200
        %3686 = vmatprep.subr.mxu0 0.0
        %3687 = vmatpush1.msra.mxu0 %v1199
        %3688 = vmatprep.subr.mxu0 0.0
        %3689 = vmatpush1.msra.mxu0 %v1198
        %3690 = vmatprep.subr.mxu0 0.0
        %3691 = vmatpush1.msra.mxu0 %v1197
        %3692 = vmatprep.subr.mxu0 0.0
        %3693 = vmatpush1.msra.mxu0 %v1196
        %3694 = vmatprep.subr.mxu0 0.0
        %3695 = vmatpush1.msra.mxu0 %v1195
        %3696 = vmatprep.subr.mxu0 0.0
        %3697 = vmatpush1.msra.mxu0 %v1194
        %3698 = vmatprep.subr.mxu0 0.0
        %3699 = vmatpush1.msra.mxu0 %v1193
        %3700 = vmatprep.subr.mxu0 0.0
        %3701 = vmatpush1.msra.mxu0 %v1192
        %3702 = vmatprep.subr.mxu0 0.0
        %3703 = vmatpush2.msra.mxu0 %v1223
        %3704 = vmatprep.subr.mxu0 0.0
        %3705 = vmatpush2.msra.mxu0 %v1222
        %3706 = vmatprep.subr.mxu0 0.0
        %3707 = vmatpush2.msra.mxu0 %v1221
        %3708 = vmatprep.subr.mxu0 0.0
        %3709 = vmatpush2.msra.mxu0 %v1220
        %3710 = vmatprep.subr.mxu0 0.0
        %3711 = vmatpush2.msra.mxu0 %v1219
        %3712 = vmatprep.subr.mxu0 0.0
        %3713 = vmatpush2.msra.mxu0 %v1218
        %3714 = vmatprep.subr.mxu0 0.0
        %3715 = vmatpush2.msra.mxu0 %v1217
        %3716 = vmatprep.subr.mxu0 0.0
        %3717 = vmatpush2.msra.mxu0 %v1216
        %3718 = vmatprep.subr.mxu0 0.0
        %3719 = vmatpush2.msra.mxu0 %v1215
        %3720 = vmatprep.subr.mxu0 0.0
        %3721 = vmatpush2.msra.mxu0 %v1214
        %3722 = vmatprep.subr.mxu0 0.0
        %3723 = vmatpush2.msra.mxu0 %v1213
        %3724 = vmatprep.subr.mxu0 0.0
        %3725 = vmatpush2.msra.mxu0 %v1212
        %3726 = vmatprep.subr.mxu0 0.0
        %3727 = vmatpush2.msra.mxu0 %v1211
        %3728 = vmatprep.subr.mxu0 0.0
        %3729 = vmatpush2.msra.mxu0 %v1210
        %3730 = vmatprep.subr.mxu0 0.0
        %3731 = vmatpush2.msra.mxu0 %v1209
        %3732 = vmatprep.subr.mxu0 0.0
        %3733 = vmatpush2.msra.mxu0 %v1208
        %3734 = vmatprep.mubr.f32.mxu0 %v1558
        %3735 = vmatmul.mubr.f32.gmra.mxu0 %v1556
        %v3736 = vpop.f32.mrf.mxu0
        %v3737 = vadd.f32 %v3667, %v3736
        %v3738 = vpop.f32.mrf.mxu0
        %3739 = vdwg.mxu0
        %3740 = vmatprep.subr.mxu0 0.0
        %3741 = vmatpush1.msra.mxu0 %v1239
        %3742 = vmatprep.subr.mxu0 0.0
        %3743 = vmatpush1.msra.mxu0 %v1238
        %3744 = vmatprep.subr.mxu0 0.0
        %3745 = vmatpush1.msra.mxu0 %v1237
        %3746 = vmatprep.subr.mxu0 0.0
        %3747 = vmatpush1.msra.mxu0 %v1236
        %3748 = vmatprep.subr.mxu0 0.0
        %3749 = vmatpush1.msra.mxu0 %v1235
        %3750 = vmatprep.subr.mxu0 0.0
        %3751 = vmatpush1.msra.mxu0 %v1234
        %3752 = vmatprep.subr.mxu0 0.0
        %3753 = vmatpush1.msra.mxu0 %v1233
        %3754 = vmatprep.subr.mxu0 0.0
        %3755 = vmatpush1.msra.mxu0 %v1232
        %3756 = vmatprep.subr.mxu0 0.0
        %3757 = vmatpush1.msra.mxu0 %v1231
        %3758 = vmatprep.subr.mxu0 0.0
        %3759 = vmatpush1.msra.mxu0 %v1230
        %3760 = vmatprep.subr.mxu0 0.0
        %3761 = vmatpush1.msra.mxu0 %v1229
        %3762 = vmatprep.subr.mxu0 0.0
        %3763 = vmatpush1.msra.mxu0 %v1228
        %3764 = vmatprep.subr.mxu0 0.0
        %3765 = vmatpush1.msra.mxu0 %v1227
        %3766 = vmatprep.subr.mxu0 0.0
        %3767 = vmatpush1.msra.mxu0 %v1226
        %3768 = vmatprep.subr.mxu0 0.0
        %3769 = vmatpush1.msra.mxu0 %v1225
        %3770 = vmatprep.subr.mxu0 0.0
        %3771 = vmatpush1.msra.mxu0 %v1224
        %3772 = vmatprep.subr.mxu0 0.0
        %3773 = vmatpush2.msra.mxu0 %v1255
        %3774 = vmatprep.subr.mxu0 0.0
        %3775 = vmatpush2.msra.mxu0 %v1254
        %3776 = vmatprep.subr.mxu0 0.0
        %3777 = vmatpush2.msra.mxu0 %v1253
        %3778 = vmatprep.subr.mxu0 0.0
        %3779 = vmatpush2.msra.mxu0 %v1252
        %3780 = vmatprep.subr.mxu0 0.0
        %3781 = vmatpush2.msra.mxu0 %v1251
        %3782 = vmatprep.subr.mxu0 0.0
        %3783 = vmatpush2.msra.mxu0 %v1250
        %3784 = vmatprep.subr.mxu0 0.0
        %3785 = vmatpush2.msra.mxu0 %v1249
        %3786 = vmatprep.subr.mxu0 0.0
        %3787 = vmatpush2.msra.mxu0 %v1248
        %3788 = vmatprep.subr.mxu0 0.0
        %3789 = vmatpush2.msra.mxu0 %v1247
        %3790 = vmatprep.subr.mxu0 0.0
        %3791 = vmatpush2.msra.mxu0 %v1246
        %3792 = vmatprep.subr.mxu0 0.0
        %3793 = vmatpush2.msra.mxu0 %v1245
        %3794 = vmatprep.subr.mxu0 0.0
        %3795 = vmatpush2.msra.mxu0 %v1244
        %3796 = vmatprep.subr.mxu0 0.0
        %3797 = vmatpush2.msra.mxu0 %v1243
        %3798 = vmatprep.subr.mxu0 0.0
        %3799 = vmatpush2.msra.mxu0 %v1242
        %3800 = vmatprep.subr.mxu0 0.0
        %3801 = vmatpush2.msra.mxu0 %v1241
        %3802 = vmatprep.subr.mxu0 0.0
        %3803 = vmatpush2.msra.mxu0 %v1240
        %3804 = vmatprep.mubr.f32.mxu0 %v1574
        %3805 = vmatmul.mubr.f32.gmra.mxu0 %v1566
        %v3806 = vpop.f32.mrf.mxu0
        %v3807 = vadd.f32 %v3737, %v3806
        %v3808 = vpop.f32.mrf.mxu0
        %3809 = vdwg.mxu0
        %3810 = vmatprep.subr.mxu0 0.0
        %3811 = vmatpush1.msra.mxu0 %v1271
        %3812 = vmatprep.subr.mxu0 0.0
        %3813 = vmatpush1.msra.mxu0 %v1270
        %3814 = vmatprep.subr.mxu0 0.0
        %3815 = vmatpush1.msra.mxu0 %v1269
        %3816 = vmatprep.subr.mxu0 0.0
        %3817 = vmatpush1.msra.mxu0 %v1268
        %3818 = vmatprep.subr.mxu0 0.0
        %3819 = vmatpush1.msra.mxu0 %v1267
        %3820 = vmatprep.subr.mxu0 0.0
        %3821 = vmatpush1.msra.mxu0 %v1266
        %3822 = vmatprep.subr.mxu0 0.0
        %3823 = vmatpush1.msra.mxu0 %v1265
        %3824 = vmatprep.subr.mxu0 0.0
        %3825 = vmatpush1.msra.mxu0 %v1264
        %3826 = vmatprep.subr.mxu0 0.0
        %3827 = vmatpush1.msra.mxu0 %v1263
        %3828 = vmatprep.subr.mxu0 0.0
        %3829 = vmatpush1.msra.mxu0 %v1262
        %3830 = vmatprep.subr.mxu0 0.0
        %3831 = vmatpush1.msra.mxu0 %v1261
        %3832 = vmatprep.subr.mxu0 0.0
        %3833 = vmatpush1.msra.mxu0 %v1260
        %3834 = vmatprep.subr.mxu0 0.0
        %3835 = vmatpush1.msra.mxu0 %v1259
        %3836 = vmatprep.subr.mxu0 0.0
        %3837 = vmatpush1.msra.mxu0 %v1258
        %3838 = vmatprep.subr.mxu0 0.0
        %3839 = vmatpush1.msra.mxu0 %v1257
        %3840 = vmatprep.subr.mxu0 0.0
        %3841 = vmatpush1.msra.mxu0 %v1256
        %3842 = vmatprep.subr.mxu0 0.0
        %3843 = vmatpush2.msra.mxu0 %v1287
        %3844 = vmatprep.subr.mxu0 0.0
        %3845 = vmatpush2.msra.mxu0 %v1286
        %3846 = vmatprep.subr.mxu0 0.0
        %3847 = vmatpush2.msra.mxu0 %v1285
        %3848 = vmatprep.subr.mxu0 0.0
        %3849 = vmatpush2.msra.mxu0 %v1284
        %3850 = vmatprep.subr.mxu0 0.0
        %3851 = vmatpush2.msra.mxu0 %v1283
        %3852 = vmatprep.subr.mxu0 0.0
        %3853 = vmatpush2.msra.mxu0 %v1282
        %3854 = vmatprep.subr.mxu0 0.0
        %3855 = vmatpush2.msra.mxu0 %v1281
        %3856 = vmatprep.subr.mxu0 0.0
        %3857 = vmatpush2.msra.mxu0 %v1280
        %3858 = vmatprep.subr.mxu0 0.0
        %3859 = vmatpush2.msra.mxu0 %v1279
        %3860 = vmatprep.subr.mxu0 0.0
        %3861 = vmatpush2.msra.mxu0 %v1278
        %3862 = vmatprep.subr.mxu0 0.0
        %3863 = vmatpush2.msra.mxu0 %v1277
        %3864 = vmatprep.subr.mxu0 0.0
        %3865 = vmatpush2.msra.mxu0 %v1276
        %3866 = vmatprep.subr.mxu0 0.0
        %3867 = vmatpush2.msra.mxu0 %v1275
        %3868 = vmatprep.subr.mxu0 0.0
        %3869 = vmatpush2.msra.mxu0 %v1274
        %3870 = vmatprep.subr.mxu0 0.0
        %3871 = vmatpush2.msra.mxu0 %v1273
        %3872 = vmatprep.subr.mxu0 0.0
        %3873 = vmatpush2.msra.mxu0 %v1272
        %3874 = vmatprep.mubr.f32.mxu0 %v1575
        %3875 = vmatmul.mubr.f32.gmra.mxu0 %v1573
        %v3876 = vpop.f32.mrf.mxu0
        %v3877 = vadd.f32 %v3807, %v3876
        %v3878 = vpop.f32.mrf.mxu0
        %3879 = vdwg.mxu0
        %v3880 = vadd.f32 %v247, %v3877
        %3881 = vst [vmem:[#allocation2] sm:$0x3] %v3880
        %p3882 = scmp.eq.s32.totalorder %s22, 26
        // Predicated region
        $region41: #{complex_encoder.2} parent=31 // pred_check
          %p3883 = pneg %p3882
        $region42: #{complex_encoder.2} parent=31 // pred_check_branch
          %3885 = sbr.rel (%p3883) target = $region44
        $region43: #{complex_encoder.2} parent=31 // pred_region
          %v3886 = vld [vmem:[#allocation2] sm:$0x3]
          %v3887 = vld [vmem:[%s237] sm:$0x1]
          %v3889 = vlaneseq
          %v3890 = vshrl.u32 %v3889, 7
          %v3891 = vsub.s32 0, %v3890
          %v3892 = vrot.slane %v3887, %v3891
          %v3894 = vadd.f32 %v3886, %v3892
          %v3895 = vmax.f32 %v3894, 0.0
          %3896 = vst [vmem:[%s241] sm:$0x3] %v3895
        $region44: #{complex_encoder.2} parent=31 // pred_fallthru
          _
        %p3897 = scmp.lt.s32.totalorder %s21, 1
        %s3898 = scalar_select %p3897, %s21, 1
        %s3899 = smul.addr %s3898, 2
        %s3900 = scalar_lea.vmem %s3, %s3899
        // Predicated region
        $region45: #{complex_encoder.2} parent=31 // pred_check
          %p3901 = pneg %p127
        $region46: #{complex_encoder.2} parent=31 // pred_check_branch
          %3903 = sbr.rel (%p3901) target = $region48
        $region47: #{complex_encoder.2} parent=31 // pred_region
          _
        $region48: #{complex_encoder.2} parent=31 // pred_fallthru
          _
      $region32: #{complex_encoder.2} parent=5 // pred_fallthru
        _
      %p3904 = scmp.le.s32.totalorder 2, %s12
      // Predicated region
      $region49: #{complex_encoder.2} parent=5 // pred_check
        %p3905 = pneg %p3904
      $region50: #{complex_encoder.2} parent=5 // pred_check_branch
        %3907 = sbr.rel (%p3905) target = $region52
      $region51: #{complex_encoder.2} parent=5 // pred_region
        %s3908 = ssub.s32 %s12, 2
        // Predicated region
        $region53: #{complex_encoder.2} parent=51 // pred_check
          %p3909 = pneg %p133
        $region54: #{complex_encoder.2} parent=51 // pred_check_branch
          %3911 = sbr.rel (%p3909) target = $region56
        $region55: #{complex_encoder.2} parent=51 // pred_region
          %p3912 = scmp.lt.s32.totalorder %s23, 1
          %s3913 = scalar_select %p3912, %s23, 1
          %s3914 = smul.addr %s3913, 2
          %s3915 = scalar_lea.vmem %s3, %s3914
        $region56: #{complex_encoder.2} parent=51 // pred_fallthru
          _
      $region52: #{complex_encoder.2} parent=5 // pred_fallthru
        _
    $region6: #{complex_encoder.2} parent=1 // loop_footer
      %s16 = sadd.s32 1, %s12
    $region7: #{complex_encoder.2} parent=1 // loop_footer_branch
      %11 = sbr.rel target = $region3
    $region8: #{complex_encoder.2} parent=1 // loop_exit
      _
    %3916 = vsyncpa [#allocation4], 1
    %s3917 = scalar_lea.sflag [#allocation4], 1
    %3918 = vsyncpa %s3917, 1

</llo_original>
